<compile_context>
chip_gen: v6e
topology: v6e:2x2x1
jax: 0.10.0
libtpu: 0.0.40
codegen_flags: <defaults>
</compile_context>

<pallas_src>
import jax
import jax.numpy as jnp
from jax import lax
from jax.experimental import pallas as pl
from jax.experimental.pallas import tpu as pltpu


def _round_up(n, m):
    return ((n + m - 1) // m) * m


def _pick_row_block(n, target=512, align=16):
    """Row-block size and padded row count for a 1-D 'parallel' row grid."""
    if n >= target:
        return target, _round_up(n, target)
    blk = _round_up(n, align)
    return blk, blk


def _largest_divisor_leq(n, cap):
    cap = max(1, min(n, cap))
    for d in range(cap, 0, -1):
        if n % d == 0:
            return d
    return 1


# ----------------------------------------------------------------------------
# Kernel 1: hoisted input projection for one BiLSTM layer.
#   y = sum_k x_k @ W_k + b   (both directions packed: columns [fwd 4H|bwd 4H])
#   stored as two bf16 arrays gx_fwd (N, 4H) and gx_bwd (N, 4H).
# ----------------------------------------------------------------------------
def _make_gate_proj_kernel(n_parts, g4):
    def kernel(*refs):
        x_refs = refs[:n_parts]
        w_refs = refs[n_parts:2 * n_parts]
        b_ref = refs[2 * n_parts]
        of_ref = refs[2 * n_parts + 1]
        ob_ref = refs[2 * n_parts + 2]
        acc = jnp.dot(x_refs[0][...], w_refs[0][...],
                      preferred_element_type=jnp.float32)
        for k in range(1, n_parts):
            acc = acc + jnp.dot(x_refs[k][...], w_refs[k][...],
                                preferred_element_type=jnp.float32)
        acc = acc + b_ref[...]
        of_ref[...] = acc[:, :g4].astype(of_ref.dtype)
        ob_ref[...] = acc[:, g4:].astype(ob_ref.dtype)
    return kernel


def lstm_gate_projection(x_parts, w_parts, bias):
    """x_parts: list of (N, Dk); w_parts: list of (Dk, 8H) bf16;
    bias: (1, 8H) f32.  Returns (gx_fwd, gx_bwd), each (N, 4H) bf16."""
    N = x_parts[0].shape[0]
    G = bias.shape[1]
    g4 = G // 2
    blk, n_pad = _pick_row_block(N)

    xs = []
    for xp in x_parts:
        xp = xp.astype(jnp.bfloat16)
        if n_pad != N:
            xp = jnp.pad(xp, ((0, n_pad - N), (0, 0)))
        xs.append(xp)

    in_specs = ([pl.BlockSpec((blk, xp.shape[1]), lambda i: (i, 0)) for xp in xs]
                + [pl.BlockSpec(w.shape, lambda i: (0, 0)) for w in w_parts]
                + [pl.BlockSpec((1, G), lambda i: (0, 0))])
    out_specs = [pl.BlockSpec((blk, g4), lambda i: (i, 0)),
                 pl.BlockSpec((blk, g4), lambda i: (i, 0))]

    in_bytes = sum(blk * xp.shape[1] * 2 for xp in xs)
    w_bytes = sum(int(w.size) * 2 for w in w_parts)
    out_bytes = 2 * blk * g4 * 2
    vmem_limit = int(min(64 << 20,
                         2 * (in_bytes + w_bytes + out_bytes) + (4 << 20)))

    gx_f, gx_b = pl.pallas_call(
        _make_gate_proj_kernel(len(xs), g4),
        out_shape=(jax.ShapeDtypeStruct((n_pad, g4), jnp.bfloat16),
                   jax.ShapeDtypeStruct((n_pad, g4), jnp.bfloat16)),
        grid_spec=pltpu.PrefetchScalarGridSpec(
            num_scalar_prefetch=0,
            grid=(n_pad // blk,),
            in_specs=in_specs,
            out_specs=out_specs),
        compiler_params=pltpu.CompilerParams(
            dimension_semantics=("parallel",),
            vmem_limit_bytes=vmem_limit),
    )(*xs, *w_parts, bias)
    if n_pad != N:
        gx_f, gx_b = gx_f[:N], gx_b[:N]
    return gx_f, gx_b


# ----------------------------------------------------------------------------
# Kernel 2: T-chunked bidirectional LSTM recurrence (zero initial h/c).
#   gx packed in [i, f, o, g] order; only h @ W_hh (block-diagonal, one matmul
#   per step for both directions) remains inside the loop.  h/c persist across
#   chunks in VMEM scratch.
# ----------------------------------------------------------------------------
def _bilstm_recurrence_kernel(gxf_ref, gxb_ref, whh_ref,     # (Tc,B,4H) (2H,8H)
                              outf_ref, outb_ref,            # (Tc,B,H) bf16
                              h_ref, cf_ref, cb_ref):        # scratch
    Tc, B, G4 = gxf_ref.shape
    H = G4 // 4

    @pl.when(pl.program_id(0) == 0)
    def _():
        h_ref[...] = jnp.zeros_like(h_ref)
        cf_ref[...] = jnp.zeros_like(cf_ref)
        cb_ref[...] = jnp.zeros_like(cb_ref)

    whh = whh_ref[...]                       # hoisted out of the recurrence

    def gate_math(gates, c):
        # Packed gate order [i, f, o, g]: one contiguous sigmoid + one tanh.
        sg = jax.nn.sigmoid(gates[:, :3 * H])
        g_g = jnp.tanh(gates[:, 3 * H:])
        i_g = sg[:, :H]
        f_g = sg[:, H:2 * H]
        o_g = sg[:, 2 * H:]
        c_new = f_g * c + i_g * g_g
        h_new = o_g * jnp.tanh(c_new)
        return h_new, c_new

    def body(t, carry):
        h_cat, c_f, c_b = carry
        tb = Tc - 1 - t
        # Single MXU push per step: block-diag W_hh yields [gates_f | gates_b].
        rec = jnp.dot(h_cat, whh, preferred_element_type=jnp.float32)  # (B,8H)
        gates_f = gxf_ref[t].astype(jnp.float32) + rec[:, :G4]
        gates_b = gxb_ref[tb].astype(jnp.float32) + rec[:, G4:]
        h_f, c_f = gate_math(gates_f, c_f)
        h_b, c_b = gate_math(gates_b, c_b)
        outf_ref[t] = h_f.astype(outf_ref.dtype)
        outb_ref[tb] = h_b.astype(outb_ref.dtype)
        h_cat = jnp.concatenate([h_f, h_b], axis=-1).astype(jnp.bfloat16)
        return h_cat, c_f, c_b

    unroll = True if Tc <= 32 else 4
    carry0 = (h_ref[...], cf_ref[...], cb_ref[...])
    h_cat, c_f, c_b = lax.fori_loop(0, Tc, body, carry0, unroll=unroll)
    # Persist recurrent state across T-chunks (grid iterations).
    h_ref[...] = h_cat
    cf_ref[...] = c_f
    cb_ref[...] = c_b


def bilstm_recurrence(gx_f, gx_b, whh):
    """gx_f/gx_b: (T, B, 4H) bf16; whh: (2H, 8H) bf16 block-diagonal.
    Returns (out_fwd, out_bwd), each (T, B, H) bf16."""
    T, B, G4 = gx_f.shape
    H = G4 // 4

    # T-chunk so the double-buffered working set stays well under scoped VMEM
    # (v7x: 64 MiB physical) and chunk DMA overlaps the recurrence.
    bytes_per_t = B * (2 * G4 + 2 * H) * 2       # bf16 gx_f+gx_b+out_f+out_b
    tc_cap = max(1, (8 << 20) // max(1, bytes_per_t))
    tc = _largest_divisor_leq(T, tc_cap)
    nt = T // tc

    block_bytes = 2 * tc * bytes_per_t           # double-buffered blocks
    whh_bytes = int(whh.size) * 2
    vmem_limit = int(min(64 << 20, block_bytes + 2 * whh_bytes + (4 << 20)))

    return pl.pallas_call(
        _bilstm_recurrence_kernel,
        out_shape=(jax.ShapeDtypeStruct((T, B, H), jnp.bfloat16),
                   jax.ShapeDtypeStruct((T, B, H), jnp.bfloat16)),
        grid_spec=pltpu.PrefetchScalarGridSpec(
            num_scalar_prefetch=0,
            grid=(nt,),
            in_specs=[pl.BlockSpec((tc, B, G4), lambda i: (i, 0, 0)),
                      pl.BlockSpec((tc, B, G4), lambda i: (nt - 1 - i, 0, 0)),
                      pl.BlockSpec(whh.shape, lambda i: (0, 0))],
            out_specs=[pl.BlockSpec((tc, B, H), lambda i: (i, 0, 0)),
                       pl.BlockSpec((tc, B, H), lambda i: (nt - 1 - i, 0, 0))],
            scratch_shapes=[pltpu.VMEM((B, 2 * H), jnp.bfloat16),
                            pltpu.VMEM((B, H), jnp.float32),
                            pltpu.VMEM((B, H), jnp.float32)]),
        compiler_params=pltpu.CompilerParams(
            dimension_semantics=("arbitrary",),
            vmem_limit_bytes=vmem_limit),
    )(gx_f, gx_b, whh)


# ----------------------------------------------------------------------------
# Kernel 3: hidden2tag head + log_softmax, row-gridded.
#   Linear(2H,2H) [eval BN folded in] -> ReLU -> (Dropout=id)
#   -> Linear(2H, Lpad) -> log_softmax.  Padded label columns carry bias
#   -1e30 so they vanish from the softmax; stores are lane-dense.
# ----------------------------------------------------------------------------
def _head_kernel(hf_ref, hb_ref, w1f_ref, w1b_ref, b1_ref, w2_ref, b2_ref,
                 out_ref):
    z = (jnp.dot(hf_ref[...], w1f_ref[...], preferred_element_type=jnp.float32)
         + jnp.dot(hb_ref[...], w1b_ref[...], preferred_element_type=jnp.float32)
         + b1_ref[...])
    z = jnp.maximum(z, 0.0)                    # ReLU (Dropout = identity, eval)
    logits = jnp.dot(z.astype(jnp.bfloat16), w2_ref[...],
                     preferred_element_type=jnp.float32) + b2_ref[...]
    m = jnp.max(logits, axis=-1, keepdims=True)
    s = logits - m
    lse = jnp.log(jnp.sum(jnp.exp(s), axis=-1, keepdims=True))
    out_ref[...] = s - lse


def hidden2tag_logsoftmax(h_parts, hp):
    """h_parts: [h_fwd (N, H) bf16, h_bwd (N, H) bf16] -> (N, label) f32."""
    h_f, h_b = h_parts
    N, H = h_f.shape
    F2 = 2 * H
    L = hp["w2"].shape[1]
    Lp = _round_up(max(L, 128), 128)
    w2p = jnp.pad(hp["w2"], ((0, 0), (0, Lp - L)))
    b2p = jnp.pad(hp["b2"], ((0, 0), (0, Lp - L)), constant_values=-1e30)

    blk, n_pad = _pick_row_block(N)
    if n_pad != N:
        h_f = jnp.pad(h_f, ((0, n_pad - N), (0, 0)))
        h_b = jnp.pad(h_b, ((0, n_pad - N), (0, 0)))

    row = lambda i: (i, 0)
    full = lambda i: (0, 0)
    weight_bytes = (2 * H * F2 + F2 * Lp) * 2 + (F2 + Lp) * 4
    io_bytes = 2 * blk * H * 2 + blk * Lp * 4
    vmem_limit = int(min(64 << 20, 2 * (weight_bytes + io_bytes) + (4 << 20)))

    out = pl.pallas_call(
        _head_kernel,
        out_shape=jax.ShapeDtypeStruct((n_pad, Lp), jnp.float32),
        grid_spec=pltpu.PrefetchScalarGridSpec(
            num_scalar_prefetch=0,
            grid=(n_pad // blk,),
            in_specs=[pl.BlockSpec((blk, H), row),
                      pl.BlockSpec((blk, H), row),
                      pl.BlockSpec(hp["w1_f"].shape, full),
                      pl.BlockSpec(hp["w1_b"].shape, full),
                      pl.BlockSpec(hp["b1"].shape, full),
                      pl.BlockSpec((F2, Lp), full),
                      pl.BlockSpec((1, Lp), full)],
            out_specs=pl.BlockSpec((blk, Lp), row)),
        compiler_params=pltpu.CompilerParams(
            dimension_semantics=("parallel",),
            vmem_limit_bytes=vmem_limit),
    )(h_f, h_b, hp["w1_f"], hp["w1_b"], hp["b1"], w2p, b2p)
    return out[:N, :L]


# ----------------------------------------------------------------------------
# Parameters: PyTorch-convention init + kernel-ready preparation.
# ----------------------------------------------------------------------------
def init_params(key, *, words_num, words_dim, input_size, hidden_size,
                num_layer, label):
    keys = iter(jax.random.split(key, 64))
    scale = 0.1

    def rnd(shape):
        return scale * jax.random.normal(next(keys), shape, jnp.float32)

    params = {"embed": rnd((words_num, words_dim)), "lstm": []}
    H = hidden_size
    for layer in range(num_layer):
        d_in = input_size if layer == 0 else 2 * H
        layer_p = {}
        for d in ("f", "b"):
            # PyTorch stores (4H, d_in)/(4H, H); keep transposed for x @ W.
            layer_p["wih_" + d] = rnd((d_in, 4 * H))
            layer_p["whh_" + d] = rnd((H, 4 * H))
            layer_p["b_" + d] = rnd((1, 4 * H)) + rnd((1, 4 * H))  # b_ih + b_hh
        params["lstm"].append(layer_p)

    params["head"] = {
        "w1": rnd((2 * H, 2 * H)),
        "b1": rnd((1, 2 * H)),
        "gamma": jnp.ones((1, 2 * H), jnp.float32),
        "beta": jnp.zeros((1, 2 * H), jnp.float32),
        "rm": jnp.zeros((1, 2 * H), jnp.float32),
        "rv": jnp.ones((1, 2 * H), jnp.float32),
        "w2": rnd((2 * H, label)),
        "b2": rnd((1, label)),
    }
    return params


def _reorder_ifgo_to_ifog(w, H):
    """Permute packed gate columns [i,f,g,o] -> [i,f,o,g]."""
    return jnp.concatenate([w[..., :2 * H], w[..., 3 * H:4 * H],
                            w[..., 2 * H:3 * H]], axis=-1)


def prepare_params(params, *, bn_eps=1e-5):
    """PyTorch-layout params -> kernel-ready (gate-reordered, packed, bf16,
    eval-mode BatchNorm folded into the first head linear)."""
    kp = {"embed": params["embed"], "lstm": [], "head": {}}
    for layer, lp in enumerate(params["lstm"]):
        H = lp["whh_f"].shape[0]
        wih_f = _reorder_ifgo_to_ifog(lp["wih_f"], H)
        wih_b = _reorder_ifgo_to_ifog(lp["wih_b"], H)
        b = jnp.concatenate([_reorder_ifgo_to_ifog(lp["b_f"], H),
                             _reorder_ifgo_to_ifog(lp["b_b"], H)], axis=1)
        wih = jnp.concatenate([wih_f, wih_b], axis=1).astype(jnp.bfloat16)
        if layer == 0:
            wih_parts = [wih]                  # input arrives as one part
        else:
            # Layers >= 1 receive direction-split inputs: rows [:H] multiply
            # the forward part, rows [H:] the backward part.
            wih_parts = [wih[:H], wih[H:]]
        whh_f = _reorder_ifgo_to_ifog(lp["whh_f"], H)
        whh_b = _reorder_ifgo_to_ifog(lp["whh_b"], H)
        # Block-diagonal (2H, 8H): one recurrent matmul per step covers both
        # directions: [h_f | h_b] @ whh = [h_f @ whh_f | h_b @ whh_b].
        whh = jnp.zeros((2 * H, 8 * H), jnp.float32)
        whh = whh.at[:H, :4 * H].set(whh_f).at[H:, 4 * H:].set(whh_b)
        kp["lstm"].append({"wih_parts": wih_parts, "b": b,
                           "whh": whh.astype(jnp.bfloat16)})

    hp = params["head"]
    H = hp["w1"].shape[0] // 2
    # Fold eval-mode BatchNorm1d (running stats) into the first linear.
    scale = hp["gamma"] * lax.rsqrt(hp["rv"] + bn_eps)          # (1, 2H)
    w1 = hp["w1"] * scale
    b1 = (hp["b1"] - hp["rm"]) * scale + hp["beta"]
    kp["head"] = {
        "w1_f": w1[:H].astype(jnp.bfloat16),
        "w1_b": w1[H:].astype(jnp.bfloat16),
        "b1": b1,
        "w2": hp["w2"].astype(jnp.bfloat16),
        "b2": hp["b2"],
    }
    return kp


# ----------------------------------------------------------------------------
# Full forward.
# ----------------------------------------------------------------------------
@jax.jit
def entity_detection_forward(text, kparams):
    """text: (seq, batch) int32 -> (seq*batch, label) f32 log-softmax scores."""
    T, B = text.shape
    x = jnp.take(kparams["embed"], text, axis=0)               # (T, B, D) f32
    x_parts = [x.reshape(T * B, x.shape[-1])]
    for lp in kparams["lstm"]:
        H = lp["whh"].shape[0] // 2
        gx_f, gx_b = lstm_gate_projection(x_parts, lp["wih_parts"], lp["b"])
        out_f, out_b = bilstm_recurrence(gx_f.reshape(T, B, 4 * H),
                                         gx_b.reshape(T, B, 4 * H),
                                         lp["whh"])
        # TODO(synk): inter-layer rnn_dropout is train-mode only in PyTorch;
        # eval semantics (identity) are used here.
        x_parts = [out_f.reshape(T * B, H), out_b.reshape(T * B, H)]
    return hidden2tag_logsoftmax(x_parts, kparams["head"])


if __name__ == "__main__":
    # Small config consistent with the module's __init__ (LSTM mode).
    cfg = dict(words_num=100, words_dim=32, input_size=32, hidden_size=32,
               num_layer=2, label=4)
    seq_len, batch = 8, 2

    key = jax.random.PRNGKey(0)
    k_params, k_text = jax.random.split(key)
    params = init_params(k_params, **cfg)
    kparams = prepare_params(params)
    text = jax.random.randint(k_text, (seq_len, batch), 0, cfg["words_num"],
                              dtype=jnp.int32)

    scores = entity_detection_forward(text, kparams)
    jax.block_until_ready(scores)
    assert scores.shape == (seq_len * batch, cfg["label"])
    assert bool(jnp.all(jnp.isfinite(scores)))
    # log-softmax rows should sum to ~1 after exp.
    assert bool(jnp.allclose(jnp.sum(jnp.exp(scores), axis=-1), 1.0, atol=1e-3))
    print("KERNEL_OK")
</pallas_src>

<mosaic_0001>
module attributes {stable_mosaic.version = 11 : i64} {
  func.func @kernel(%arg0: i32, %arg1: memref<16x32xbf16, #tpu.memory_space<vmem>>, %arg2: memref<32x256xbf16, #tpu.memory_space<vmem>>, %arg3: memref<1x256xf32, #tpu.memory_space<vmem>>, %arg4: memref<16x128xbf16, #tpu.memory_space<vmem>>, %arg5: memref<16x128xbf16, #tpu.memory_space<vmem>>) attributes {dimension_semantics = [#tpu.dimension_semantics<parallel>], iteration_bounds = array<i64: 1>, scalar_prefetch = 0 : i64, scratch_operands = 0 : i64, tpu.core_type = #tpu.core_type<tc>, window_params = [{transform_indices = @transform_0, window_bounds = array<i64: 16, 32>}, {pipeline_mode = #tpu.pipeline_mode<synchronous>, transform_indices = @transform_1, window_bounds = array<i64: 32, 256>}, {pipeline_mode = #tpu.pipeline_mode<synchronous>, transform_indices = @transform_2, window_bounds = array<i64: 1, 256>}, {transform_indices = @transform_3, window_bounds = array<i64: 16, 128>}, {transform_indices = @transform_4, window_bounds = array<i64: 16, 128>}]} {
    %c0 = arith.constant 0 : index
    %c0_0 = arith.constant 0 : index
    %0 = vector.load %arg1[%c0, %c0_0] : memref<16x32xbf16, #tpu.memory_space<vmem>>, vector<16x32xbf16>
    %c0_1 = arith.constant 0 : index
    %c0_2 = arith.constant 0 : index
    %1 = vector.load %arg2[%c0_1, %c0_2] : memref<32x256xbf16, #tpu.memory_space<vmem>>, vector<32x256xbf16>
    %cst = arith.constant dense<0.000000e+00> : vector<16x256xf32>
    %2 = tpu.matmul %0, %1, %cst {dimension_numbers = #tpu.dot_dimension_numbers<[1], [0], [0], [1], [0, 0, 1, 1], [], []>} : vector<16x32xbf16>, vector<32x256xbf16>, vector<16x256xf32> -> vector<16x256xf32>
    %c0_3 = arith.constant 0 : index
    %c0_4 = arith.constant 0 : index
    %3 = vector.load %arg3[%c0_3, %c0_4] : memref<1x256xf32, #tpu.memory_space<vmem>>, vector<1x256xf32>
    %4 = vector.broadcast %3 : vector<1x256xf32> to vector<16x256xf32>
    %5 = arith.addf %2, %4 : vector<16x256xf32>
    %6 = vector.extract_strided_slice %5 {offsets = [0, 0], sizes = [16, 128], strides = [1, 1]} : vector<16x256xf32> to vector<16x128xf32>
    %7 = arith.truncf %6 : vector<16x128xf32> to vector<16x128xbf16>
    %c0_5 = arith.constant 0 : index
    %c0_6 = arith.constant 0 : index
    %8 = vector.load %arg4[%c0_5, %c0_6] : memref<16x128xbf16, #tpu.memory_space<vmem>>, vector<16x128xbf16>
    tpu.vector_store %arg4[%c0_5, %c0_6], %7 {strides = array<i32>} : memref<16x128xbf16, #tpu.memory_space<vmem>>, vector<16x128xbf16>,
    %9 = vector.extract_strided_slice %5 {offsets = [0, 128], sizes = [16, 128], strides = [1, 1]} : vector<16x256xf32> to vector<16x128xf32>
    %10 = arith.truncf %9 : vector<16x128xf32> to vector<16x128xbf16>
    %c0_7 = arith.constant 0 : index
    %c0_8 = arith.constant 0 : index
    %11 = vector.load %arg5[%c0_7, %c0_8] : memref<16x128xbf16, #tpu.memory_space<vmem>>, vector<16x128xbf16>
    tpu.vector_store %arg5[%c0_7, %c0_8], %10 {strides = array<i32>} : memref<16x128xbf16, #tpu.memory_space<vmem>>, vector<16x128xbf16>,
    return
  }
  func.func @transform_0(%arg0: i32) -> (i32, i32) {
    %c0_i32 = arith.constant 0 : i32
    %c0_i32_0 = arith.constant 0 : i32
    return %arg0, %c0_i32 : i32, i32
  }
  func.func @transform_1(%arg0: i32) -> (i32, i32) {
    %c0_i32 = arith.constant 0 : i32
    %c0_i32_0 = arith.constant 0 : i32
    %c0_i32_1 = arith.constant 0 : i32
    return %c0_i32, %c0_i32_0 : i32, i32
  }
  func.func @transform_2(%arg0: i32) -> (i32, i32) {
    %c0_i32 = arith.constant 0 : i32
    %c0_i32_0 = arith.constant 0 : i32
    %c0_i32_1 = arith.constant 0 : i32
    return %c0_i32, %c0_i32_0 : i32, i32
  }
  func.func @transform_3(%arg0: i32) -> (i32, i32) {
    %c0_i32 = arith.constant 0 : i32
    %c0_i32_0 = arith.constant 0 : i32
    return %arg0, %c0_i32 : i32, i32
  }
  func.func @transform_4(%arg0: i32) -> (i32, i32) {
    %c0_i32 = arith.constant 0 : i32
    %c0_i32_0 = arith.constant 0 : i32
    return %arg0, %c0_i32 : i32, i32
  }
}

module attributes {stable_mosaic.version = 11 : i64} {
  func.func @kernel(%arg0: i32, %arg1: memref<16x32xbf16, #tpu.memory_space<vmem>>, %arg2: memref<16x32xbf16, #tpu.memory_space<vmem>>, %arg3: memref<32x256xbf16, #tpu.memory_space<vmem>>, %arg4: memref<32x256xbf16, #tpu.memory_space<vmem>>, %arg5: memref<1x256xf32, #tpu.memory_space<vmem>>, %arg6: memref<16x128xbf16, #tpu.memory_space<vmem>>, %arg7: memref<16x128xbf16, #tpu.memory_space<vmem>>) attributes {dimension_semantics = [#tpu.dimension_semantics<parallel>], iteration_bounds = array<i64: 1>, scalar_prefetch = 0 : i64, scratch_operands = 0 : i64, tpu.core_type = #tpu.core_type<tc>, window_params = [{transform_indices = @transform_0, window_bounds = array<i64: 16, 32>}, {transform_indices = @transform_1, window_bounds = array<i64: 16, 32>}, {pipeline_mode = #tpu.pipeline_mode<synchronous>, transform_indices = @transform_2, window_bounds = array<i64: 32, 256>}, {pipeline_mode = #tpu.pipeline_mode<synchronous>, transform_indices = @transform_3, window_bounds = array<i64: 32, 256>}, {pipeline_mode = #tpu.pipeline_mode<synchronous>, transform_indices = @transform_4, window_bounds = array<i64: 1, 256>}, {transform_indices = @transform_5, window_bounds = array<i64: 16, 128>}, {transform_indices = @transform_6, window_bounds = array<i64: 16, 128>}]} {
    %c0 = arith.constant 0 : index
    %c0_0 = arith.constant 0 : index
    %0 = vector.load %arg1[%c0, %c0_0] : memref<16x32xbf16, #tpu.memory_space<vmem>>, vector<16x32xbf16>
    %c0_1 = arith.constant 0 : index
    %c0_2 = arith.constant 0 : index
    %1 = vector.load %arg3[%c0_1, %c0_2] : memref<32x256xbf16, #tpu.memory_space<vmem>>, vector<32x256xbf16>
    %cst = arith.constant dense<0.000000e+00> : vector<16x256xf32>
    %2 = tpu.matmul %0, %1, %cst {dimension_numbers = #tpu.dot_dimension_numbers<[1], [0], [0], [1], [0, 0, 1, 1], [], []>} : vector<16x32xbf16>, vector<32x256xbf16>, vector<16x256xf32> -> vector<16x256xf32>
    %c0_3 = arith.constant 0 : index
    %c0_4 = arith.constant 0 : index
    %3 = vector.load %arg2[%c0_3, %c0_4] : memref<16x32xbf16, #tpu.memory_space<vmem>>, vector<16x32xbf16>
    %c0_5 = arith.constant 0 : index
    %c0_6 = arith.constant 0 : index
    %4 = vector.load %arg4[%c0_5, %c0_6] : memref<32x256xbf16, #tpu.memory_space<vmem>>, vector<32x256xbf16>
    %cst_7 = arith.constant dense<0.000000e+00> : vector<16x256xf32>
    %5 = tpu.matmul %3, %4, %cst_7 {dimension_numbers = #tpu.dot_dimension_numbers<[1], [0], [0], [1], [0, 0, 1, 1], [], []>} : vector<16x32xbf16>, vector<32x256xbf16>, vector<16x256xf32> -> vector<16x256xf32>
    %6 = arith.addf %2, %5 : vector<16x256xf32>
    %c0_8 = arith.constant 0 : index
    %c0_9 = arith.constant 0 : index
    %7 = vector.load %arg5[%c0_8, %c0_9] : memref<1x256xf32, #tpu.memory_space<vmem>>, vector<1x256xf32>
    %8 = vector.broadcast %7 : vector<1x256xf32> to vector<16x256xf32>
    %9 = arith.addf %6, %8 : vector<16x256xf32>
    %10 = vector.extract_strided_slice %9 {offsets = [0, 0], sizes = [16, 128], strides = [1, 1]} : vector<16x256xf32> to vector<16x128xf32>
    %11 = arith.truncf %10 : vector<16x128xf32> to vector<16x128xbf16>
    %c0_10 = arith.constant 0 : index
    %c0_11 = arith.constant 0 : index
    %12 = vector.load %arg6[%c0_10, %c0_11] : memref<16x128xbf16, #tpu.memory_space<vmem>>, vector<16x128xbf16>
    tpu.vector_store %arg6[%c0_10, %c0_11], %11 {strides = array<i32>} : memref<16x128xbf16, #tpu.memory_space<vmem>>, vector<16x128xbf16>,
    %13 = vector.extract_strided_slice %9 {offsets = [0, 128], sizes = [16, 128], strides = [1, 1]} : vector<16x256xf32> to vector<16x128xf32>
    %14 = arith.truncf %13 : vector<16x128xf32> to vector<16x128xbf16>
    %c0_12 = arith.constant 0 : index
    %c0_13 = arith.constant 0 : index
    %15 = vector.load %arg7[%c0_12, %c0_13] : memref<16x128xbf16, #tpu.memory_space<vmem>>, vector<16x128xbf16>
    tpu.vector_store %arg7[%c0_12, %c0_13], %14 {strides = array<i32>} : memref<16x128xbf16, #tpu.memory_space<vmem>>, vector<16x128xbf16>,
    return
  }
  func.func @transform_0(%arg0: i32) -> (i32, i32) {
    %c0_i32 = arith.constant 0 : i32
    %c0_i32_0 = arith.constant 0 : i32
    return %arg0, %c0_i32 : i32, i32
  }
  func.func @transform_1(%arg0: i32) -> (i32, i32) {
    %c0_i32 = arith.constant 0 : i32
    %c0_i32_0 = arith.constant 0 : i32
    return %arg0, %c0_i32 : i32, i32
  }
  func.func @transform_2(%arg0: i32) -> (i32, i32) {
    %c0_i32 = arith.constant 0 : i32
    %c0_i32_0 = arith.constant 0 : i32
    %c0_i32_1 = arith.constant 0 : i32
    return %c0_i32, %c0_i32_0 : i32, i32
  }
  func.func @transform_3(%arg0: i32) -> (i32, i32) {
    %c0_i32 = arith.constant 0 : i32
    %c0_i32_0 = arith.constant 0 : i32
    %c0_i32_1 = arith.constant 0 : i32
    return %c0_i32, %c0_i32_0 : i32, i32
  }
  func.func @transform_4(%arg0: i32) -> (i32, i32) {
    %c0_i32 = arith.constant 0 : i32
    %c0_i32_0 = arith.constant 0 : i32
    %c0_i32_1 = arith.constant 0 : i32
    return %c0_i32, %c0_i32_0 : i32, i32
  }
  func.func @transform_5(%arg0: i32) -> (i32, i32) {
    %c0_i32 = arith.constant 0 : i32
    %c0_i32_0 = arith.constant 0 : i32
    return %arg0, %c0_i32 : i32, i32
  }
  func.func @transform_6(%arg0: i32) -> (i32, i32) {
    %c0_i32 = arith.constant 0 : i32
    %c0_i32_0 = arith.constant 0 : i32
    return %arg0, %c0_i32 : i32, i32
  }
}

module attributes {stable_mosaic.version = 11 : i64} {
  func.func @_bilstm_recurrence_kernel(%arg0: i32, %arg1: memref<8x2x128xbf16, #tpu.memory_space<vmem>>, %arg2: memref<8x2x128xbf16, #tpu.memory_space<vmem>>, %arg3: memref<64x256xbf16, #tpu.memory_space<vmem>>, %arg4: memref<8x2x32xbf16, #tpu.memory_space<vmem>>, %arg5: memref<8x2x32xbf16, #tpu.memory_space<vmem>>, %arg6: memref<2x64xbf16, #tpu.memory_space<vmem>>, %arg7: memref<2x32xf32, #tpu.memory_space<vmem>>, %arg8: memref<2x32xf32, #tpu.memory_space<vmem>>) attributes {dimension_semantics = [#tpu.dimension_semantics<arbitrary>], iteration_bounds = array<i64: 1>, scalar_prefetch = 0 : i64, scratch_operands = 3 : i64, tpu.core_type = #tpu.core_type<tc>, window_params = [{transform_indices = @transform_0, window_bounds = array<i64: 8, 2, 128>}, {transform_indices = @transform_1, window_bounds = array<i64: 8, 2, 128>}, {pipeline_mode = #tpu.pipeline_mode<synchronous>, transform_indices = @transform_2, window_bounds = array<i64: 64, 256>}, {transform_indices = @transform_3, window_bounds = array<i64: 8, 2, 32>}, {transform_indices = @transform_4, window_bounds = array<i64: 8, 2, 32>}]} {
    %c0_i32 = arith.constant 0 : i32
    %0 = arith.cmpi eq, %arg0, %c0_i32 : i32
    %1 = arith.extui %0 : i1 to i32
    %c0_i32_0 = arith.constant 0 : i32
    %2 = arith.cmpi ne, %1, %c0_i32_0 : i32
    scf.if %2 {
      %cst_110 = arith.constant 0.000000e+00 : bf16
      %474 = vector.broadcast %cst_110 : bf16 to vector<2x64xbf16>
      %c0_111 = arith.constant 0 : index
      %c0_112 = arith.constant 0 : index
      %475 = vector.load %arg6[%c0_111, %c0_112] : memref<2x64xbf16, #tpu.memory_space<vmem>>, vector<2x64xbf16>
      tpu.vector_store %arg6[%c0_111, %c0_112], %474 {strides = array<i32>} : memref<2x64xbf16, #tpu.memory_space<vmem>>, vector<2x64xbf16>,
      %cst_113 = arith.constant 0.000000e+00 : f32
      %476 = vector.broadcast %cst_113 : f32 to vector<2x32xf32>
      %c0_114 = arith.constant 0 : index
      %c0_115 = arith.constant 0 : index
      %477 = vector.load %arg7[%c0_114, %c0_115] : memref<2x32xf32, #tpu.memory_space<vmem>>, vector<2x32xf32>
      tpu.vector_store %arg7[%c0_114, %c0_115], %476 {strides = array<i32>} : memref<2x32xf32, #tpu.memory_space<vmem>>, vector<2x32xf32>,
      %cst_116 = arith.constant 0.000000e+00 : f32
      %478 = vector.broadcast %cst_116 : f32 to vector<2x32xf32>
      %c0_117 = arith.constant 0 : index
      %c0_118 = arith.constant 0 : index
      %479 = vector.load %arg8[%c0_117, %c0_118] : memref<2x32xf32, #tpu.memory_space<vmem>>, vector<2x32xf32>
      tpu.vector_store %arg8[%c0_117, %c0_118], %478 {strides = array<i32>} : memref<2x32xf32, #tpu.memory_space<vmem>>, vector<2x32xf32>,
    } else {
    }
    %c0 = arith.constant 0 : index
    %c0_1 = arith.constant 0 : index
    %3 = vector.load %arg3[%c0, %c0_1] : memref<64x256xbf16, #tpu.memory_space<vmem>>, vector<64x256xbf16>
    %c0_2 = arith.constant 0 : index
    %c0_3 = arith.constant 0 : index
    %4 = vector.load %arg6[%c0_2, %c0_3] : memref<2x64xbf16, #tpu.memory_space<vmem>>, vector<2x64xbf16>
    %c0_4 = arith.constant 0 : index
    %c0_5 = arith.constant 0 : index
    %5 = vector.load %arg7[%c0_4, %c0_5] : memref<2x32xf32, #tpu.memory_space<vmem>>, vector<2x32xf32>
    %c0_6 = arith.constant 0 : index
    %c0_7 = arith.constant 0 : index
    %6 = vector.load %arg8[%c0_6, %c0_7] : memref<2x32xf32, #tpu.memory_space<vmem>>, vector<2x32xf32>
    %c0_i32_8 = arith.constant 0 : i32
    %c7_i32 = arith.constant 7 : i32
    %7 = arith.subi %c7_i32, %c0_i32_8 : i32
    %cst = arith.constant dense<0.000000e+00> : vector<2x256xf32>
    %8 = tpu.matmul %4, %3, %cst {dimension_numbers = #tpu.dot_dimension_numbers<[1], [0], [0], [1], [0, 0, 1, 1], [], []>} : vector<2x64xbf16>, vector<64x256xbf16>, vector<2x256xf32> -> vector<2x256xf32>
    %9 = arith.index_cast %c0_i32_8 : i32 to index
    %c0_9 = arith.constant 0 : index
    %c0_10 = arith.constant 0 : index
    %10 = vector.load %arg1[%9, %c0_9, %c0_10] : memref<8x2x128xbf16, #tpu.memory_space<vmem>>, vector<1x2x128xbf16>
    %11 = vector.shape_cast %10 : vector<1x2x128xbf16> to vector<2x128xbf16>
    %12 = arith.extf %11 : vector<2x128xbf16> to vector<2x128xf32>
    %13 = vector.extract_strided_slice %8 {offsets = [0, 0], sizes = [2, 128], strides = [1, 1]} : vector<2x256xf32> to vector<2x128xf32>
    %14 = arith.addf %12, %13 : vector<2x128xf32>
    %15 = arith.index_cast %7 : i32 to index
    %c0_11 = arith.constant 0 : index
    %c0_12 = arith.constant 0 : index
    %16 = vector.load %arg2[%15, %c0_11, %c0_12] : memref<8x2x128xbf16, #tpu.memory_space<vmem>>, vector<1x2x128xbf16>
    %17 = vector.shape_cast %16 : vector<1x2x128xbf16> to vector<2x128xbf16>
    %18 = arith.extf %17 : vector<2x128xbf16> to vector<2x128xf32>
    %19 = vector.extract_strided_slice %8 {offsets = [0, 128], sizes = [2, 128], strides = [1, 1]} : vector<2x256xf32> to vector<2x128xf32>
    %20 = arith.addf %18, %19 : vector<2x128xf32>
    %21 = vector.extract_strided_slice %14 {offsets = [0, 0], sizes = [2, 96], strides = [1, 1]} : vector<2x128xf32> to vector<2x96xf32>
    %22 = arith.negf %21 : vector<2x96xf32>
    %23 = math.exp %22 : vector<2x96xf32>
    %cst_13 = arith.constant 1.000000e+00 : f32
    %24 = vector.broadcast %cst_13 : f32 to vector<2x96xf32>
    %25 = arith.addf %24, %23 : vector<2x96xf32>
    %26 = arith.divf %24, %25 : vector<2x96xf32>
    %27 = vector.extract_strided_slice %14 {offsets = [0, 96], sizes = [2, 32], strides = [1, 1]} : vector<2x128xf32> to vector<2x32xf32>
    %28 = math.tanh %27 : vector<2x32xf32>
    %29 = vector.extract_strided_slice %26 {offsets = [0, 0], sizes = [2, 32], strides = [1, 1]} : vector<2x96xf32> to vector<2x32xf32>
    %30 = vector.extract_strided_slice %26 {offsets = [0, 32], sizes = [2, 32], strides = [1, 1]} : vector<2x96xf32> to vector<2x32xf32>
    %31 = vector.extract_strided_slice %26 {offsets = [0, 64], sizes = [2, 32], strides = [1, 1]} : vector<2x96xf32> to vector<2x32xf32>
    %32 = arith.mulf %30, %5 : vector<2x32xf32>
    %33 = arith.mulf %29, %28 : vector<2x32xf32>
    %34 = arith.addf %32, %33 : vector<2x32xf32>
    %35 = math.tanh %34 : vector<2x32xf32>
    %36 = arith.mulf %31, %35 : vector<2x32xf32>
    %37 = vector.extract_strided_slice %20 {offsets = [0, 0], sizes = [2, 96], strides = [1, 1]} : vector<2x128xf32> to vector<2x96xf32>
    %38 = arith.negf %37 : vector<2x96xf32>
    %39 = math.exp %38 : vector<2x96xf32>
    %cst_14 = arith.constant 1.000000e+00 : f32
    %40 = vector.broadcast %cst_14 : f32 to vector<2x96xf32>
    %41 = arith.addf %40, %39 : vector<2x96xf32>
    %42 = arith.divf %40, %41 : vector<2x96xf32>
    %43 = vector.extract_strided_slice %20 {offsets = [0, 96], sizes = [2, 32], strides = [1, 1]} : vector<2x128xf32> to vector<2x32xf32>
    %44 = math.tanh %43 : vector<2x32xf32>
    %45 = vector.extract_strided_slice %42 {offsets = [0, 0], sizes = [2, 32], strides = [1, 1]} : vector<2x96xf32> to vector<2x32xf32>
    %46 = vector.extract_strided_slice %42 {offsets = [0, 32], sizes = [2, 32], strides = [1, 1]} : vector<2x96xf32> to vector<2x32xf32>
    %47 = vector.extract_strided_slice %42 {offsets = [0, 64], sizes = [2, 32], strides = [1, 1]} : vector<2x96xf32> to vector<2x32xf32>
    %48 = arith.mulf %46, %6 : vector<2x32xf32>
    %49 = arith.mulf %45, %44 : vector<2x32xf32>
    %50 = arith.addf %48, %49 : vector<2x32xf32>
    %51 = math.tanh %50 : vector<2x32xf32>
    %52 = arith.mulf %47, %51 : vector<2x32xf32>
    %53 = arith.truncf %36 : vector<2x32xf32> to vector<2x32xbf16>
    %54 = arith.index_cast %c0_i32_8 : i32 to index
    %c0_15 = arith.constant 0 : index
    %c0_16 = arith.constant 0 : index
    %55 = vector.load %arg4[%54, %c0_15, %c0_16] : memref<8x2x32xbf16, #tpu.memory_space<vmem>>, vector<1x2x32xbf16>
    %56 = vector.shape_cast %55 : vector<1x2x32xbf16> to vector<2x32xbf16>
    %57 = vector.shape_cast %53 : vector<2x32xbf16> to vector<1x2x32xbf16>
    tpu.vector_store %arg4[%54, %c0_15, %c0_16], %57 {strides = array<i32>} : memref<8x2x32xbf16, #tpu.memory_space<vmem>>, vector<1x2x32xbf16>,
    %58 = arith.truncf %52 : vector<2x32xf32> to vector<2x32xbf16>
    %59 = arith.index_cast %7 : i32 to index
    %c0_17 = arith.constant 0 : index
    %c0_18 = arith.constant 0 : index
    %60 = vector.load %arg5[%59, %c0_17, %c0_18] : memref<8x2x32xbf16, #tpu.memory_space<vmem>>, vector<1x2x32xbf16>
    %61 = vector.shape_cast %60 : vector<1x2x32xbf16> to vector<2x32xbf16>
    %62 = vector.shape_cast %58 : vector<2x32xbf16> to vector<1x2x32xbf16>
    tpu.vector_store %arg5[%59, %c0_17, %c0_18], %62 {strides = array<i32>} : memref<8x2x32xbf16, #tpu.memory_space<vmem>>, vector<1x2x32xbf16>,
    %63 = tpu.concatenate %36, %52 in 1 : vector<2x32xf32>, vector<2x32xf32> -> vector<2x64xf32>
    %64 = arith.truncf %63 : vector<2x64xf32> to vector<2x64xbf16>
    %c1_i32 = arith.constant 1 : i32
    %c7_i32_19 = arith.constant 7 : i32
    %65 = arith.subi %c7_i32_19, %c1_i32 : i32
    %cst_20 = arith.constant dense<0.000000e+00> : vector<2x256xf32>
    %66 = tpu.matmul %64, %3, %cst_20 {dimension_numbers = #tpu.dot_dimension_numbers<[1], [0], [0], [1], [0, 0, 1, 1], [], []>} : vector<2x64xbf16>, vector<64x256xbf16>, vector<2x256xf32> -> vector<2x256xf32>
    %67 = arith.index_cast %c1_i32 : i32 to index
    %c0_21 = arith.constant 0 : index
    %c0_22 = arith.constant 0 : index
    %68 = vector.load %arg1[%67, %c0_21, %c0_22] : memref<8x2x128xbf16, #tpu.memory_space<vmem>>, vector<1x2x128xbf16>
    %69 = vector.shape_cast %68 : vector<1x2x128xbf16> to vector<2x128xbf16>
    %70 = arith.extf %69 : vector<2x128xbf16> to vector<2x128xf32>
    %71 = vector.extract_strided_slice %66 {offsets = [0, 0], sizes = [2, 128], strides = [1, 1]} : vector<2x256xf32> to vector<2x128xf32>
    %72 = arith.addf %70, %71 : vector<2x128xf32>
    %73 = arith.index_cast %65 : i32 to index
    %c0_23 = arith.constant 0 : index
    %c0_24 = arith.constant 0 : index
    %74 = vector.load %arg2[%73, %c0_23, %c0_24] : memref<8x2x128xbf16, #tpu.memory_space<vmem>>, vector<1x2x128xbf16>
    %75 = vector.shape_cast %74 : vector<1x2x128xbf16> to vector<2x128xbf16>
    %76 = arith.extf %75 : vector<2x128xbf16> to vector<2x128xf32>
    %77 = vector.extract_strided_slice %66 {offsets = [0, 128], sizes = [2, 128], strides = [1, 1]} : vector<2x256xf32> to vector<2x128xf32>
    %78 = arith.addf %76, %77 : vector<2x128xf32>
    %79 = vector.extract_strided_slice %72 {offsets = [0, 0], sizes = [2, 96], strides = [1, 1]} : vector<2x128xf32> to vector<2x96xf32>
    %80 = arith.negf %79 : vector<2x96xf32>
    %81 = math.exp %80 : vector<2x96xf32>
    %cst_25 = arith.constant 1.000000e+00 : f32
    %82 = vector.broadcast %cst_25 : f32 to vector<2x96xf32>
    %83 = arith.addf %82, %81 : vector<2x96xf32>
    %84 = arith.divf %82, %83 : vector<2x96xf32>
    %85 = vector.extract_strided_slice %72 {offsets = [0, 96], sizes = [2, 32], strides = [1, 1]} : vector<2x128xf32> to vector<2x32xf32>
    %86 = math.tanh %85 : vector<2x32xf32>
    %87 = vector.extract_strided_slice %84 {offsets = [0, 0], sizes = [2, 32], strides = [1, 1]} : vector<2x96xf32> to vector<2x32xf32>
    %88 = vector.extract_strided_slice %84 {offsets = [0, 32], sizes = [2, 32], strides = [1, 1]} : vector<2x96xf32> to vector<2x32xf32>
    %89 = vector.extract_strided_slice %84 {offsets = [0, 64], sizes = [2, 32], strides = [1, 1]} : vector<2x96xf32> to vector<2x32xf32>
    %90 = arith.mulf %88, %34 : vector<2x32xf32>
    %91 = arith.mulf %87, %86 : vector<2x32xf32>
    %92 = arith.addf %90, %91 : vector<2x32xf32>
    %93 = math.tanh %92 : vector<2x32xf32>
    %94 = arith.mulf %89, %93 : vector<2x32xf32>
    %95 = vector.extract_strided_slice %78 {offsets = [0, 0], sizes = [2, 96], strides = [1, 1]} : vector<2x128xf32> to vector<2x96xf32>
    %96 = arith.negf %95 : vector<2x96xf32>
    %97 = math.exp %96 : vector<2x96xf32>
    %cst_26 = arith.constant 1.000000e+00 : f32
    %98 = vector.broadcast %cst_26 : f32 to vector<2x96xf32>
    %99 = arith.addf %98, %97 : vector<2x96xf32>
    %100 = arith.divf %98, %99 : vector<2x96xf32>
    %101 = vector.extract_strided_slice %78 {offsets = [0, 96], sizes = [2, 32], strides = [1, 1]} : vector<2x128xf32> to vector<2x32xf32>
    %102 = math.tanh %101 : vector<2x32xf32>
    %103 = vector.extract_strided_slice %100 {offsets = [0, 0], sizes = [2, 32], strides = [1, 1]} : vector<2x96xf32> to vector<2x32xf32>
    %104 = vector.extract_strided_slice %100 {offsets = [0, 32], sizes = [2, 32], strides = [1, 1]} : vector<2x96xf32> to vector<2x32xf32>
    %105 = vector.extract_strided_slice %100 {offsets = [0, 64], sizes = [2, 32], strides = [1, 1]} : vector<2x96xf32> to vector<2x32xf32>
    %106 = arith.mulf %104, %50 : vector<2x32xf32>
    %107 = arith.mulf %103, %102 : vector<2x32xf32>
    %108 = arith.addf %106, %107 : vector<2x32xf32>
    %109 = math.tanh %108 : vector<2x32xf32>
    %110 = arith.mulf %105, %109 : vector<2x32xf32>
    %111 = arith.truncf %94 : vector<2x32xf32> to vector<2x32xbf16>
    %112 = arith.index_cast %c1_i32 : i32 to index
    %c0_27 = arith.constant 0 : index
    %c0_28 = arith.constant 0 : index
    %113 = vector.load %arg4[%112, %c0_27, %c0_28] : memref<8x2x32xbf16, #tpu.memory_space<vmem>>, vector<1x2x32xbf16>
    %114 = vector.shape_cast %113 : vector<1x2x32xbf16> to vector<2x32xbf16>
    %115 = vector.shape_cast %111 : vector<2x32xbf16> to vector<1x2x32xbf16>
    tpu.vector_store %arg4[%112, %c0_27, %c0_28], %115 {strides = array<i32>} : memref<8x2x32xbf16, #tpu.memory_space<vmem>>, vector<1x2x32xbf16>,
    %116 = arith.truncf %110 : vector<2x32xf32> to vector<2x32xbf16>
    %117 = arith.index_cast %65 : i32 to index
    %c0_29 = arith.constant 0 : index
    %c0_30 = arith.constant 0 : index
    %118 = vector.load %arg5[%117, %c0_29, %c0_30] : memref<8x2x32xbf16, #tpu.memory_space<vmem>>, vector<1x2x32xbf16>
    %119 = vector.shape_cast %118 : vector<1x2x32xbf16> to vector<2x32xbf16>
    %120 = vector.shape_cast %116 : vector<2x32xbf16> to vector<1x2x32xbf16>
    tpu.vector_store %arg5[%117, %c0_29, %c0_30], %120 {strides = array<i32>} : memref<8x2x32xbf16, #tpu.memory_space<vmem>>, vector<1x2x32xbf16>,
    %121 = tpu.concatenate %94, %110 in 1 : vector<2x32xf32>, vector<2x32xf32> -> vector<2x64xf32>
    %122 = arith.truncf %121 : vector<2x64xf32> to vector<2x64xbf16>
    %c2_i32 = arith.constant 2 : i32
    %c7_i32_31 = arith.constant 7 : i32
    %123 = arith.subi %c7_i32_31, %c2_i32 : i32
    %cst_32 = arith.constant dense<0.000000e+00> : vector<2x256xf32>
    %124 = tpu.matmul %122, %3, %cst_32 {dimension_numbers = #tpu.dot_dimension_numbers<[1], [0], [0], [1], [0, 0, 1, 1], [], []>} : vector<2x64xbf16>, vector<64x256xbf16>, vector<2x256xf32> -> vector<2x256xf32>
    %125 = arith.index_cast %c2_i32 : i32 to index
    %c0_33 = arith.constant 0 : index
    %c0_34 = arith.constant 0 : index
    %126 = vector.load %arg1[%125, %c0_33, %c0_34] : memref<8x2x128xbf16, #tpu.memory_space<vmem>>, vector<1x2x128xbf16>
    %127 = vector.shape_cast %126 : vector<1x2x128xbf16> to vector<2x128xbf16>
    %128 = arith.extf %127 : vector<2x128xbf16> to vector<2x128xf32>
    %129 = vector.extract_strided_slice %124 {offsets = [0, 0], sizes = [2, 128], strides = [1, 1]} : vector<2x256xf32> to vector<2x128xf32>
    %130 = arith.addf %128, %129 : vector<2x128xf32>
    %131 = arith.index_cast %123 : i32 to index
    %c0_35 = arith.constant 0 : index
    %c0_36 = arith.constant 0 : index
    %132 = vector.load %arg2[%131, %c0_35, %c0_36] : memref<8x2x128xbf16, #tpu.memory_space<vmem>>, vector<1x2x128xbf16>
    %133 = vector.shape_cast %132 : vector<1x2x128xbf16> to vector<2x128xbf16>
    %134 = arith.extf %133 : vector<2x128xbf16> to vector<2x128xf32>
    %135 = vector.extract_strided_slice %124 {offsets = [0, 128], sizes = [2, 128], strides = [1, 1]} : vector<2x256xf32> to vector<2x128xf32>
    %136 = arith.addf %134, %135 : vector<2x128xf32>
    %137 = vector.extract_strided_slice %130 {offsets = [0, 0], sizes = [2, 96], strides = [1, 1]} : vector<2x128xf32> to vector<2x96xf32>
    %138 = arith.negf %137 : vector<2x96xf32>
    %139 = math.exp %138 : vector<2x96xf32>
    %cst_37 = arith.constant 1.000000e+00 : f32
    %140 = vector.broadcast %cst_37 : f32 to vector<2x96xf32>
    %141 = arith.addf %140, %139 : vector<2x96xf32>
    %142 = arith.divf %140, %141 : vector<2x96xf32>
    %143 = vector.extract_strided_slice %130 {offsets = [0, 96], sizes = [2, 32], strides = [1, 1]} : vector<2x128xf32> to vector<2x32xf32>
    %144 = math.tanh %143 : vector<2x32xf32>
    %145 = vector.extract_strided_slice %142 {offsets = [0, 0], sizes = [2, 32], strides = [1, 1]} : vector<2x96xf32> to vector<2x32xf32>
    %146 = vector.extract_strided_slice %142 {offsets = [0, 32], sizes = [2, 32], strides = [1, 1]} : vector<2x96xf32> to vector<2x32xf32>
    %147 = vector.extract_strided_slice %142 {offsets = [0, 64], sizes = [2, 32], strides = [1, 1]} : vector<2x96xf32> to vector<2x32xf32>
    %148 = arith.mulf %146, %92 : vector<2x32xf32>
    %149 = arith.mulf %145, %144 : vector<2x32xf32>
    %150 = arith.addf %148, %149 : vector<2x32xf32>
    %151 = math.tanh %150 : vector<2x32xf32>
    %152 = arith.mulf %147, %151 : vector<2x32xf32>
    %153 = vector.extract_strided_slice %136 {offsets = [0, 0], sizes = [2, 96], strides = [1, 1]} : vector<2x128xf32> to vector<2x96xf32>
    %154 = arith.negf %153 : vector<2x96xf32>
    %155 = math.exp %154 : vector<2x96xf32>
    %cst_38 = arith.constant 1.000000e+00 : f32
    %156 = vector.broadcast %cst_38 : f32 to vector<2x96xf32>
    %157 = arith.addf %156, %155 : vector<2x96xf32>
    %158 = arith.divf %156, %157 : vector<2x96xf32>
    %159 = vector.extract_strided_slice %136 {offsets = [0, 96], sizes = [2, 32], strides = [1, 1]} : vector<2x128xf32> to vector<2x32xf32>
    %160 = math.tanh %159 : vector<2x32xf32>
    %161 = vector.extract_strided_slice %158 {offsets = [0, 0], sizes = [2, 32], strides = [1, 1]} : vector<2x96xf32> to vector<2x32xf32>
    %162 = vector.extract_strided_slice %158 {offsets = [0, 32], sizes = [2, 32], strides = [1, 1]} : vector<2x96xf32> to vector<2x32xf32>
    %163 = vector.extract_strided_slice %158 {offsets = [0, 64], sizes = [2, 32], strides = [1, 1]} : vector<2x96xf32> to vector<2x32xf32>
    %164 = arith.mulf %162, %108 : vector<2x32xf32>
    %165 = arith.mulf %161, %160 : vector<2x32xf32>
    %166 = arith.addf %164, %165 : vector<2x32xf32>
    %167 = math.tanh %166 : vector<2x32xf32>
    %168 = arith.mulf %163, %167 : vector<2x32xf32>
    %169 = arith.truncf %152 : vector<2x32xf32> to vector<2x32xbf16>
    %170 = arith.index_cast %c2_i32 : i32 to index
    %c0_39 = arith.constant 0 : index
    %c0_40 = arith.constant 0 : index
    %171 = vector.load %arg4[%170, %c0_39, %c0_40] : memref<8x2x32xbf16, #tpu.memory_space<vmem>>, vector<1x2x32xbf16>
    %172 = vector.shape_cast %171 : vector<1x2x32xbf16> to vector<2x32xbf16>
    %173 = vector.shape_cast %169 : vector<2x32xbf16> to vector<1x2x32xbf16>
    tpu.vector_store %arg4[%170, %c0_39, %c0_40], %173 {strides = array<i32>} : memref<8x2x32xbf16, #tpu.memory_space<vmem>>, vector<1x2x32xbf16>,
    %174 = arith.truncf %168 : vector<2x32xf32> to vector<2x32xbf16>
    %175 = arith.index_cast %123 : i32 to index
    %c0_41 = arith.constant 0 : index
    %c0_42 = arith.constant 0 : index
    %176 = vector.load %arg5[%175, %c0_41, %c0_42] : memref<8x2x32xbf16, #tpu.memory_space<vmem>>, vector<1x2x32xbf16>
    %177 = vector.shape_cast %176 : vector<1x2x32xbf16> to vector<2x32xbf16>
    %178 = vector.shape_cast %174 : vector<2x32xbf16> to vector<1x2x32xbf16>
    tpu.vector_store %arg5[%175, %c0_41, %c0_42], %178 {strides = array<i32>} : memref<8x2x32xbf16, #tpu.memory_space<vmem>>, vector<1x2x32xbf16>,
    %179 = tpu.concatenate %152, %168 in 1 : vector<2x32xf32>, vector<2x32xf32> -> vector<2x64xf32>
    %180 = arith.truncf %179 : vector<2x64xf32> to vector<2x64xbf16>
    %c3_i32 = arith.constant 3 : i32
    %c7_i32_43 = arith.constant 7 : i32
    %181 = arith.subi %c7_i32_43, %c3_i32 : i32
    %cst_44 = arith.constant dense<0.000000e+00> : vector<2x256xf32>
    %182 = tpu.matmul %180, %3, %cst_44 {dimension_numbers = #tpu.dot_dimension_numbers<[1], [0], [0], [1], [0, 0, 1, 1], [], []>} : vector<2x64xbf16>, vector<64x256xbf16>, vector<2x256xf32> -> vector<2x256xf32>
    %183 = arith.index_cast %c3_i32 : i32 to index
    %c0_45 = arith.constant 0 : index
    %c0_46 = arith.constant 0 : index
    %184 = vector.load %arg1[%183, %c0_45, %c0_46] : memref<8x2x128xbf16, #tpu.memory_space<vmem>>, vector<1x2x128xbf16>
    %185 = vector.shape_cast %184 : vector<1x2x128xbf16> to vector<2x128xbf16>
    %186 = arith.extf %185 : vector<2x128xbf16> to vector<2x128xf32>
    %187 = vector.extract_strided_slice %182 {offsets = [0, 0], sizes = [2, 128], strides = [1, 1]} : vector<2x256xf32> to vector<2x128xf32>
    %188 = arith.addf %186, %187 : vector<2x128xf32>
    %189 = arith.index_cast %181 : i32 to index
    %c0_47 = arith.constant 0 : index
    %c0_48 = arith.constant 0 : index
    %190 = vector.load %arg2[%189, %c0_47, %c0_48] : memref<8x2x128xbf16, #tpu.memory_space<vmem>>, vector<1x2x128xbf16>
    %191 = vector.shape_cast %190 : vector<1x2x128xbf16> to vector<2x128xbf16>
    %192 = arith.extf %191 : vector<2x128xbf16> to vector<2x128xf32>
    %193 = vector.extract_strided_slice %182 {offsets = [0, 128], sizes = [2, 128], strides = [1, 1]} : vector<2x256xf32> to vector<2x128xf32>
    %194 = arith.addf %192, %193 : vector<2x128xf32>
    %195 = vector.extract_strided_slice %188 {offsets = [0, 0], sizes = [2, 96], strides = [1, 1]} : vector<2x128xf32> to vector<2x96xf32>
    %196 = arith.negf %195 : vector<2x96xf32>
    %197 = math.exp %196 : vector<2x96xf32>
    %cst_49 = arith.constant 1.000000e+00 : f32
    %198 = vector.broadcast %cst_49 : f32 to vector<2x96xf32>
    %199 = arith.addf %198, %197 : vector<2x96xf32>
    %200 = arith.divf %198, %199 : vector<2x96xf32>
    %201 = vector.extract_strided_slice %188 {offsets = [0, 96], sizes = [2, 32], strides = [1, 1]} : vector<2x128xf32> to vector<2x32xf32>
    %202 = math.tanh %201 : vector<2x32xf32>
    %203 = vector.extract_strided_slice %200 {offsets = [0, 0], sizes = [2, 32], strides = [1, 1]} : vector<2x96xf32> to vector<2x32xf32>
    %204 = vector.extract_strided_slice %200 {offsets = [0, 32], sizes = [2, 32], strides = [1, 1]} : vector<2x96xf32> to vector<2x32xf32>
    %205 = vector.extract_strided_slice %200 {offsets = [0, 64], sizes = [2, 32], strides = [1, 1]} : vector<2x96xf32> to vector<2x32xf32>
    %206 = arith.mulf %204, %150 : vector<2x32xf32>
    %207 = arith.mulf %203, %202 : vector<2x32xf32>
    %208 = arith.addf %206, %207 : vector<2x32xf32>
    %209 = math.tanh %208 : vector<2x32xf32>
    %210 = arith.mulf %205, %209 : vector<2x32xf32>
    %211 = vector.extract_strided_slice %194 {offsets = [0, 0], sizes = [2, 96], strides = [1, 1]} : vector<2x128xf32> to vector<2x96xf32>
    %212 = arith.negf %211 : vector<2x96xf32>
    %213 = math.exp %212 : vector<2x96xf32>
    %cst_50 = arith.constant 1.000000e+00 : f32
    %214 = vector.broadcast %cst_50 : f32 to vector<2x96xf32>
    %215 = arith.addf %214, %213 : vector<2x96xf32>
    %216 = arith.divf %214, %215 : vector<2x96xf32>
    %217 = vector.extract_strided_slice %194 {offsets = [0, 96], sizes = [2, 32], strides = [1, 1]} : vector<2x128xf32> to vector<2x32xf32>
    %218 = math.tanh %217 : vector<2x32xf32>
    %219 = vector.extract_strided_slice %216 {offsets = [0, 0], sizes = [2, 32], strides = [1, 1]} : vector<2x96xf32> to vector<2x32xf32>
    %220 = vector.extract_strided_slice %216 {offsets = [0, 32], sizes = [2, 32], strides = [1, 1]} : vector<2x96xf32> to vector<2x32xf32>
    %221 = vector.extract_strided_slice %216 {offsets = [0, 64], sizes = [2, 32], strides = [1, 1]} : vector<2x96xf32> to vector<2x32xf32>
    %222 = arith.mulf %220, %166 : vector<2x32xf32>
    %223 = arith.mulf %219, %218 : vector<2x32xf32>
    %224 = arith.addf %222, %223 : vector<2x32xf32>
    %225 = math.tanh %224 : vector<2x32xf32>
    %226 = arith.mulf %221, %225 : vector<2x32xf32>
    %227 = arith.truncf %210 : vector<2x32xf32> to vector<2x32xbf16>
    %228 = arith.index_cast %c3_i32 : i32 to index
    %c0_51 = arith.constant 0 : index
    %c0_52 = arith.constant 0 : index
    %229 = vector.load %arg4[%228, %c0_51, %c0_52] : memref<8x2x32xbf16, #tpu.memory_space<vmem>>, vector<1x2x32xbf16>
    %230 = vector.shape_cast %229 : vector<1x2x32xbf16> to vector<2x32xbf16>
    %231 = vector.shape_cast %227 : vector<2x32xbf16> to vector<1x2x32xbf16>
    tpu.vector_store %arg4[%228, %c0_51, %c0_52], %231 {strides = array<i32>} : memref<8x2x32xbf16, #tpu.memory_space<vmem>>, vector<1x2x32xbf16>,
    %232 = arith.truncf %226 : vector<2x32xf32> to vector<2x32xbf16>
    %233 = arith.index_cast %181 : i32 to index
    %c0_53 = arith.constant 0 : index
    %c0_54 = arith.constant 0 : index
    %234 = vector.load %arg5[%233, %c0_53, %c0_54] : memref<8x2x32xbf16, #tpu.memory_space<vmem>>, vector<1x2x32xbf16>
    %235 = vector.shape_cast %234 : vector<1x2x32xbf16> to vector<2x32xbf16>
    %236 = vector.shape_cast %232 : vector<2x32xbf16> to vector<1x2x32xbf16>
    tpu.vector_store %arg5[%233, %c0_53, %c0_54], %236 {strides = array<i32>} : memref<8x2x32xbf16, #tpu.memory_space<vmem>>, vector<1x2x32xbf16>,
    %237 = tpu.concatenate %210, %226 in 1 : vector<2x32xf32>, vector<2x32xf32> -> vector<2x64xf32>
    %238 = arith.truncf %237 : vector<2x64xf32> to vector<2x64xbf16>
    %c4_i32 = arith.constant 4 : i32
    %c7_i32_55 = arith.constant 7 : i32
    %239 = arith.subi %c7_i32_55, %c4_i32 : i32
    %cst_56 = arith.constant dense<0.000000e+00> : vector<2x256xf32>
    %240 = tpu.matmul %238, %3, %cst_56 {dimension_numbers = #tpu.dot_dimension_numbers<[1], [0], [0], [1], [0, 0, 1, 1], [], []>} : vector<2x64xbf16>, vector<64x256xbf16>, vector<2x256xf32> -> vector<2x256xf32>
    %241 = arith.index_cast %c4_i32 : i32 to index
    %c0_57 = arith.constant 0 : index
    %c0_58 = arith.constant 0 : index
    %242 = vector.load %arg1[%241, %c0_57, %c0_58] : memref<8x2x128xbf16, #tpu.memory_space<vmem>>, vector<1x2x128xbf16>
    %243 = vector.shape_cast %242 : vector<1x2x128xbf16> to vector<2x128xbf16>
    %244 = arith.extf %243 : vector<2x128xbf16> to vector<2x128xf32>
    %245 = vector.extract_strided_slice %240 {offsets = [0, 0], sizes = [2, 128], strides = [1, 1]} : vector<2x256xf32> to vector<2x128xf32>
    %246 = arith.addf %244, %245 : vector<2x128xf32>
    %247 = arith.index_cast %239 : i32 to index
    %c0_59 = arith.constant 0 : index
    %c0_60 = arith.constant 0 : index
    %248 = vector.load %arg2[%247, %c0_59, %c0_60] : memref<8x2x128xbf16, #tpu.memory_space<vmem>>, vector<1x2x128xbf16>
    %249 = vector.shape_cast %248 : vector<1x2x128xbf16> to vector<2x128xbf16>
    %250 = arith.extf %249 : vector<2x128xbf16> to vector<2x128xf32>
    %251 = vector.extract_strided_slice %240 {offsets = [0, 128], sizes = [2, 128], strides = [1, 1]} : vector<2x256xf32> to vector<2x128xf32>
    %252 = arith.addf %250, %251 : vector<2x128xf32>
    %253 = vector.extract_strided_slice %246 {offsets = [0, 0], sizes = [2, 96], strides = [1, 1]} : vector<2x128xf32> to vector<2x96xf32>
    %254 = arith.negf %253 : vector<2x96xf32>
    %255 = math.exp %254 : vector<2x96xf32>
    %cst_61 = arith.constant 1.000000e+00 : f32
    %256 = vector.broadcast %cst_61 : f32 to vector<2x96xf32>
    %257 = arith.addf %256, %255 : vector<2x96xf32>
    %258 = arith.divf %256, %257 : vector<2x96xf32>
    %259 = vector.extract_strided_slice %246 {offsets = [0, 96], sizes = [2, 32], strides = [1, 1]} : vector<2x128xf32> to vector<2x32xf32>
    %260 = math.tanh %259 : vector<2x32xf32>
    %261 = vector.extract_strided_slice %258 {offsets = [0, 0], sizes = [2, 32], strides = [1, 1]} : vector<2x96xf32> to vector<2x32xf32>
    %262 = vector.extract_strided_slice %258 {offsets = [0, 32], sizes = [2, 32], strides = [1, 1]} : vector<2x96xf32> to vector<2x32xf32>
    %263 = vector.extract_strided_slice %258 {offsets = [0, 64], sizes = [2, 32], strides = [1, 1]} : vector<2x96xf32> to vector<2x32xf32>
    %264 = arith.mulf %262, %208 : vector<2x32xf32>
    %265 = arith.mulf %261, %260 : vector<2x32xf32>
    %266 = arith.addf %264, %265 : vector<2x32xf32>
    %267 = math.tanh %266 : vector<2x32xf32>
    %268 = arith.mulf %263, %267 : vector<2x32xf32>
    %269 = vector.extract_strided_slice %252 {offsets = [0, 0], sizes = [2, 96], strides = [1, 1]} : vector<2x128xf32> to vector<2x96xf32>
    %270 = arith.negf %269 : vector<2x96xf32>
    %271 = math.exp %270 : vector<2x96xf32>
    %cst_62 = arith.constant 1.000000e+00 : f32
    %272 = vector.broadcast %cst_62 : f32 to vector<2x96xf32>
    %273 = arith.addf %272, %271 : vector<2x96xf32>
    %274 = arith.divf %272, %273 : vector<2x96xf32>
    %275 = vector.extract_strided_slice %252 {offsets = [0, 96], sizes = [2, 32], strides = [1, 1]} : vector<2x128xf32> to vector<2x32xf32>
    %276 = math.tanh %275 : vector<2x32xf32>
    %277 = vector.extract_strided_slice %274 {offsets = [0, 0], sizes = [2, 32], strides = [1, 1]} : vector<2x96xf32> to vector<2x32xf32>
    %278 = vector.extract_strided_slice %274 {offsets = [0, 32], sizes = [2, 32], strides = [1, 1]} : vector<2x96xf32> to vector<2x32xf32>
    %279 = vector.extract_strided_slice %274 {offsets = [0, 64], sizes = [2, 32], strides = [1, 1]} : vector<2x96xf32> to vector<2x32xf32>
    %280 = arith.mulf %278, %224 : vector<2x32xf32>
    %281 = arith.mulf %277, %276 : vector<2x32xf32>
    %282 = arith.addf %280, %281 : vector<2x32xf32>
    %283 = math.tanh %282 : vector<2x32xf32>
    %284 = arith.mulf %279, %283 : vector<2x32xf32>
    %285 = arith.truncf %268 : vector<2x32xf32> to vector<2x32xbf16>
    %286 = arith.index_cast %c4_i32 : i32 to index
    %c0_63 = arith.constant 0 : index
    %c0_64 = arith.constant 0 : index
    %287 = vector.load %arg4[%286, %c0_63, %c0_64] : memref<8x2x32xbf16, #tpu.memory_space<vmem>>, vector<1x2x32xbf16>
    %288 = vector.shape_cast %287 : vector<1x2x32xbf16> to vector<2x32xbf16>
    %289 = vector.shape_cast %285 : vector<2x32xbf16> to vector<1x2x32xbf16>
    tpu.vector_store %arg4[%286, %c0_63, %c0_64], %289 {strides = array<i32>} : memref<8x2x32xbf16, #tpu.memory_space<vmem>>, vector<1x2x32xbf16>,
    %290 = arith.truncf %284 : vector<2x32xf32> to vector<2x32xbf16>
    %291 = arith.index_cast %239 : i32 to index
    %c0_65 = arith.constant 0 : index
    %c0_66 = arith.constant 0 : index
    %292 = vector.load %arg5[%291, %c0_65, %c0_66] : memref<8x2x32xbf16, #tpu.memory_space<vmem>>, vector<1x2x32xbf16>
    %293 = vector.shape_cast %292 : vector<1x2x32xbf16> to vector<2x32xbf16>
    %294 = vector.shape_cast %290 : vector<2x32xbf16> to vector<1x2x32xbf16>
    tpu.vector_store %arg5[%291, %c0_65, %c0_66], %294 {strides = array<i32>} : memref<8x2x32xbf16, #tpu.memory_space<vmem>>, vector<1x2x32xbf16>,
    %295 = tpu.concatenate %268, %284 in 1 : vector<2x32xf32>, vector<2x32xf32> -> vector<2x64xf32>
    %296 = arith.truncf %295 : vector<2x64xf32> to vector<2x64xbf16>
    %c5_i32 = arith.constant 5 : i32
    %c7_i32_67 = arith.constant 7 : i32
    %297 = arith.subi %c7_i32_67, %c5_i32 : i32
    %cst_68 = arith.constant dense<0.000000e+00> : vector<2x256xf32>
    %298 = tpu.matmul %296, %3, %cst_68 {dimension_numbers = #tpu.dot_dimension_numbers<[1], [0], [0], [1], [0, 0, 1, 1], [], []>} : vector<2x64xbf16>, vector<64x256xbf16>, vector<2x256xf32> -> vector<2x256xf32>
    %299 = arith.index_cast %c5_i32 : i32 to index
    %c0_69 = arith.constant 0 : index
    %c0_70 = arith.constant 0 : index
    %300 = vector.load %arg1[%299, %c0_69, %c0_70] : memref<8x2x128xbf16, #tpu.memory_space<vmem>>, vector<1x2x128xbf16>
    %301 = vector.shape_cast %300 : vector<1x2x128xbf16> to vector<2x128xbf16>
    %302 = arith.extf %301 : vector<2x128xbf16> to vector<2x128xf32>
    %303 = vector.extract_strided_slice %298 {offsets = [0, 0], sizes = [2, 128], strides = [1, 1]} : vector<2x256xf32> to vector<2x128xf32>
    %304 = arith.addf %302, %303 : vector<2x128xf32>
    %305 = arith.index_cast %297 : i32 to index
    %c0_71 = arith.constant 0 : index
    %c0_72 = arith.constant 0 : index
    %306 = vector.load %arg2[%305, %c0_71, %c0_72] : memref<8x2x128xbf16, #tpu.memory_space<vmem>>, vector<1x2x128xbf16>
    %307 = vector.shape_cast %306 : vector<1x2x128xbf16> to vector<2x128xbf16>
    %308 = arith.extf %307 : vector<2x128xbf16> to vector<2x128xf32>
    %309 = vector.extract_strided_slice %298 {offsets = [0, 128], sizes = [2, 128], strides = [1, 1]} : vector<2x256xf32> to vector<2x128xf32>
    %310 = arith.addf %308, %309 : vector<2x128xf32>
    %311 = vector.extract_strided_slice %304 {offsets = [0, 0], sizes = [2, 96], strides = [1, 1]} : vector<2x128xf32> to vector<2x96xf32>
    %312 = arith.negf %311 : vector<2x96xf32>
    %313 = math.exp %312 : vector<2x96xf32>
    %cst_73 = arith.constant 1.000000e+00 : f32
    %314 = vector.broadcast %cst_73 : f32 to vector<2x96xf32>
    %315 = arith.addf %314, %313 : vector<2x96xf32>
    %316 = arith.divf %314, %315 : vector<2x96xf32>
    %317 = vector.extract_strided_slice %304 {offsets = [0, 96], sizes = [2, 32], strides = [1, 1]} : vector<2x128xf32> to vector<2x32xf32>
    %318 = math.tanh %317 : vector<2x32xf32>
    %319 = vector.extract_strided_slice %316 {offsets = [0, 0], sizes = [2, 32], strides = [1, 1]} : vector<2x96xf32> to vector<2x32xf32>
    %320 = vector.extract_strided_slice %316 {offsets = [0, 32], sizes = [2, 32], strides = [1, 1]} : vector<2x96xf32> to vector<2x32xf32>
    %321 = vector.extract_strided_slice %316 {offsets = [0, 64], sizes = [2, 32], strides = [1, 1]} : vector<2x96xf32> to vector<2x32xf32>
    %322 = arith.mulf %320, %266 : vector<2x32xf32>
    %323 = arith.mulf %319, %318 : vector<2x32xf32>
    %324 = arith.addf %322, %323 : vector<2x32xf32>
    %325 = math.tanh %324 : vector<2x32xf32>
    %326 = arith.mulf %321, %325 : vector<2x32xf32>
    %327 = vector.extract_strided_slice %310 {offsets = [0, 0], sizes = [2, 96], strides = [1, 1]} : vector<2x128xf32> to vector<2x96xf32>
    %328 = arith.negf %327 : vector<2x96xf32>
    %329 = math.exp %328 : vector<2x96xf32>
    %cst_74 = arith.constant 1.000000e+00 : f32
    %330 = vector.broadcast %cst_74 : f32 to vector<2x96xf32>
    %331 = arith.addf %330, %329 : vector<2x96xf32>
    %332 = arith.divf %330, %331 : vector<2x96xf32>
    %333 = vector.extract_strided_slice %310 {offsets = [0, 96], sizes = [2, 32], strides = [1, 1]} : vector<2x128xf32> to vector<2x32xf32>
    %334 = math.tanh %333 : vector<2x32xf32>
    %335 = vector.extract_strided_slice %332 {offsets = [0, 0], sizes = [2, 32], strides = [1, 1]} : vector<2x96xf32> to vector<2x32xf32>
    %336 = vector.extract_strided_slice %332 {offsets = [0, 32], sizes = [2, 32], strides = [1, 1]} : vector<2x96xf32> to vector<2x32xf32>
    %337 = vector.extract_strided_slice %332 {offsets = [0, 64], sizes = [2, 32], strides = [1, 1]} : vector<2x96xf32> to vector<2x32xf32>
    %338 = arith.mulf %336, %282 : vector<2x32xf32>
    %339 = arith.mulf %335, %334 : vector<2x32xf32>
    %340 = arith.addf %338, %339 : vector<2x32xf32>
    %341 = math.tanh %340 : vector<2x32xf32>
    %342 = arith.mulf %337, %341 : vector<2x32xf32>
    %343 = arith.truncf %326 : vector<2x32xf32> to vector<2x32xbf16>
    %344 = arith.index_cast %c5_i32 : i32 to index
    %c0_75 = arith.constant 0 : index
    %c0_76 = arith.constant 0 : index
    %345 = vector.load %arg4[%344, %c0_75, %c0_76] : memref<8x2x32xbf16, #tpu.memory_space<vmem>>, vector<1x2x32xbf16>
    %346 = vector.shape_cast %345 : vector<1x2x32xbf16> to vector<2x32xbf16>
    %347 = vector.shape_cast %343 : vector<2x32xbf16> to vector<1x2x32xbf16>
    tpu.vector_store %arg4[%344, %c0_75, %c0_76], %347 {strides = array<i32>} : memref<8x2x32xbf16, #tpu.memory_space<vmem>>, vector<1x2x32xbf16>,
    %348 = arith.truncf %342 : vector<2x32xf32> to vector<2x32xbf16>
    %349 = arith.index_cast %297 : i32 to index
    %c0_77 = arith.constant 0 : index
    %c0_78 = arith.constant 0 : index
    %350 = vector.load %arg5[%349, %c0_77, %c0_78] : memref<8x2x32xbf16, #tpu.memory_space<vmem>>, vector<1x2x32xbf16>
    %351 = vector.shape_cast %350 : vector<1x2x32xbf16> to vector<2x32xbf16>
    %352 = vector.shape_cast %348 : vector<2x32xbf16> to vector<1x2x32xbf16>
    tpu.vector_store %arg5[%349, %c0_77, %c0_78], %352 {strides = array<i32>} : memref<8x2x32xbf16, #tpu.memory_space<vmem>>, vector<1x2x32xbf16>,
    %353 = tpu.concatenate %326, %342 in 1 : vector<2x32xf32>, vector<2x32xf32> -> vector<2x64xf32>
    %354 = arith.truncf %353 : vector<2x64xf32> to vector<2x64xbf16>
    %c6_i32 = arith.constant 6 : i32
    %c7_i32_79 = arith.constant 7 : i32
    %355 = arith.subi %c7_i32_79, %c6_i32 : i32
    %cst_80 = arith.constant dense<0.000000e+00> : vector<2x256xf32>
    %356 = tpu.matmul %354, %3, %cst_80 {dimension_numbers = #tpu.dot_dimension_numbers<[1], [0], [0], [1], [0, 0, 1, 1], [], []>} : vector<2x64xbf16>, vector<64x256xbf16>, vector<2x256xf32> -> vector<2x256xf32>
    %357 = arith.index_cast %c6_i32 : i32 to index
    %c0_81 = arith.constant 0 : index
    %c0_82 = arith.constant 0 : index
    %358 = vector.load %arg1[%357, %c0_81, %c0_82] : memref<8x2x128xbf16, #tpu.memory_space<vmem>>, vector<1x2x128xbf16>
    %359 = vector.shape_cast %358 : vector<1x2x128xbf16> to vector<2x128xbf16>
    %360 = arith.extf %359 : vector<2x128xbf16> to vector<2x128xf32>
    %361 = vector.extract_strided_slice %356 {offsets = [0, 0], sizes = [2, 128], strides = [1, 1]} : vector<2x256xf32> to vector<2x128xf32>
    %362 = arith.addf %360, %361 : vector<2x128xf32>
    %363 = arith.index_cast %355 : i32 to index
    %c0_83 = arith.constant 0 : index
    %c0_84 = arith.constant 0 : index
    %364 = vector.load %arg2[%363, %c0_83, %c0_84] : memref<8x2x128xbf16, #tpu.memory_space<vmem>>, vector<1x2x128xbf16>
    %365 = vector.shape_cast %364 : vector<1x2x128xbf16> to vector<2x128xbf16>
    %366 = arith.extf %365 : vector<2x128xbf16> to vector<2x128xf32>
    %367 = vector.extract_strided_slice %356 {offsets = [0, 128], sizes = [2, 128], strides = [1, 1]} : vector<2x256xf32> to vector<2x128xf32>
    %368 = arith.addf %366, %367 : vector<2x128xf32>
    %369 = vector.extract_strided_slice %362 {offsets = [0, 0], sizes = [2, 96], strides = [1, 1]} : vector<2x128xf32> to vector<2x96xf32>
    %370 = arith.negf %369 : vector<2x96xf32>
    %371 = math.exp %370 : vector<2x96xf32>
    %cst_85 = arith.constant 1.000000e+00 : f32
    %372 = vector.broadcast %cst_85 : f32 to vector<2x96xf32>
    %373 = arith.addf %372, %371 : vector<2x96xf32>
    %374 = arith.divf %372, %373 : vector<2x96xf32>
    %375 = vector.extract_strided_slice %362 {offsets = [0, 96], sizes = [2, 32], strides = [1, 1]} : vector<2x128xf32> to vector<2x32xf32>
    %376 = math.tanh %375 : vector<2x32xf32>
    %377 = vector.extract_strided_slice %374 {offsets = [0, 0], sizes = [2, 32], strides = [1, 1]} : vector<2x96xf32> to vector<2x32xf32>
    %378 = vector.extract_strided_slice %374 {offsets = [0, 32], sizes = [2, 32], strides = [1, 1]} : vector<2x96xf32> to vector<2x32xf32>
    %379 = vector.extract_strided_slice %374 {offsets = [0, 64], sizes = [2, 32], strides = [1, 1]} : vector<2x96xf32> to vector<2x32xf32>
    %380 = arith.mulf %378, %324 : vector<2x32xf32>
    %381 = arith.mulf %377, %376 : vector<2x32xf32>
    %382 = arith.addf %380, %381 : vector<2x32xf32>
    %383 = math.tanh %382 : vector<2x32xf32>
    %384 = arith.mulf %379, %383 : vector<2x32xf32>
    %385 = vector.extract_strided_slice %368 {offsets = [0, 0], sizes = [2, 96], strides = [1, 1]} : vector<2x128xf32> to vector<2x96xf32>
    %386 = arith.negf %385 : vector<2x96xf32>
    %387 = math.exp %386 : vector<2x96xf32>
    %cst_86 = arith.constant 1.000000e+00 : f32
    %388 = vector.broadcast %cst_86 : f32 to vector<2x96xf32>
    %389 = arith.addf %388, %387 : vector<2x96xf32>
    %390 = arith.divf %388, %389 : vector<2x96xf32>
    %391 = vector.extract_strided_slice %368 {offsets = [0, 96], sizes = [2, 32], strides = [1, 1]} : vector<2x128xf32> to vector<2x32xf32>
    %392 = math.tanh %391 : vector<2x32xf32>
    %393 = vector.extract_strided_slice %390 {offsets = [0, 0], sizes = [2, 32], strides = [1, 1]} : vector<2x96xf32> to vector<2x32xf32>
    %394 = vector.extract_strided_slice %390 {offsets = [0, 32], sizes = [2, 32], strides = [1, 1]} : vector<2x96xf32> to vector<2x32xf32>
    %395 = vector.extract_strided_slice %390 {offsets = [0, 64], sizes = [2, 32], strides = [1, 1]} : vector<2x96xf32> to vector<2x32xf32>
    %396 = arith.mulf %394, %340 : vector<2x32xf32>
    %397 = arith.mulf %393, %392 : vector<2x32xf32>
    %398 = arith.addf %396, %397 : vector<2x32xf32>
    %399 = math.tanh %398 : vector<2x32xf32>
    %400 = arith.mulf %395, %399 : vector<2x32xf32>
    %401 = arith.truncf %384 : vector<2x32xf32> to vector<2x32xbf16>
    %402 = arith.index_cast %c6_i32 : i32 to index
    %c0_87 = arith.constant 0 : index
    %c0_88 = arith.constant 0 : index
    %403 = vector.load %arg4[%402, %c0_87, %c0_88] : memref<8x2x32xbf16, #tpu.memory_space<vmem>>, vector<1x2x32xbf16>
    %404 = vector.shape_cast %403 : vector<1x2x32xbf16> to vector<2x32xbf16>
    %405 = vector.shape_cast %401 : vector<2x32xbf16> to vector<1x2x32xbf16>
    tpu.vector_store %arg4[%402, %c0_87, %c0_88], %405 {strides = array<i32>} : memref<8x2x32xbf16, #tpu.memory_space<vmem>>, vector<1x2x32xbf16>,
    %406 = arith.truncf %400 : vector<2x32xf32> to vector<2x32xbf16>
    %407 = arith.index_cast %355 : i32 to index
    %c0_89 = arith.constant 0 : index
    %c0_90 = arith.constant 0 : index
    %408 = vector.load %arg5[%407, %c0_89, %c0_90] : memref<8x2x32xbf16, #tpu.memory_space<vmem>>, vector<1x2x32xbf16>
    %409 = vector.shape_cast %408 : vector<1x2x32xbf16> to vector<2x32xbf16>
    %410 = vector.shape_cast %406 : vector<2x32xbf16> to vector<1x2x32xbf16>
    tpu.vector_store %arg5[%407, %c0_89, %c0_90], %410 {strides = array<i32>} : memref<8x2x32xbf16, #tpu.memory_space<vmem>>, vector<1x2x32xbf16>,
    %411 = tpu.concatenate %384, %400 in 1 : vector<2x32xf32>, vector<2x32xf32> -> vector<2x64xf32>
    %412 = arith.truncf %411 : vector<2x64xf32> to vector<2x64xbf16>
    %c7_i32_91 = arith.constant 7 : i32
    %c7_i32_92 = arith.constant 7 : i32
    %413 = arith.subi %c7_i32_92, %c7_i32_91 : i32
    %cst_93 = arith.constant dense<0.000000e+00> : vector<2x256xf32>
    %414 = tpu.matmul %412, %3, %cst_93 {dimension_numbers = #tpu.dot_dimension_numbers<[1], [0], [0], [1], [0, 0, 1, 1], [], []>} : vector<2x64xbf16>, vector<64x256xbf16>, vector<2x256xf32> -> vector<2x256xf32>
    %415 = arith.index_cast %c7_i32_91 : i32 to index
    %c0_94 = arith.constant 0 : index
    %c0_95 = arith.constant 0 : index
    %416 = vector.load %arg1[%415, %c0_94, %c0_95] : memref<8x2x128xbf16, #tpu.memory_space<vmem>>, vector<1x2x128xbf16>
    %417 = vector.shape_cast %416 : vector<1x2x128xbf16> to vector<2x128xbf16>
    %418 = arith.extf %417 : vector<2x128xbf16> to vector<2x128xf32>
    %419 = vector.extract_strided_slice %414 {offsets = [0, 0], sizes = [2, 128], strides = [1, 1]} : vector<2x256xf32> to vector<2x128xf32>
    %420 = arith.addf %418, %419 : vector<2x128xf32>
    %421 = arith.index_cast %413 : i32 to index
    %c0_96 = arith.constant 0 : index
    %c0_97 = arith.constant 0 : index
    %422 = vector.load %arg2[%421, %c0_96, %c0_97] : memref<8x2x128xbf16, #tpu.memory_space<vmem>>, vector<1x2x128xbf16>
    %423 = vector.shape_cast %422 : vector<1x2x128xbf16> to vector<2x128xbf16>
    %424 = arith.extf %423 : vector<2x128xbf16> to vector<2x128xf32>
    %425 = vector.extract_strided_slice %414 {offsets = [0, 128], sizes = [2, 128], strides = [1, 1]} : vector<2x256xf32> to vector<2x128xf32>
    %426 = arith.addf %424, %425 : vector<2x128xf32>
    %427 = vector.extract_strided_slice %420 {offsets = [0, 0], sizes = [2, 96], strides = [1, 1]} : vector<2x128xf32> to vector<2x96xf32>
    %428 = arith.negf %427 : vector<2x96xf32>
    %429 = math.exp %428 : vector<2x96xf32>
    %cst_98 = arith.constant 1.000000e+00 : f32
    %430 = vector.broadcast %cst_98 : f32 to vector<2x96xf32>
    %431 = arith.addf %430, %429 : vector<2x96xf32>
    %432 = arith.divf %430, %431 : vector<2x96xf32>
    %433 = vector.extract_strided_slice %420 {offsets = [0, 96], sizes = [2, 32], strides = [1, 1]} : vector<2x128xf32> to vector<2x32xf32>
    %434 = math.tanh %433 : vector<2x32xf32>
    %435 = vector.extract_strided_slice %432 {offsets = [0, 0], sizes = [2, 32], strides = [1, 1]} : vector<2x96xf32> to vector<2x32xf32>
    %436 = vector.extract_strided_slice %432 {offsets = [0, 32], sizes = [2, 32], strides = [1, 1]} : vector<2x96xf32> to vector<2x32xf32>
    %437 = vector.extract_strided_slice %432 {offsets = [0, 64], sizes = [2, 32], strides = [1, 1]} : vector<2x96xf32> to vector<2x32xf32>
    %438 = arith.mulf %436, %382 : vector<2x32xf32>
    %439 = arith.mulf %435, %434 : vector<2x32xf32>
    %440 = arith.addf %438, %439 : vector<2x32xf32>
    %441 = math.tanh %440 : vector<2x32xf32>
    %442 = arith.mulf %437, %441 : vector<2x32xf32>
    %443 = vector.extract_strided_slice %426 {offsets = [0, 0], sizes = [2, 96], strides = [1, 1]} : vector<2x128xf32> to vector<2x96xf32>
    %444 = arith.negf %443 : vector<2x96xf32>
    %445 = math.exp %444 : vector<2x96xf32>
    %cst_99 = arith.constant 1.000000e+00 : f32
    %446 = vector.broadcast %cst_99 : f32 to vector<2x96xf32>
    %447 = arith.addf %446, %445 : vector<2x96xf32>
    %448 = arith.divf %446, %447 : vector<2x96xf32>
    %449 = vector.extract_strided_slice %426 {offsets = [0, 96], sizes = [2, 32], strides = [1, 1]} : vector<2x128xf32> to vector<2x32xf32>
    %450 = math.tanh %449 : vector<2x32xf32>
    %451 = vector.extract_strided_slice %448 {offsets = [0, 0], sizes = [2, 32], strides = [1, 1]} : vector<2x96xf32> to vector<2x32xf32>
    %452 = vector.extract_strided_slice %448 {offsets = [0, 32], sizes = [2, 32], strides = [1, 1]} : vector<2x96xf32> to vector<2x32xf32>
    %453 = vector.extract_strided_slice %448 {offsets = [0, 64], sizes = [2, 32], strides = [1, 1]} : vector<2x96xf32> to vector<2x32xf32>
    %454 = arith.mulf %452, %398 : vector<2x32xf32>
    %455 = arith.mulf %451, %450 : vector<2x32xf32>
    %456 = arith.addf %454, %455 : vector<2x32xf32>
    %457 = math.tanh %456 : vector<2x32xf32>
    %458 = arith.mulf %453, %457 : vector<2x32xf32>
    %459 = arith.truncf %442 : vector<2x32xf32> to vector<2x32xbf16>
    %460 = arith.index_cast %c7_i32_91 : i32 to index
    %c0_100 = arith.constant 0 : index
    %c0_101 = arith.constant 0 : index
    %461 = vector.load %arg4[%460, %c0_100, %c0_101] : memref<8x2x32xbf16, #tpu.memory_space<vmem>>, vector<1x2x32xbf16>
    %462 = vector.shape_cast %461 : vector<1x2x32xbf16> to vector<2x32xbf16>
    %463 = vector.shape_cast %459 : vector<2x32xbf16> to vector<1x2x32xbf16>
    tpu.vector_store %arg4[%460, %c0_100, %c0_101], %463 {strides = array<i32>} : memref<8x2x32xbf16, #tpu.memory_space<vmem>>, vector<1x2x32xbf16>,
    %464 = arith.truncf %458 : vector<2x32xf32> to vector<2x32xbf16>
    %465 = arith.index_cast %413 : i32 to index
    %c0_102 = arith.constant 0 : index
    %c0_103 = arith.constant 0 : index
    %466 = vector.load %arg5[%465, %c0_102, %c0_103] : memref<8x2x32xbf16, #tpu.memory_space<vmem>>, vector<1x2x32xbf16>
    %467 = vector.shape_cast %466 : vector<1x2x32xbf16> to vector<2x32xbf16>
    %468 = vector.shape_cast %464 : vector<2x32xbf16> to vector<1x2x32xbf16>
    tpu.vector_store %arg5[%465, %c0_102, %c0_103], %468 {strides = array<i32>} : memref<8x2x32xbf16, #tpu.memory_space<vmem>>, vector<1x2x32xbf16>,
    %469 = tpu.concatenate %442, %458 in 1 : vector<2x32xf32>, vector<2x32xf32> -> vector<2x64xf32>
    %470 = arith.truncf %469 : vector<2x64xf32> to vector<2x64xbf16>
    %c8_i32 = arith.constant 8 : i32
    %c0_104 = arith.constant 0 : index
    %c0_105 = arith.constant 0 : index
    %471 = vector.load %arg6[%c0_104, %c0_105] : memref<2x64xbf16, #tpu.memory_space<vmem>>, vector<2x64xbf16>
    tpu.vector_store %arg6[%c0_104, %c0_105], %470 {strides = array<i32>} : memref<2x64xbf16, #tpu.memory_space<vmem>>, vector<2x64xbf16>,
    %c0_106 = arith.constant 0 : index
    %c0_107 = arith.constant 0 : index
    %472 = vector.load %arg7[%c0_106, %c0_107] : memref<2x32xf32, #tpu.memory_space<vmem>>, vector<2x32xf32>
    tpu.vector_store %arg7[%c0_106, %c0_107], %440 {strides = array<i32>} : memref<2x32xf32, #tpu.memory_space<vmem>>, vector<2x32xf32>,
    %c0_108 = arith.constant 0 : index
    %c0_109 = arith.constant 0 : index
    %473 = vector.load %arg8[%c0_108, %c0_109] : memref<2x32xf32, #tpu.memory_space<vmem>>, vector<2x32xf32>
    tpu.vector_store %arg8[%c0_108, %c0_109], %456 {strides = array<i32>} : memref<2x32xf32, #tpu.memory_space<vmem>>, vector<2x32xf32>,
    return
  }
  func.func @transform_0(%arg0: i32) -> (i32, i32, i32) {
    %c0_i32 = arith.constant 0 : i32
    %c0_i32_0 = arith.constant 0 : i32
    %c0_i32_1 = arith.constant 0 : i32
    return %arg0, %c0_i32, %c0_i32_0 : i32, i32, i32
  }
  func.func @transform_1(%arg0: i32) -> (i32, i32, i32) {
    %c0_i32 = arith.constant 0 : i32
    %0 = arith.subi %c0_i32, %arg0 : i32
    %c0_i32_0 = arith.constant 0 : i32
    %c0_i32_1 = arith.constant 0 : i32
    %c0_i32_2 = arith.constant 0 : i32
    return %0, %c0_i32_0, %c0_i32_1 : i32, i32, i32
  }
  func.func @transform_2(%arg0: i32) -> (i32, i32) {
    %c0_i32 = arith.constant 0 : i32
    %c0_i32_0 = arith.constant 0 : i32
    %c0_i32_1 = arith.constant 0 : i32
    return %c0_i32, %c0_i32_0 : i32, i32
  }
  func.func @transform_3(%arg0: i32) -> (i32, i32, i32) {
    %c0_i32 = arith.constant 0 : i32
    %c0_i32_0 = arith.constant 0 : i32
    %c0_i32_1 = arith.constant 0 : i32
    return %arg0, %c0_i32, %c0_i32_0 : i32, i32, i32
  }
  func.func @transform_4(%arg0: i32) -> (i32, i32, i32) {
    %c0_i32 = arith.constant 0 : i32
    %0 = arith.subi %c0_i32, %arg0 : i32
    %c0_i32_0 = arith.constant 0 : i32
    %c0_i32_1 = arith.constant 0 : i32
    %c0_i32_2 = arith.constant 0 : i32
    return %0, %c0_i32_0, %c0_i32_1 : i32, i32, i32
  }
}

module attributes {stable_mosaic.version = 11 : i64} {
  func.func @_head_kernel(%arg0: i32, %arg1: memref<16x32xbf16, #tpu.memory_space<vmem>>, %arg2: memref<16x32xbf16, #tpu.memory_space<vmem>>, %arg3: memref<32x64xbf16, #tpu.memory_space<vmem>>, %arg4: memref<32x64xbf16, #tpu.memory_space<vmem>>, %arg5: memref<1x64xf32, #tpu.memory_space<vmem>>, %arg6: memref<64x128xbf16, #tpu.memory_space<vmem>>, %arg7: memref<1x128xf32, #tpu.memory_space<vmem>>, %arg8: memref<16x128xf32, #tpu.memory_space<vmem>>) attributes {dimension_semantics = [#tpu.dimension_semantics<parallel>], iteration_bounds = array<i64: 1>, scalar_prefetch = 0 : i64, scratch_operands = 0 : i64, tpu.core_type = #tpu.core_type<tc>, window_params = [{transform_indices = @transform_0, window_bounds = array<i64: 16, 32>}, {transform_indices = @transform_1, window_bounds = array<i64: 16, 32>}, {pipeline_mode = #tpu.pipeline_mode<synchronous>, transform_indices = @transform_2, window_bounds = array<i64: 32, 64>}, {pipeline_mode = #tpu.pipeline_mode<synchronous>, transform_indices = @transform_3, window_bounds = array<i64: 32, 64>}, {pipeline_mode = #tpu.pipeline_mode<synchronous>, transform_indices = @transform_4, window_bounds = array<i64: 1, 64>}, {pipeline_mode = #tpu.pipeline_mode<synchronous>, transform_indices = @transform_5, window_bounds = array<i64: 64, 128>}, {pipeline_mode = #tpu.pipeline_mode<synchronous>, transform_indices = @transform_6, window_bounds = array<i64: 1, 128>}, {transform_indices = @transform_7, window_bounds = array<i64: 16, 128>}]} {
    %c0 = arith.constant 0 : index
    %c0_0 = arith.constant 0 : index
    %0 = vector.load %arg1[%c0, %c0_0] : memref<16x32xbf16, #tpu.memory_space<vmem>>, vector<16x32xbf16>
    %c0_1 = arith.constant 0 : index
    %c0_2 = arith.constant 0 : index
    %1 = vector.load %arg3[%c0_1, %c0_2] : memref<32x64xbf16, #tpu.memory_space<vmem>>, vector<32x64xbf16>
    %cst = arith.constant dense<0.000000e+00> : vector<16x64xf32>
    %2 = tpu.matmul %0, %1, %cst {dimension_numbers = #tpu.dot_dimension_numbers<[1], [0], [0], [1], [0, 0, 1, 1], [], []>} : vector<16x32xbf16>, vector<32x64xbf16>, vector<16x64xf32> -> vector<16x64xf32>
    %c0_3 = arith.constant 0 : index
    %c0_4 = arith.constant 0 : index
    %3 = vector.load %arg2[%c0_3, %c0_4] : memref<16x32xbf16, #tpu.memory_space<vmem>>, vector<16x32xbf16>
    %c0_5 = arith.constant 0 : index
    %c0_6 = arith.constant 0 : index
    %4 = vector.load %arg4[%c0_5, %c0_6] : memref<32x64xbf16, #tpu.memory_space<vmem>>, vector<32x64xbf16>
    %cst_7 = arith.constant dense<0.000000e+00> : vector<16x64xf32>
    %5 = tpu.matmul %3, %4, %cst_7 {dimension_numbers = #tpu.dot_dimension_numbers<[1], [0], [0], [1], [0, 0, 1, 1], [], []>} : vector<16x32xbf16>, vector<32x64xbf16>, vector<16x64xf32> -> vector<16x64xf32>
    %6 = arith.addf %2, %5 : vector<16x64xf32>
    %c0_8 = arith.constant 0 : index
    %c0_9 = arith.constant 0 : index
    %7 = vector.load %arg5[%c0_8, %c0_9] : memref<1x64xf32, #tpu.memory_space<vmem>>, vector<1x64xf32>
    %8 = vector.broadcast %7 : vector<1x64xf32> to vector<16x64xf32>
    %9 = arith.addf %6, %8 : vector<16x64xf32>
    %cst_10 = arith.constant 0.000000e+00 : f32
    %10 = vector.broadcast %cst_10 : f32 to vector<16x64xf32>
    %11 = arith.maximumf %9, %10 : vector<16x64xf32>
    %12 = arith.truncf %11 : vector<16x64xf32> to vector<16x64xbf16>
    %c0_11 = arith.constant 0 : index
    %c0_12 = arith.constant 0 : index
    %13 = vector.load %arg6[%c0_11, %c0_12] : memref<64x128xbf16, #tpu.memory_space<vmem>>, vector<64x128xbf16>
    %cst_13 = arith.constant dense<0.000000e+00> : vector<16x128xf32>
    %14 = tpu.matmul %12, %13, %cst_13 {dimension_numbers = #tpu.dot_dimension_numbers<[1], [0], [0], [1], [0, 0, 1, 1], [], []>} : vector<16x64xbf16>, vector<64x128xbf16>, vector<16x128xf32> -> vector<16x128xf32>
    %c0_14 = arith.constant 0 : index
    %c0_15 = arith.constant 0 : index
    %15 = vector.load %arg7[%c0_14, %c0_15] : memref<1x128xf32, #tpu.memory_space<vmem>>, vector<1x128xf32>
    %16 = vector.broadcast %15 : vector<1x128xf32> to vector<16x128xf32>
    %17 = arith.addf %14, %16 : vector<16x128xf32>
    %cst_16 = arith.constant dense<0xFF800000> : vector<16xf32>
    %18 = vector.multi_reduction <maximumf>, %17, %cst_16 [1] : vector<16x128xf32> to vector<16xf32>
    %19 = vector.shape_cast %18 : vector<16xf32> to vector<16x1xf32>
    %20 = vector.broadcast %19 : vector<16x1xf32> to vector<16x128xf32>
    %21 = arith.subf %17, %20 : vector<16x128xf32>
    %22 = math.exp %21 : vector<16x128xf32>
    %cst_17 = arith.constant dense<0.000000e+00> : vector<16xf32>
    %23 = vector.multi_reduction <add>, %22, %cst_17 [1] : vector<16x128xf32> to vector<16xf32>
    %24 = vector.shape_cast %23 : vector<16xf32> to vector<16x1xf32>
    %25 = math.log %24 : vector<16x1xf32>
    %26 = vector.broadcast %25 : vector<16x1xf32> to vector<16x128xf32>
    %27 = arith.subf %21, %26 : vector<16x128xf32>
    %c0_18 = arith.constant 0 : index
    %c0_19 = arith.constant 0 : index
    %28 = vector.load %arg8[%c0_18, %c0_19] : memref<16x128xf32, #tpu.memory_space<vmem>>, vector<16x128xf32>
    tpu.vector_store %arg8[%c0_18, %c0_19], %27 {strides = array<i32>} : memref<16x128xf32, #tpu.memory_space<vmem>>, vector<16x128xf32>,
    return
  }
  func.func @transform_0(%arg0: i32) -> (i32, i32) {
    %c0_i32 = arith.constant 0 : i32
    %c0_i32_0 = arith.constant 0 : i32
    return %arg0, %c0_i32 : i32, i32
  }
  func.func @transform_1(%arg0: i32) -> (i32, i32) {
    %c0_i32 = arith.constant 0 : i32
    %c0_i32_0 = arith.constant 0 : i32
    return %arg0, %c0_i32 : i32, i32
  }
  func.func @transform_2(%arg0: i32) -> (i32, i32) {
    %c0_i32 = arith.constant 0 : i32
    %c0_i32_0 = arith.constant 0 : i32
    %c0_i32_1 = arith.constant 0 : i32
    return %c0_i32, %c0_i32_0 : i32, i32
  }
  func.func @transform_3(%arg0: i32) -> (i32, i32) {
    %c0_i32 = arith.constant 0 : i32
    %c0_i32_0 = arith.constant 0 : i32
    %c0_i32_1 = arith.constant 0 : i32
    return %c0_i32, %c0_i32_0 : i32, i32
  }
  func.func @transform_4(%arg0: i32) -> (i32, i32) {
    %c0_i32 = arith.constant 0 : i32
    %c0_i32_0 = arith.constant 0 : i32
    %c0_i32_1 = arith.constant 0 : i32
    return %c0_i32, %c0_i32_0 : i32, i32
  }
  func.func @transform_5(%arg0: i32) -> (i32, i32) {
    %c0_i32 = arith.constant 0 : i32
    %c0_i32_0 = arith.constant 0 : i32
    %c0_i32_1 = arith.constant 0 : i32
    return %c0_i32, %c0_i32_0 : i32, i32
  }
  func.func @transform_6(%arg0: i32) -> (i32, i32) {
    %c0_i32 = arith.constant 0 : i32
    %c0_i32_0 = arith.constant 0 : i32
    %c0_i32_1 = arith.constant 0 : i32
    return %c0_i32, %c0_i32_0 : i32, i32
  }
  func.func @transform_7(%arg0: i32) -> (i32, i32) {
    %c0_i32 = arith.constant 0 : i32
    %c0_i32_0 = arith.constant 0 : i32
    return %arg0, %c0_i32 : i32, i32
  }
}

</mosaic_0001>

<llo_original>
// kernel: entity_detection_forward.7
$region0: #{entity_detection_forward.7}
  #allocation0 [shape = 'u32[]', space=smem, size = 0x4, offset = 0x4, fixed_abs, tag = 'smem constant byte address 0x4 - core index']
  #allocation1 [shape = 'u32[144,128]{1,0:T(1,128)}', space=vmem, size = 0x12000, scoped, tag = 'internal scratch']
  %s0 = inlined_call_operand.vmem [shape: bf16[16,32], index: 0, kind: input, shape index: {}]
  %s1 = inlined_call_operand.vmem [shape: bf16[16,32], index: 1, kind: input, shape index: {}]
  %s2 = inlined_call_operand.vmem [shape: bf16[32,256], index: 2, kind: input, shape index: {}]
  %s3 = inlined_call_operand.vmem [shape: bf16[32,256], index: 3, kind: input, shape index: {}]
  %s4 = inlined_call_operand.vmem [shape: f32[1,256], index: 4, kind: input, shape index: {}]
  %s5 = inlined_call_operand.vmem [shape: bf16[16,128], index: 5, kind: output, shape index: {0}]
  %s6 = inlined_call_operand.vmem [shape: bf16[16,128], index: 6, kind: output, shape index: {1}]
  %7 = xla_tuple %s5, %s6
  %s8 = sld [smem:[#allocation0]]
  $region38: #{entity_detection_forward.7} parent=0
    _
  %s10 = ssub.s32 1, %s8
  %s11 = scalar_select 0, %s10, %s8
  // Predicated region
  $region2: #{entity_detection_forward.7} parent=0 // pred_check
    _
  $region3: #{entity_detection_forward.7} parent=0 // pred_check_branch
    %13 = sbr.rel (0) target = $region5
  $region4: #{entity_detection_forward.7} parent=0 // pred_region
    _
  $region5: #{entity_detection_forward.7} parent=0 // pred_fallthru
    _
  // Predicated region
  $region6: #{entity_detection_forward.7} parent=0 // pred_check
    _
  $region7: #{entity_detection_forward.7} parent=0 // pred_check_branch
    %15 = sbr.rel (0) target = $region9
  $region8: #{entity_detection_forward.7} parent=0 // pred_region
    _
  $region9: #{entity_detection_forward.7} parent=0 // pred_fallthru
    _
  // Predicated region
  $region10: #{entity_detection_forward.7} parent=0 // pred_check
    _
  $region11: #{entity_detection_forward.7} parent=0 // pred_check_branch
    %17 = sbr.rel (0) target = $region13
  $region12: #{entity_detection_forward.7} parent=0 // pred_region
    _
  $region13: #{entity_detection_forward.7} parent=0 // pred_fallthru
    _
  // Predicated region
  $region14: #{entity_detection_forward.7} parent=0 // pred_check
    _
  $region15: #{entity_detection_forward.7} parent=0 // pred_check_branch
    %19 = sbr.rel (0) target = $region17
  $region16: #{entity_detection_forward.7} parent=0 // pred_region
    _
  $region17: #{entity_detection_forward.7} parent=0 // pred_fallthru
    _
  // Predicated region
  $region18: #{entity_detection_forward.7} parent=0 // pred_check
    _
  $region19: #{entity_detection_forward.7} parent=0 // pred_check_branch
    %21 = sbr.rel (0) target = $region21
  $region20: #{entity_detection_forward.7} parent=0 // pred_region
    _
  $region21: #{entity_detection_forward.7} parent=0 // pred_fallthru
    _
  %v23 = vld [vmem:[%s0] sm:$0xf]
  %v24 = vld [vmem:[%s0 + $0x4] sm:$0xf]
  %v25 = vld [vmem:[%s2] sm:$0xff]
  %v26 = vld [vmem:[%s2 + $0x8] sm:$0xff]
  %v27 = vld [vmem:[%s2 + $0x10] sm:$0xff]
  %v28 = vld [vmem:[%s2 + $0x18] sm:$0xff]
  %v29 = vld [vmem:[%s1] sm:$0xf]
  %v30 = vld [vmem:[%s1 + $0x4] sm:$0xf]
  %v31 = vld [vmem:[%s3] sm:$0xff]
  %v32 = vld [vmem:[%s3 + $0x8] sm:$0xff]
  %v33 = vld [vmem:[%s3 + $0x10] sm:$0xff]
  %v34 = vld [vmem:[%s3 + $0x18] sm:$0xff]
  %v37 = vunpack.c.l.b16 %v29
  %v38 = vunpack.c.l.b16 %v30
  %v39 = vpack.c.b16 %v38, %v37
  %v44 = vunpack.c.l.b16 %v31
  %v45 = vunpack.c.h.b16 %v31
  %v46 = vunpack.c.l.b16 %v32
  %v47 = vunpack.c.h.b16 %v32
  %v48 = vunpack.c.l.b16 %v33
  %v49 = vunpack.c.h.b16 %v33
  %v50 = vunpack.c.l.b16 %v34
  %v51 = vunpack.c.h.b16 %v34
  %v52 = vpack.c.b16 %v46, %v44
  %v53 = vpack.c.b16 %v47, %v45
  %v54 = vpack.c.b16 %v50, %v48
  %v55 = vpack.c.b16 %v51, %v49
  %vm60 = vcmask 261120
  %v62 = vsel %vm60, %v39, 0
  %64 = vmatprep.subr.bf16.mxu0 0
  %65 = vmatpush1.bf16.msra.mxu0 0
  %66 = vmatprep.subr.bf16.mxu0 0
  %67 = vmatpush1.bf16.msra.mxu0 0
  %68 = vmatprep.subr.bf16.mxu0 0
  %69 = vmatpush1.bf16.msra.mxu0 0
  %70 = vmatprep.subr.bf16.mxu0 0
  %71 = vmatpush1.bf16.msra.mxu0 0
  %72 = vmatprep.subr.bf16.mxu0 0
  %73 = vmatpush1.bf16.msra.mxu0 0
  %74 = vmatprep.subr.bf16.mxu0 0
  %75 = vmatpush1.bf16.msra.mxu0 0
  %76 = vmatprep.subr.bf16.mxu0 %v55
  %77 = vmatpush1.bf16.msra.mxu0 %v54
  %78 = vmatprep.subr.bf16.mxu0 %v53
  %79 = vmatpush1.bf16.msra.mxu0 %v52
  %80 = vmatprep.subr.bf16.mxu0 0
  %81 = vmatpush2.bf16.msra.mxu0 0
  %82 = vmatprep.subr.bf16.mxu0 0
  %83 = vmatpush2.bf16.msra.mxu0 0
  %84 = vmatprep.subr.bf16.mxu0 0
  %85 = vmatpush2.bf16.msra.mxu0 0
  %86 = vmatprep.subr.bf16.mxu0 0
  %87 = vmatpush2.bf16.msra.mxu0 0
  %88 = vmatprep.subr.bf16.mxu0 0
  %89 = vmatpush2.bf16.msra.mxu0 0
  %90 = vmatprep.subr.bf16.mxu0 0
  %91 = vmatpush2.bf16.msra.mxu0 0
  %92 = vmatprep.subr.bf16.mxu0 0
  %93 = vmatpush2.bf16.msra.mxu0 0
  %94 = vmatprep.subr.bf16.mxu0 0
  %95 = vmatpush2.bf16.msra.mxu0 0
  %96 = vmatprep.mubr.bf16.mxu0 0
  %97 = vmatmul.mubr.bf16.gmra.mxu0 %v62
  %v98 = vpop.f32.mrf.mxu0
  %v99 = vadd.f32 0.0, %v98
  %v100 = vpop.f32.mrf.mxu0
  %v101 = vadd.f32 0.0, %v100
  %v102 = vpop.f32.mrf.mxu0
  %v103 = vadd.f32 0.0, %v102
  %v104 = vpop.f32.mrf.mxu0
  %v105 = vadd.f32 0.0, %v104
  %106 = vdwg.mxu0
  %v109 = vunpack.c.l.b16 %v23
  %v110 = vunpack.c.l.b16 %v24
  %v111 = vpack.c.b16 %v110, %v109
  %v116 = vunpack.c.l.b16 %v25
  %v117 = vunpack.c.h.b16 %v25
  %v118 = vunpack.c.l.b16 %v26
  %v119 = vunpack.c.h.b16 %v26
  %v120 = vunpack.c.l.b16 %v27
  %v121 = vunpack.c.h.b16 %v27
  %v122 = vunpack.c.l.b16 %v28
  %v123 = vunpack.c.h.b16 %v28
  %v124 = vpack.c.b16 %v118, %v116
  %v125 = vpack.c.b16 %v119, %v117
  %v126 = vpack.c.b16 %v122, %v120
  %v127 = vpack.c.b16 %v123, %v121
  %v133 = vsel %vm60, %v111, 0
  %135 = vmatprep.subr.bf16.mxu0 0
  %136 = vmatpush1.bf16.msra.mxu0 0
  %137 = vmatprep.subr.bf16.mxu0 0
  %138 = vmatpush1.bf16.msra.mxu0 0
  %139 = vmatprep.subr.bf16.mxu0 0
  %140 = vmatpush1.bf16.msra.mxu0 0
  %141 = vmatprep.subr.bf16.mxu0 0
  %142 = vmatpush1.bf16.msra.mxu0 0
  %143 = vmatprep.subr.bf16.mxu0 0
  %144 = vmatpush1.bf16.msra.mxu0 0
  %145 = vmatprep.subr.bf16.mxu0 0
  %146 = vmatpush1.bf16.msra.mxu0 0
  %147 = vmatprep.subr.bf16.mxu0 %v127
  %148 = vmatpush1.bf16.msra.mxu0 %v126
  %149 = vmatprep.subr.bf16.mxu0 %v125
  %150 = vmatpush1.bf16.msra.mxu0 %v124
  %151 = vmatprep.subr.bf16.mxu0 0
  %152 = vmatpush2.bf16.msra.mxu0 0
  %153 = vmatprep.subr.bf16.mxu0 0
  %154 = vmatpush2.bf16.msra.mxu0 0
  %155 = vmatprep.subr.bf16.mxu0 0
  %156 = vmatpush2.bf16.msra.mxu0 0
  %157 = vmatprep.subr.bf16.mxu0 0
  %158 = vmatpush2.bf16.msra.mxu0 0
  %159 = vmatprep.subr.bf16.mxu0 0
  %160 = vmatpush2.bf16.msra.mxu0 0
  %161 = vmatprep.subr.bf16.mxu0 0
  %162 = vmatpush2.bf16.msra.mxu0 0
  %163 = vmatprep.subr.bf16.mxu0 0
  %164 = vmatpush2.bf16.msra.mxu0 0
  %165 = vmatprep.subr.bf16.mxu0 0
  %166 = vmatpush2.bf16.msra.mxu0 0
  %167 = vmatprep.mubr.bf16.mxu0 0
  %168 = vmatmul.mubr.bf16.gmra.mxu0 %v133
  %v169 = vpop.f32.mrf.mxu0
  %v170 = vadd.f32 %v99, %v169
  %v171 = vpop.f32.mrf.mxu0
  %v172 = vadd.f32 %v101, %v171
  %v173 = vpop.f32.mrf.mxu0
  %v174 = vadd.f32 %v103, %v173
  %v175 = vpop.f32.mrf.mxu0
  %v176 = vadd.f32 %v105, %v175
  %177 = vdwg.mxu0
  %v178 = vld [vmem:[%s4] sm:$0x3]
  %v180 = vlaneseq
  %v181 = vshrl.u32 %v180, 7
  %v182 = vsub.s32 0, %v181
  %v183 = vrot.slane %v178, %v182
  %v184 = vlaneseq
  %v185 = vshrl.u32 %v184, 7
  %v186 = vsub.s32 1, %v185
  %v187 = vrot.slane %v178, %v186
  %v190 = vadd.f32 %v170, %v183
  %v191 = vadd.f32 %v172, %v187
  %v192 = vadd.f32 %v174, %v183
  %v193 = vadd.f32 %v176, %v187
  %v194 = vpack.c.bf16 %v192, %v190
  %v196 = vunpack.c.l.b16 %v194
  %v197 = vunpack.c.h.b16 %v194
  %v198 = vpack.c.b16 %v196, %v196
  %v199 = vpack.c.b16 %v197, %v197
  %202 = vst [vmem:[%s5] sm:$0xf] %v198
  %203 = vst [vmem:[%s5 + $0x4] sm:$0xf] %v199
  %v204 = vpack.c.bf16 %v193, %v191
  %v206 = vunpack.c.l.b16 %v204
  %v207 = vunpack.c.h.b16 %v204
  %v208 = vpack.c.b16 %v206, %v206
  %v209 = vpack.c.b16 %v207, %v207
  %212 = vst [vmem:[%s6] sm:$0xf] %v208
  %213 = vst [vmem:[%s6 + $0x4] sm:$0xf] %v209
  // Predicated region
  $region22: #{entity_detection_forward.7} parent=0 // pred_check
    _
  $region23: #{entity_detection_forward.7} parent=0 // pred_check_branch
    %215 = sbr.rel (0) target = $region25
  $region24: #{entity_detection_forward.7} parent=0 // pred_region
    _
  $region25: #{entity_detection_forward.7} parent=0 // pred_fallthru
    _
  // Predicated region
  $region26: #{entity_detection_forward.7} parent=0 // pred_check
    _
  $region27: #{entity_detection_forward.7} parent=0 // pred_check_branch
    %217 = sbr.rel (0) target = $region29
  $region28: #{entity_detection_forward.7} parent=0 // pred_region
    _
  $region29: #{entity_detection_forward.7} parent=0 // pred_fallthru
    _
  // Predicated region
  $region30: #{entity_detection_forward.7} parent=0 // pred_check
    _
  $region31: #{entity_detection_forward.7} parent=0 // pred_check_branch
    %219 = sbr.rel (0) target = $region33
  $region32: #{entity_detection_forward.7} parent=0 // pred_region
    _
  $region33: #{entity_detection_forward.7} parent=0 // pred_fallthru
    _
  // Predicated region
  $region34: #{entity_detection_forward.7} parent=0 // pred_check
    _
  $region35: #{entity_detection_forward.7} parent=0 // pred_check_branch
    %221 = sbr.rel (0) target = $region37
  $region36: #{entity_detection_forward.7} parent=0 // pred_region
    _
  $region37: #{entity_detection_forward.7} parent=0 // pred_fallthru
    _

// kernel: entity_detection_forward.9
$region0: #{entity_detection_forward.9}
  #allocation0 [shape = 'u32[]', space=smem, size = 0x4, offset = 0x4, fixed_abs, tag = 'smem constant byte address 0x4 - core index']
  #allocation1 [shape = 'u32[144,128]{1,0:T(1,128)}', space=vmem, size = 0x12000, scoped, tag = 'internal scratch']
  %s0 = inlined_call_operand.vmem [shape: bf16[16,32], index: 0, kind: input, shape index: {}]
  %s1 = inlined_call_operand.vmem [shape: bf16[16,32], index: 1, kind: input, shape index: {}]
  %s2 = inlined_call_operand.vmem [shape: bf16[32,64], index: 2, kind: input, shape index: {}]
  %s3 = inlined_call_operand.vmem [shape: bf16[32,64], index: 3, kind: input, shape index: {}]
  %s4 = inlined_call_operand.vmem [shape: f32[1,64], index: 4, kind: input, shape index: {}]
  %s5 = inlined_call_operand.vmem [shape: bf16[64,128], index: 5, kind: input, shape index: {}]
  %s6 = inlined_call_operand.vmem [shape: f32[1,128], index: 6, kind: input, shape index: {}]
  %s7 = inlined_call_operand.vmem [shape: f32[16,128], index: 7, kind: output, shape index: {}]
  %s8 = sld [smem:[#allocation0]]
  $region38: #{entity_detection_forward.9} parent=0
    _
  %s10 = ssub.s32 1, %s8
  %s11 = scalar_select 0, %s10, %s8
  // Predicated region
  $region2: #{entity_detection_forward.9} parent=0 // pred_check
    _
  $region3: #{entity_detection_forward.9} parent=0 // pred_check_branch
    %13 = sbr.rel (0) target = $region5
  $region4: #{entity_detection_forward.9} parent=0 // pred_region
    _
  $region5: #{entity_detection_forward.9} parent=0 // pred_fallthru
    _
  // Predicated region
  $region6: #{entity_detection_forward.9} parent=0 // pred_check
    _
  $region7: #{entity_detection_forward.9} parent=0 // pred_check_branch
    %15 = sbr.rel (0) target = $region9
  $region8: #{entity_detection_forward.9} parent=0 // pred_region
    _
  $region9: #{entity_detection_forward.9} parent=0 // pred_fallthru
    _
  // Predicated region
  $region10: #{entity_detection_forward.9} parent=0 // pred_check
    _
  $region11: #{entity_detection_forward.9} parent=0 // pred_check_branch
    %17 = sbr.rel (0) target = $region13
  $region12: #{entity_detection_forward.9} parent=0 // pred_region
    _
  $region13: #{entity_detection_forward.9} parent=0 // pred_fallthru
    _
  // Predicated region
  $region14: #{entity_detection_forward.9} parent=0 // pred_check
    _
  $region15: #{entity_detection_forward.9} parent=0 // pred_check_branch
    %19 = sbr.rel (0) target = $region17
  $region16: #{entity_detection_forward.9} parent=0 // pred_region
    _
  $region17: #{entity_detection_forward.9} parent=0 // pred_fallthru
    _
  // Predicated region
  $region18: #{entity_detection_forward.9} parent=0 // pred_check
    _
  $region19: #{entity_detection_forward.9} parent=0 // pred_check_branch
    %21 = sbr.rel (0) target = $region21
  $region20: #{entity_detection_forward.9} parent=0 // pred_region
    _
  $region21: #{entity_detection_forward.9} parent=0 // pred_fallthru
    _
  // Predicated region
  $region22: #{entity_detection_forward.9} parent=0 // pred_check
    _
  $region23: #{entity_detection_forward.9} parent=0 // pred_check_branch
    %23 = sbr.rel (0) target = $region25
  $region24: #{entity_detection_forward.9} parent=0 // pred_region
    _
  $region25: #{entity_detection_forward.9} parent=0 // pred_fallthru
    _
  // Predicated region
  $region26: #{entity_detection_forward.9} parent=0 // pred_check
    _
  $region27: #{entity_detection_forward.9} parent=0 // pred_check_branch
    %25 = sbr.rel (0) target = $region29
  $region28: #{entity_detection_forward.9} parent=0 // pred_region
    _
  $region29: #{entity_detection_forward.9} parent=0 // pred_fallthru
    _
  %v27 = vld [vmem:[%s0] sm:$0xf]
  %v28 = vld [vmem:[%s0 + $0x4] sm:$0xf]
  %v29 = vld [vmem:[%s2] sm:$0xf]
  %v30 = vld [vmem:[%s2 + $0x4] sm:$0xf]
  %v31 = vld [vmem:[%s2 + $0x8] sm:$0xf]
  %v32 = vld [vmem:[%s2 + $0xc] sm:$0xf]
  %v33 = vld [vmem:[%s1] sm:$0xf]
  %v34 = vld [vmem:[%s1 + $0x4] sm:$0xf]
  %v35 = vld [vmem:[%s3] sm:$0xf]
  %v36 = vld [vmem:[%s3 + $0x4] sm:$0xf]
  %v37 = vld [vmem:[%s3 + $0x8] sm:$0xf]
  %v38 = vld [vmem:[%s3 + $0xc] sm:$0xf]
  %v41 = vunpack.c.l.b16 %v33
  %v42 = vunpack.c.l.b16 %v34
  %v43 = vpack.c.b16 %v42, %v41
  %v48 = vunpack.c.l.b16 %v35
  %v49 = vunpack.c.l.b16 %v36
  %v50 = vunpack.c.l.b16 %v37
  %v51 = vunpack.c.l.b16 %v38
  %v52 = vpack.c.b16 %v49, %v48
  %v53 = vpack.c.b16 %v51, %v50
  %vm56 = vcmask 261120
  %v58 = vsel %vm56, %v43, 0
  %60 = vmatprep.subr.bf16.mxu0 0
  %61 = vmatpush1.bf16.msra.mxu0 0
  %62 = vmatprep.subr.bf16.mxu0 0
  %63 = vmatpush1.bf16.msra.mxu0 0
  %64 = vmatprep.subr.bf16.mxu0 0
  %65 = vmatpush1.bf16.msra.mxu0 0
  %66 = vmatprep.subr.bf16.mxu0 0
  %67 = vmatpush1.bf16.msra.mxu0 0
  %68 = vmatprep.subr.bf16.mxu0 0
  %69 = vmatpush1.bf16.msra.mxu0 0
  %70 = vmatprep.subr.bf16.mxu0 0
  %71 = vmatpush1.bf16.msra.mxu0 0
  %72 = vmatprep.subr.bf16.mxu0 0
  %73 = vmatpush1.bf16.msra.mxu0 %v53
  %74 = vmatprep.subr.bf16.mxu0 0
  %75 = vmatpush1.bf16.msra.mxu0 %v52
  %76 = vmatprep.subr.bf16.mxu0 0
  %77 = vmatpush2.bf16.msra.mxu0 0
  %78 = vmatprep.subr.bf16.mxu0 0
  %79 = vmatpush2.bf16.msra.mxu0 0
  %80 = vmatprep.subr.bf16.mxu0 0
  %81 = vmatpush2.bf16.msra.mxu0 0
  %82 = vmatprep.subr.bf16.mxu0 0
  %83 = vmatpush2.bf16.msra.mxu0 0
  %84 = vmatprep.subr.bf16.mxu0 0
  %85 = vmatpush2.bf16.msra.mxu0 0
  %86 = vmatprep.subr.bf16.mxu0 0
  %87 = vmatpush2.bf16.msra.mxu0 0
  %88 = vmatprep.subr.bf16.mxu0 0
  %89 = vmatpush2.bf16.msra.mxu0 0
  %90 = vmatprep.subr.bf16.mxu0 0
  %91 = vmatpush2.bf16.msra.mxu0 0
  %92 = vmatprep.mubr.bf16.mxu0 0
  %93 = vmatmul.mubr.bf16.gmra.mxu0 %v58
  %v94 = vpop.f32.mrf.mxu0
  %v95 = vadd.f32 0.0, %v94
  %v96 = vpop.f32.mrf.mxu0
  %v97 = vpop.f32.mrf.mxu0
  %v98 = vadd.f32 0.0, %v97
  %v99 = vpop.f32.mrf.mxu0
  %100 = vdwg.mxu0
  %v103 = vunpack.c.l.b16 %v27
  %v104 = vunpack.c.l.b16 %v28
  %v105 = vpack.c.b16 %v104, %v103
  %v110 = vunpack.c.l.b16 %v29
  %v111 = vunpack.c.l.b16 %v30
  %v112 = vunpack.c.l.b16 %v31
  %v113 = vunpack.c.l.b16 %v32
  %v114 = vpack.c.b16 %v111, %v110
  %v115 = vpack.c.b16 %v113, %v112
  %v119 = vsel %vm56, %v105, 0
  %121 = vmatprep.subr.bf16.mxu0 0
  %122 = vmatpush1.bf16.msra.mxu0 0
  %123 = vmatprep.subr.bf16.mxu0 0
  %124 = vmatpush1.bf16.msra.mxu0 0
  %125 = vmatprep.subr.bf16.mxu0 0
  %126 = vmatpush1.bf16.msra.mxu0 0
  %127 = vmatprep.subr.bf16.mxu0 0
  %128 = vmatpush1.bf16.msra.mxu0 0
  %129 = vmatprep.subr.bf16.mxu0 0
  %130 = vmatpush1.bf16.msra.mxu0 0
  %131 = vmatprep.subr.bf16.mxu0 0
  %132 = vmatpush1.bf16.msra.mxu0 0
  %133 = vmatprep.subr.bf16.mxu0 0
  %134 = vmatpush1.bf16.msra.mxu0 %v115
  %135 = vmatprep.subr.bf16.mxu0 0
  %136 = vmatpush1.bf16.msra.mxu0 %v114
  %137 = vmatprep.subr.bf16.mxu0 0
  %138 = vmatpush2.bf16.msra.mxu0 0
  %139 = vmatprep.subr.bf16.mxu0 0
  %140 = vmatpush2.bf16.msra.mxu0 0
  %141 = vmatprep.subr.bf16.mxu0 0
  %142 = vmatpush2.bf16.msra.mxu0 0
  %143 = vmatprep.subr.bf16.mxu0 0
  %144 = vmatpush2.bf16.msra.mxu0 0
  %145 = vmatprep.subr.bf16.mxu0 0
  %146 = vmatpush2.bf16.msra.mxu0 0
  %147 = vmatprep.subr.bf16.mxu0 0
  %148 = vmatpush2.bf16.msra.mxu0 0
  %149 = vmatprep.subr.bf16.mxu0 0
  %150 = vmatpush2.bf16.msra.mxu0 0
  %151 = vmatprep.subr.bf16.mxu0 0
  %152 = vmatpush2.bf16.msra.mxu0 0
  %153 = vmatprep.mubr.bf16.mxu0 0
  %154 = vmatmul.mubr.bf16.gmra.mxu0 %v119
  %v155 = vpop.f32.mrf.mxu0
  %v156 = vadd.f32 %v95, %v155
  %v157 = vpop.f32.mrf.mxu0
  %v158 = vpop.f32.mrf.mxu0
  %v159 = vadd.f32 %v98, %v158
  %v160 = vpop.f32.mrf.mxu0
  %161 = vdwg.mxu0
  %v162 = vld [vmem:[%s4] sm:$0x1]
  %v164 = vlaneseq
  %v165 = vshrl.u32 %v164, 7
  %v166 = vsub.s32 0, %v165
  %v167 = vrot.slane %v162, %v166
  %v169 = vadd.f32 %v156, %v167
  %v170 = vadd.f32 %v159, %v167
  %v171 = vmax.f32 %v169, 0.0
  %v172 = vmax.f32 %v170, 0.0
  %v173 = vpack.c.bf16 %v172, %v171
  %v174 = vld [vmem:[%s5] sm:$0xf]
  %v175 = vld [vmem:[%s5 + $0x4] sm:$0xf]
  %v176 = vld [vmem:[%s5 + $0x8] sm:$0xf]
  %v177 = vld [vmem:[%s5 + $0xc] sm:$0xf]
  %v178 = vld [vmem:[%s5 + $0x10] sm:$0xf]
  %v179 = vld [vmem:[%s5 + $0x14] sm:$0xf]
  %v180 = vld [vmem:[%s5 + $0x18] sm:$0xf]
  %v181 = vld [vmem:[%s5 + $0x1c] sm:$0xf]
  %v182 = vld [vmem:[%s6] sm:$0x1]
  %v184 = vlaneseq
  %v185 = vshrl.u32 %v184, 7
  %v186 = vsub.s32 0, %v185
  %v187 = vrot.slane %v182, %v186
  %v197 = vunpack.c.l.b16 %v174
  %v198 = vunpack.c.l.b16 %v175
  %v199 = vunpack.c.l.b16 %v176
  %v200 = vunpack.c.l.b16 %v177
  %v201 = vunpack.c.l.b16 %v178
  %v202 = vunpack.c.l.b16 %v179
  %v203 = vunpack.c.l.b16 %v180
  %v204 = vunpack.c.l.b16 %v181
  %v205 = vpack.c.b16 %v198, %v197
  %v206 = vpack.c.b16 %v200, %v199
  %v207 = vpack.c.b16 %v202, %v201
  %v208 = vpack.c.b16 %v204, %v203
  %vm213 = vcmask 523264
  %v215 = vsel %vm213, %v173, 0
  %217 = vmatprep.subr.bf16.mxu0 0
  %218 = vmatpush1.bf16.msra.mxu0 0
  %219 = vmatprep.subr.bf16.mxu0 0
  %220 = vmatpush1.bf16.msra.mxu0 0
  %221 = vmatprep.subr.bf16.mxu0 0
  %222 = vmatpush1.bf16.msra.mxu0 0
  %223 = vmatprep.subr.bf16.mxu0 0
  %224 = vmatpush1.bf16.msra.mxu0 0
  %225 = vmatprep.subr.bf16.mxu0 0
  %226 = vmatpush1.bf16.msra.mxu0 %v208
  %227 = vmatprep.subr.bf16.mxu0 0
  %228 = vmatpush1.bf16.msra.mxu0 %v207
  %229 = vmatprep.subr.bf16.mxu0 0
  %230 = vmatpush1.bf16.msra.mxu0 %v206
  %231 = vmatprep.subr.bf16.mxu0 0
  %232 = vmatpush1.bf16.msra.mxu0 %v205
  %233 = vmatprep.subr.bf16.mxu0 0
  %234 = vmatpush2.bf16.msra.mxu0 0
  %235 = vmatprep.subr.bf16.mxu0 0
  %236 = vmatpush2.bf16.msra.mxu0 0
  %237 = vmatprep.subr.bf16.mxu0 0
  %238 = vmatpush2.bf16.msra.mxu0 0
  %239 = vmatprep.subr.bf16.mxu0 0
  %240 = vmatpush2.bf16.msra.mxu0 0
  %241 = vmatprep.subr.bf16.mxu0 0
  %242 = vmatpush2.bf16.msra.mxu0 0
  %243 = vmatprep.subr.bf16.mxu0 0
  %244 = vmatpush2.bf16.msra.mxu0 0
  %245 = vmatprep.subr.bf16.mxu0 0
  %246 = vmatpush2.bf16.msra.mxu0 0
  %247 = vmatprep.subr.bf16.mxu0 0
  %248 = vmatpush2.bf16.msra.mxu0 0
  %249 = vmatprep.mubr.bf16.mxu0 0
  %250 = vmatmul.mubr.bf16.gmra.mxu0 %v215
  %v251 = vpop.f32.mrf.mxu0
  %v252 = vadd.f32 %v187, %v251
  %v253 = vpop.f32.mrf.mxu0
  %v254 = vpop.f32.mrf.mxu0
  %v255 = vadd.f32 %v187, %v254
  %v256 = vpop.f32.mrf.mxu0
  %257 = vdwg.mxu0
  %258 = vmax.xlane.f32.xlu0 %v252
  %v259 = vpop.xlane.xlu0 %258
  %260 = vmax.xlane.f32.xlu0 %v255
  %v261 = vpop.xlane.xlu0 %260
  %v262 = vsub.f32 %v252, %v259
  %v263 = vsub.f32 %v255, %v261
  %v264 = vmul.f32 %v262, 1.442695
  %v265 = vpow.pop %v264
  %v266 = vmul.f32 %v263, 1.442695
  %v267 = vpow.pop %v266
  %268 = vadd.xlane.f32.xlu0 %v265
  %v269 = vpop.xlane.xlu0 %268
  %270 = vadd.xlane.f32.xlu0 %v267
  %v271 = vpop.xlane.xlu0 %270
  %v272 = vlog2.pop %v269
  %v273 = vmul.f32 %v272, 0.6931472
  %v274 = vlog2.pop %v271
  %v275 = vmul.f32 %v274, 0.6931472
  %v276 = vsub.f32 %v262, %v273
  %v277 = vsub.f32 %v263, %v275
  %278 = vst [vmem:[%s7] sm:$0xff] %v276
  %279 = vst [vmem:[%s7 + $0x8] sm:$0xff] %v277
  // Predicated region
  $region30: #{entity_detection_forward.9} parent=0 // pred_check
    _
  $region31: #{entity_detection_forward.9} parent=0 // pred_check_branch
    %281 = sbr.rel (0) target = $region33
  $region32: #{entity_detection_forward.9} parent=0 // pred_region
    _
  $region33: #{entity_detection_forward.9} parent=0 // pred_fallthru
    _
  // Predicated region
  $region34: #{entity_detection_forward.9} parent=0 // pred_check
    _
  $region35: #{entity_detection_forward.9} parent=0 // pred_check_branch
    %283 = sbr.rel (0) target = $region37
  $region36: #{entity_detection_forward.9} parent=0 // pred_region
    _
  $region37: #{entity_detection_forward.9} parent=0 // pred_fallthru
    _

// kernel: entity_detection_forward.5
$region0: #{entity_detection_forward.5}
  #allocation0 [shape = 'u32[]', space=smem, size = 0x4, offset = 0x4, fixed_abs, tag = 'smem constant byte address 0x4 - core index']
  #allocation1 [shape = 'u32[144,128]{1,0:T(1,128)}', space=vmem, size = 0x12000, scoped, tag = 'internal scratch']
  %s0 = inlined_call_operand.vmem [shape: bf16[16,32], index: 0, kind: input, shape index: {}]
  %s1 = inlined_call_operand.vmem [shape: bf16[32,256], index: 1, kind: input, shape index: {}]
  %s2 = inlined_call_operand.vmem [shape: f32[1,256], index: 2, kind: input, shape index: {}]
  %s3 = inlined_call_operand.vmem [shape: bf16[16,128], index: 3, kind: output, shape index: {0}]
  %s4 = inlined_call_operand.vmem [shape: bf16[16,128], index: 4, kind: output, shape index: {1}]
  %5 = xla_tuple %s3, %s4
  %s6 = sld [smem:[#allocation0]]
  $region30: #{entity_detection_forward.5} parent=0
    _
  %s8 = ssub.s32 1, %s6
  %s9 = scalar_select 0, %s8, %s6
  // Predicated region
  $region2: #{entity_detection_forward.5} parent=0 // pred_check
    _
  $region3: #{entity_detection_forward.5} parent=0 // pred_check_branch
    %11 = sbr.rel (0) target = $region5
  $region4: #{entity_detection_forward.5} parent=0 // pred_region
    _
  $region5: #{entity_detection_forward.5} parent=0 // pred_fallthru
    _
  // Predicated region
  $region6: #{entity_detection_forward.5} parent=0 // pred_check
    _
  $region7: #{entity_detection_forward.5} parent=0 // pred_check_branch
    %13 = sbr.rel (0) target = $region9
  $region8: #{entity_detection_forward.5} parent=0 // pred_region
    _
  $region9: #{entity_detection_forward.5} parent=0 // pred_fallthru
    _
  // Predicated region
  $region10: #{entity_detection_forward.5} parent=0 // pred_check
    _
  $region11: #{entity_detection_forward.5} parent=0 // pred_check_branch
    %15 = sbr.rel (0) target = $region13
  $region12: #{entity_detection_forward.5} parent=0 // pred_region
    _
  $region13: #{entity_detection_forward.5} parent=0 // pred_fallthru
    _
  %v17 = vld [vmem:[%s0] sm:$0xf]
  %v18 = vld [vmem:[%s0 + $0x4] sm:$0xf]
  %v19 = vld [vmem:[%s1] sm:$0xff]
  %v20 = vld [vmem:[%s1 + $0x8] sm:$0xff]
  %v21 = vld [vmem:[%s1 + $0x10] sm:$0xff]
  %v22 = vld [vmem:[%s1 + $0x18] sm:$0xff]
  %v23 = vld [vmem:[%s2] sm:$0x3]
  %v25 = vlaneseq
  %v26 = vshrl.u32 %v25, 7
  %v27 = vsub.s32 0, %v26
  %v28 = vrot.slane %v23, %v27
  %v29 = vlaneseq
  %v30 = vshrl.u32 %v29, 7
  %v31 = vsub.s32 1, %v30
  %v32 = vrot.slane %v23, %v31
  %v37 = vunpack.c.l.b16 %v17
  %v38 = vunpack.c.l.b16 %v18
  %v39 = vpack.c.b16 %v38, %v37
  %v44 = vunpack.c.l.b16 %v19
  %v45 = vunpack.c.h.b16 %v19
  %v46 = vunpack.c.l.b16 %v20
  %v47 = vunpack.c.h.b16 %v20
  %v48 = vunpack.c.l.b16 %v21
  %v49 = vunpack.c.h.b16 %v21
  %v50 = vunpack.c.l.b16 %v22
  %v51 = vunpack.c.h.b16 %v22
  %v52 = vpack.c.b16 %v46, %v44
  %v53 = vpack.c.b16 %v47, %v45
  %v54 = vpack.c.b16 %v50, %v48
  %v55 = vpack.c.b16 %v51, %v49
  %vm60 = vcmask 261120
  %v62 = vsel %vm60, %v39, 0
  %64 = vmatprep.subr.bf16.mxu0 0
  %65 = vmatpush1.bf16.msra.mxu0 0
  %66 = vmatprep.subr.bf16.mxu0 0
  %67 = vmatpush1.bf16.msra.mxu0 0
  %68 = vmatprep.subr.bf16.mxu0 0
  %69 = vmatpush1.bf16.msra.mxu0 0
  %70 = vmatprep.subr.bf16.mxu0 0
  %71 = vmatpush1.bf16.msra.mxu0 0
  %72 = vmatprep.subr.bf16.mxu0 0
  %73 = vmatpush1.bf16.msra.mxu0 0
  %74 = vmatprep.subr.bf16.mxu0 0
  %75 = vmatpush1.bf16.msra.mxu0 0
  %76 = vmatprep.subr.bf16.mxu0 %v55
  %77 = vmatpush1.bf16.msra.mxu0 %v54
  %78 = vmatprep.subr.bf16.mxu0 %v53
  %79 = vmatpush1.bf16.msra.mxu0 %v52
  %80 = vmatprep.subr.bf16.mxu0 0
  %81 = vmatpush2.bf16.msra.mxu0 0
  %82 = vmatprep.subr.bf16.mxu0 0
  %83 = vmatpush2.bf16.msra.mxu0 0
  %84 = vmatprep.subr.bf16.mxu0 0
  %85 = vmatpush2.bf16.msra.mxu0 0
  %86 = vmatprep.subr.bf16.mxu0 0
  %87 = vmatpush2.bf16.msra.mxu0 0
  %88 = vmatprep.subr.bf16.mxu0 0
  %89 = vmatpush2.bf16.msra.mxu0 0
  %90 = vmatprep.subr.bf16.mxu0 0
  %91 = vmatpush2.bf16.msra.mxu0 0
  %92 = vmatprep.subr.bf16.mxu0 0
  %93 = vmatpush2.bf16.msra.mxu0 0
  %94 = vmatprep.subr.bf16.mxu0 0
  %95 = vmatpush2.bf16.msra.mxu0 0
  %96 = vmatprep.mubr.bf16.mxu0 0
  %97 = vmatmul.mubr.bf16.gmra.mxu0 %v62
  %v98 = vpop.f32.mrf.mxu0
  %v99 = vadd.f32 %v28, %v98
  %v100 = vpop.f32.mrf.mxu0
  %v101 = vadd.f32 %v32, %v100
  %v102 = vpop.f32.mrf.mxu0
  %v103 = vadd.f32 %v28, %v102
  %v104 = vpop.f32.mrf.mxu0
  %v105 = vadd.f32 %v32, %v104
  %106 = vdwg.mxu0
  %v107 = vpack.c.bf16 %v103, %v99
  %v109 = vunpack.c.l.b16 %v107
  %v110 = vunpack.c.h.b16 %v107
  %v111 = vpack.c.b16 %v109, %v109
  %v112 = vpack.c.b16 %v110, %v110
  %115 = vst [vmem:[%s3] sm:$0xf] %v111
  %116 = vst [vmem:[%s3 + $0x4] sm:$0xf] %v112
  %v117 = vpack.c.bf16 %v105, %v101
  %v119 = vunpack.c.l.b16 %v117
  %v120 = vunpack.c.h.b16 %v117
  %v121 = vpack.c.b16 %v119, %v119
  %v122 = vpack.c.b16 %v120, %v120
  %125 = vst [vmem:[%s4] sm:$0xf] %v121
  %126 = vst [vmem:[%s4 + $0x4] sm:$0xf] %v122
  // Predicated region
  $region14: #{entity_detection_forward.5} parent=0 // pred_check
    _
  $region15: #{entity_detection_forward.5} parent=0 // pred_check_branch
    %128 = sbr.rel (0) target = $region17
  $region16: #{entity_detection_forward.5} parent=0 // pred_region
    _
  $region17: #{entity_detection_forward.5} parent=0 // pred_fallthru
    _
  // Predicated region
  $region18: #{entity_detection_forward.5} parent=0 // pred_check
    _
  $region19: #{entity_detection_forward.5} parent=0 // pred_check_branch
    %130 = sbr.rel (0) target = $region21
  $region20: #{entity_detection_forward.5} parent=0 // pred_region
    _
  $region21: #{entity_detection_forward.5} parent=0 // pred_fallthru
    _
  // Predicated region
  $region22: #{entity_detection_forward.5} parent=0 // pred_check
    _
  $region23: #{entity_detection_forward.5} parent=0 // pred_check_branch
    %132 = sbr.rel (0) target = $region25
  $region24: #{entity_detection_forward.5} parent=0 // pred_region
    _
  $region25: #{entity_detection_forward.5} parent=0 // pred_fallthru
    _
  // Predicated region
  $region26: #{entity_detection_forward.5} parent=0 // pred_check
    _
  $region27: #{entity_detection_forward.5} parent=0 // pred_check_branch
    %134 = sbr.rel (0) target = $region29
  $region28: #{entity_detection_forward.5} parent=0 // pred_region
    _
  $region29: #{entity_detection_forward.5} parent=0 // pred_fallthru
    _

// kernel: entity_detection_forward.6
$region0: #{entity_detection_forward.6}
  #allocation0 [shape = 'u32[]', space=smem, size = 0x4, offset = 0x4, fixed_abs, tag = 'smem constant byte address 0x4 - core index']
  #allocation1 [shape = 'u32[144,128]{1,0:T(1,128)}', space=vmem, size = 0x12000, scoped, tag = 'internal scratch']
  #allocation2 [shape = 'bf16[2,64]{1,0:T(2,128)(2,1)}', space=vmem, size = 0x200, scoped, tag = 'scratch operand']
  #allocation3 [shape = 'f32[2,32]{1,0:T(2,128)}', space=vmem, size = 0x400, scoped, tag = 'scratch operand']
  #allocation4 [shape = 'f32[2,32]{1,0:T(2,128)}', space=vmem, size = 0x400, scoped, tag = 'scratch operand']
  %s0 = inlined_call_operand.vmem [shape: bf16[8,2,128], index: 0, kind: input, shape index: {}]
  %s1 = inlined_call_operand.vmem [shape: bf16[8,2,128], index: 1, kind: input, shape index: {}]
  %s2 = inlined_call_operand.vmem [shape: bf16[64,256], index: 2, kind: input, shape index: {}]
  %s3 = inlined_call_operand.vmem [shape: bf16[8,2,32], index: 3, kind: output, shape index: {0}]
  %s4 = inlined_call_operand.vmem [shape: bf16[8,2,32], index: 4, kind: output, shape index: {1}]
  %5 = xla_tuple %s3, %s4
  %s6 = sld [smem:[#allocation0]]
  $region34: #{entity_detection_forward.6} parent=0
    _
  %s8 = ssub.s32 1, %s6
  %s9 = scalar_select 0, %s8, %s6
  // Predicated region
  $region2: #{entity_detection_forward.6} parent=0 // pred_check
    _
  $region3: #{entity_detection_forward.6} parent=0 // pred_check_branch
    %11 = sbr.rel (0) target = $region5
  $region4: #{entity_detection_forward.6} parent=0 // pred_region
    _
  $region5: #{entity_detection_forward.6} parent=0 // pred_fallthru
    _
  // Predicated region
  $region6: #{entity_detection_forward.6} parent=0 // pred_check
    _
  $region7: #{entity_detection_forward.6} parent=0 // pred_check_branch
    %13 = sbr.rel (0) target = $region9
  $region8: #{entity_detection_forward.6} parent=0 // pred_region
    %s14 = ssub.s32 0, 0
    %s15 = smul.u32 8, %s14
    %p16 = scmp.lt.s32.totalorder %s15, 7
    %s17 = scalar_select %p16, %s15, 7
    %s18 = scalar_lea.vmem %s1, %s17
    %s19 = ssub.s32 0, 0
    %s20 = smul.u32 8, %s19
  $region9: #{entity_detection_forward.6} parent=0 // pred_fallthru
    _
  // Predicated region
  $region10: #{entity_detection_forward.6} parent=0 // pred_check
    _
  $region11: #{entity_detection_forward.6} parent=0 // pred_check_branch
    %22 = sbr.rel (0) target = $region13
  $region12: #{entity_detection_forward.6} parent=0 // pred_region
    _
  $region13: #{entity_detection_forward.6} parent=0 // pred_fallthru
    _
  %s23 = ssub.s32 0, 0
  %s24 = smul.u32 8, %s23
  %p25 = scmp.lt.s32.totalorder %s24, 7
  %s26 = scalar_select %p25, %s24, 7
  %s27 = scalar_lea.vmem %s1, %s26
  %s28 = ssub.s32 0, 0
  %s29 = smul.u32 8, %s28
  %p30 = scmp.lt.s32.totalorder %s29, 7
  %s31 = scalar_select %p30, %s29, 7
  %s32 = scalar_lea.vmem %s4, %s31
  %s33 = ssub.s32 0, 0
  %s34 = smul.u32 8, %s33
  %p35 = scmp.lt.s32.totalorder %s34, 7
  %s36 = scalar_select %p35, %s34, 7
  %s37 = scalar_lea.vmem %s1, %s36
  %s38 = ssub.s32 0, 0
  %s39 = smul.u32 8, %s38
  %s40 = ssub.s32 0, 0
  %s41 = smul.u32 8, %s40
  %p42 = scmp.lt.s32.totalorder %s41, 7
  %s43 = scalar_select %p42, %s41, 7
  %s44 = scalar_lea.vmem %s4, %s43
  %s45 = ssub.s32 0, 0
  %s46 = smul.u32 8, %s45
  %p48 = scmp.eq.s32.totalorder 0, 0
  // Predicated region
  $region14: #{entity_detection_forward.6} parent=0 // pred_check
    %p49 = pneg %p48
  $region15: #{entity_detection_forward.6} parent=0 // pred_check_branch
    %51 = sbr.rel (%p49) target = $region17
  $region16: #{entity_detection_forward.6} parent=0 // pred_region
    %vm52 = vcmask 516096
    %53 = vst.msk [vmem:[#allocation2] sm:$0x1] %vm52, 0
    %vm54 = vcmask 254976
    %55 = vst.msk [vmem:[#allocation3] sm:$0x3] %vm54, 0.0
    %56 = vst.msk [vmem:[#allocation4] sm:$0x3] %vm54, 0.0
  $region17: #{entity_detection_forward.6} parent=0 // pred_fallthru
    _
  %v57 = vld [vmem:[%s2] sm:$0xff]
  %v58 = vld [vmem:[%s2 + $0x8] sm:$0xff]
  %v59 = vld [vmem:[%s2 + $0x10] sm:$0xff]
  %v60 = vld [vmem:[%s2 + $0x18] sm:$0xff]
  %v61 = vld [vmem:[%s2 + $0x20] sm:$0xff]
  %v62 = vld [vmem:[%s2 + $0x28] sm:$0xff]
  %v63 = vld [vmem:[%s2 + $0x30] sm:$0xff]
  %v64 = vld [vmem:[%s2 + $0x38] sm:$0xff]
  %v65 = vld [vmem:[#allocation2] sm:$0x1]
  %v66 = vld [vmem:[#allocation3] sm:$0x3]
  %v67 = vld [vmem:[#allocation4] sm:$0x3]
  %v76 = vunpack.c.l.b16 %v57
  %v77 = vunpack.c.h.b16 %v57
  %v78 = vunpack.c.l.b16 %v58
  %v79 = vunpack.c.h.b16 %v58
  %v80 = vunpack.c.l.b16 %v59
  %v81 = vunpack.c.h.b16 %v59
  %v82 = vunpack.c.l.b16 %v60
  %v83 = vunpack.c.h.b16 %v60
  %v84 = vunpack.c.l.b16 %v61
  %v85 = vunpack.c.h.b16 %v61
  %v86 = vunpack.c.l.b16 %v62
  %v87 = vunpack.c.h.b16 %v62
  %v88 = vunpack.c.l.b16 %v63
  %v89 = vunpack.c.h.b16 %v63
  %v90 = vunpack.c.l.b16 %v64
  %v91 = vunpack.c.h.b16 %v64
  %v92 = vpack.c.b16 %v78, %v76
  %v93 = vpack.c.b16 %v79, %v77
  %v94 = vpack.c.b16 %v82, %v80
  %v95 = vpack.c.b16 %v83, %v81
  %v96 = vpack.c.b16 %v86, %v84
  %v97 = vpack.c.b16 %v87, %v85
  %v98 = vpack.c.b16 %v90, %v88
  %v99 = vpack.c.b16 %v91, %v89
  %vm108 = vcmask 523264
  %v110 = vsel %vm108, %v65, 0
  %112 = vmatprep.subr.bf16.mxu0 0
  %113 = vmatpush1.bf16.msra.mxu0 0
  %114 = vmatprep.subr.bf16.mxu0 0
  %115 = vmatpush1.bf16.msra.mxu0 0
  %116 = vmatprep.subr.bf16.mxu0 0
  %117 = vmatpush1.bf16.msra.mxu0 0
  %118 = vmatprep.subr.bf16.mxu0 0
  %119 = vmatpush1.bf16.msra.mxu0 0
  %120 = vmatprep.subr.bf16.mxu0 %v99
  %121 = vmatpush1.bf16.msra.mxu0 %v98
  %122 = vmatprep.subr.bf16.mxu0 %v97
  %123 = vmatpush1.bf16.msra.mxu0 %v96
  %124 = vmatprep.subr.bf16.mxu0 %v95
  %125 = vmatpush1.bf16.msra.mxu0 %v94
  %126 = vmatprep.subr.bf16.mxu0 %v93
  %127 = vmatpush1.bf16.msra.mxu0 %v92
  %128 = vmatprep.subr.bf16.mxu0 0
  %129 = vmatpush2.bf16.msra.mxu0 0
  %130 = vmatprep.subr.bf16.mxu0 0
  %131 = vmatpush2.bf16.msra.mxu0 0
  %132 = vmatprep.subr.bf16.mxu0 0
  %133 = vmatpush2.bf16.msra.mxu0 0
  %134 = vmatprep.subr.bf16.mxu0 0
  %135 = vmatpush2.bf16.msra.mxu0 0
  %136 = vmatprep.subr.bf16.mxu0 0
  %137 = vmatpush2.bf16.msra.mxu0 0
  %138 = vmatprep.subr.bf16.mxu0 0
  %139 = vmatpush2.bf16.msra.mxu0 0
  %140 = vmatprep.subr.bf16.mxu0 0
  %141 = vmatpush2.bf16.msra.mxu0 0
  %142 = vmatprep.subr.bf16.mxu0 0
  %143 = vmatpush2.bf16.msra.mxu0 0
  %144 = vmatprep.mubr.bf16.mxu0 0
  %145 = vmatmul.mubr.bf16.gmra.mxu0 %v110
  %v146 = vpop.f32.mrf.mxu0
  %v147 = vadd.f32 0.0, %v146
  %v148 = vpop.f32.mrf.mxu0
  %v149 = vadd.f32 0.0, %v148
  %v150 = vpop.f32.mrf.mxu0
  %v151 = vpop.f32.mrf.mxu0
  %152 = vdwg.mxu0
  %v153 = vld [vmem:[%s0] sm:$0x1]
  %v154 = vunpack.c.l.bf16 %v153
  %v155 = vadd.f32 %v154, %v147
  %s156 = scalar_lea.vmem %s37, 7
  %v157 = vld [vmem:[%s156] sm:$0x1]
  %v158 = vunpack.c.l.bf16 %v157
  %v159 = vadd.f32 %v158, %v149
  %v160 = vxor.u32 %v155, 2147483648
  %v161 = vmul.f32 %v160, 1.442695
  %v162 = vpow.pop %v161
  %v163 = vadd.f32 %v162, 1.0
  %v164 = vrcp.pop %v163
  %v165 = vmul.f32 1.0, %v164
  %v166 = vtanh.pop %v155
  %v169 = vunpack.c.l.s4 1983009808
  %v170 = vunpack.c.0.s8 %v169
  %v171 = vlaneseq
  %v172 = vshrl.u32 %v171, 7
  %v173 = vsub.s32 %v170, %v172
  %v174 = vrot.slane %v66, %v173
  %175 = vrot.lane.b32.xlu0 %v174, 32
  %v176 = vpop.permute.xlu0 %175
  %v178 = vmul.f32 %v165, %v176
  %180 = vrot.lane.b32.xlu0 %v166, 32
  %v181 = vpop.permute.xlu0 %180
  %v183 = vmul.f32 %v165, %v181
  %185 = vrot.lane.b32.xlu0 %v183, 32
  %v186 = vpop.permute.xlu0 %185
  %v188 = vadd.f32 %v178, %v186
  %v189 = vtanh.pop %v188
  %191 = vrot.lane.b32.xlu0 %v189, 32
  %v192 = vpop.permute.xlu0 %191
  %v194 = vmul.f32 %v165, %v192
  %v195 = vxor.u32 %v159, 2147483648
  %v196 = vmul.f32 %v195, 1.442695
  %v197 = vpow.pop %v196
  %v198 = vadd.f32 %v197, 1.0
  %v199 = vrcp.pop %v198
  %v200 = vmul.f32 1.0, %v199
  %v201 = vtanh.pop %v159
  %v204 = vunpack.c.l.s4 1983009808
  %v205 = vunpack.c.0.s8 %v204
  %v206 = vlaneseq
  %v207 = vshrl.u32 %v206, 7
  %v208 = vsub.s32 %v205, %v207
  %v209 = vrot.slane %v67, %v208
  %210 = vrot.lane.b32.xlu0 %v209, 32
  %v211 = vpop.permute.xlu0 %210
  %v213 = vmul.f32 %v200, %v211
  %215 = vrot.lane.b32.xlu0 %v201, 32
  %v216 = vpop.permute.xlu0 %215
  %v218 = vmul.f32 %v200, %v216
  %220 = vrot.lane.b32.xlu0 %v218, 32
  %v221 = vpop.permute.xlu0 %220
  %v223 = vadd.f32 %v213, %v221
  %v224 = vtanh.pop %v223
  %226 = vrot.lane.b32.xlu0 %v224, 32
  %v227 = vpop.permute.xlu0 %226
  %v229 = vmul.f32 %v200, %v227
  %v230 = vpack.c.bf16 %v194, %v194
  %v233 = vunpack.c.l.s4 1966171168
  %v234 = vunpack.c.0.s8 %v233
  %v235 = vlaneseq
  %v236 = vshrl.u32 %v235, 7
  %v237 = vsub.s32 %v234, %v236
  %v238 = vrot.slane %v230, %v237
  %v240 = vunpack.c.l.s4 1966171168
  %v241 = vunpack.c.0.s8 %v240
  %v242 = vlaneseq
  %v243 = vshrl.u32 %v242, 7
  %v244 = vsub.s32 %v241, %v243
  %v245 = vrot.slane %v238, %v244
  %246 = vrot.lane.b32.xlu0 %v245, 64
  %v247 = vpop.permute.xlu0 %246
  %vm249 = vcmask 253952
  %250 = vst.msk [vmem:[%s3] sm:$0x1] %vm249, %v247
  %v251 = vpack.c.bf16 %v229, %v229
  %v254 = vunpack.c.l.s4 1966171168
  %v255 = vunpack.c.0.s8 %v254
  %v256 = vlaneseq
  %v257 = vshrl.u32 %v256, 7
  %v258 = vsub.s32 %v255, %v257
  %v259 = vrot.slane %v251, %v258
  %v261 = vunpack.c.l.s4 1966171168
  %v262 = vunpack.c.0.s8 %v261
  %v263 = vlaneseq
  %v264 = vshrl.u32 %v263, 7
  %v265 = vsub.s32 %v262, %v264
  %v266 = vrot.slane %v259, %v265
  %267 = vrot.lane.b32.xlu0 %v266, 64
  %v268 = vpop.permute.xlu0 %267
  %s270 = scalar_lea.vmem %s44, 7
  %271 = vst.msk [vmem:[%s270] sm:$0x1] %vm249, %v268
  %v274 = vunpack.c.l.s4 1983009808
  %v275 = vunpack.c.0.s8 %v274
  %v276 = vlaneseq
  %v277 = vshrl.u32 %v276, 7
  %v278 = vsub.s32 %v275, %v277
  %v279 = vrot.slane %v194, %v278
  %280 = vrot.lane.b32.xlu0 %v279, 64
  %v281 = vpop.permute.xlu0 %280
  %v285 = vunpack.c.l.s4 1983009808
  %v286 = vunpack.c.0.s8 %v285
  %v287 = vlaneseq
  %v288 = vshrl.u32 %v287, 7
  %v289 = vsub.s32 %v286, %v288
  %v290 = vrot.slane %v229, %v289
  %291 = vrot.lane.b32.xlu0 %v290, 96
  %v292 = vpop.permute.xlu0 %291
  %vm294 = vcmask 261120
  %v295 = vsel %vm294, %v281, %v292
  %v296 = vpack.c.bf16 %v295, %v295
  %v298 = vsel %vm108, %v296, 0
  %300 = vmatprep.subr.bf16.mxu0 0
  %301 = vmatpush1.bf16.msra.mxu0 0
  %302 = vmatprep.subr.bf16.mxu0 0
  %303 = vmatpush1.bf16.msra.mxu0 0
  %304 = vmatprep.subr.bf16.mxu0 0
  %305 = vmatpush1.bf16.msra.mxu0 0
  %306 = vmatprep.subr.bf16.mxu0 0
  %307 = vmatpush1.bf16.msra.mxu0 0
  %308 = vmatprep.subr.bf16.mxu0 %v99
  %309 = vmatpush1.bf16.msra.mxu0 %v98
  %310 = vmatprep.subr.bf16.mxu0 %v97
  %311 = vmatpush1.bf16.msra.mxu0 %v96
  %312 = vmatprep.subr.bf16.mxu0 %v95
  %313 = vmatpush1.bf16.msra.mxu0 %v94
  %314 = vmatprep.subr.bf16.mxu0 %v93
  %315 = vmatpush1.bf16.msra.mxu0 %v92
  %316 = vmatprep.subr.bf16.mxu0 0
  %317 = vmatpush2.bf16.msra.mxu0 0
  %318 = vmatprep.subr.bf16.mxu0 0
  %319 = vmatpush2.bf16.msra.mxu0 0
  %320 = vmatprep.subr.bf16.mxu0 0
  %321 = vmatpush2.bf16.msra.mxu0 0
  %322 = vmatprep.subr.bf16.mxu0 0
  %323 = vmatpush2.bf16.msra.mxu0 0
  %324 = vmatprep.subr.bf16.mxu0 0
  %325 = vmatpush2.bf16.msra.mxu0 0
  %326 = vmatprep.subr.bf16.mxu0 0
  %327 = vmatpush2.bf16.msra.mxu0 0
  %328 = vmatprep.subr.bf16.mxu0 0
  %329 = vmatpush2.bf16.msra.mxu0 0
  %330 = vmatprep.subr.bf16.mxu0 0
  %331 = vmatpush2.bf16.msra.mxu0 0
  %332 = vmatprep.mubr.bf16.mxu0 0
  %333 = vmatmul.mubr.bf16.gmra.mxu0 %v298
  %v334 = vpop.f32.mrf.mxu0
  %v335 = vadd.f32 0.0, %v334
  %v336 = vpop.f32.mrf.mxu0
  %v337 = vadd.f32 0.0, %v336
  %v338 = vpop.f32.mrf.mxu0
  %v339 = vpop.f32.mrf.mxu0
  %340 = vdwg.mxu0
  %s341 = scalar_lea.vmem %s0, 1
  %v342 = vld [vmem:[%s341] sm:$0x1]
  %v343 = vunpack.c.l.bf16 %v342
  %v344 = vadd.f32 %v343, %v335
  %s345 = scalar_lea.vmem %s37, 6
  %v346 = vld [vmem:[%s345] sm:$0x1]
  %v347 = vunpack.c.l.bf16 %v346
  %v348 = vadd.f32 %v347, %v337
  %v349 = vxor.u32 %v344, 2147483648
  %v350 = vmul.f32 %v349, 1.442695
  %v351 = vpow.pop %v350
  %v352 = vadd.f32 %v351, 1.0
  %v353 = vrcp.pop %v352
  %v354 = vmul.f32 1.0, %v353
  %v355 = vtanh.pop %v344
  %v356 = vmul.f32 %v354, %v188
  %358 = vrot.lane.b32.xlu0 %v355, 32
  %v359 = vpop.permute.xlu0 %358
  %v361 = vmul.f32 %v354, %v359
  %363 = vrot.lane.b32.xlu0 %v361, 32
  %v364 = vpop.permute.xlu0 %363
  %v366 = vadd.f32 %v356, %v364
  %v367 = vtanh.pop %v366
  %369 = vrot.lane.b32.xlu0 %v367, 32
  %v370 = vpop.permute.xlu0 %369
  %v372 = vmul.f32 %v354, %v370
  %v373 = vxor.u32 %v348, 2147483648
  %v374 = vmul.f32 %v373, 1.442695
  %v375 = vpow.pop %v374
  %v376 = vadd.f32 %v375, 1.0
  %v377 = vrcp.pop %v376
  %v378 = vmul.f32 1.0, %v377
  %v379 = vtanh.pop %v348
  %v380 = vmul.f32 %v378, %v223
  %382 = vrot.lane.b32.xlu0 %v379, 32
  %v383 = vpop.permute.xlu0 %382
  %v385 = vmul.f32 %v378, %v383
  %387 = vrot.lane.b32.xlu0 %v385, 32
  %v388 = vpop.permute.xlu0 %387
  %v390 = vadd.f32 %v380, %v388
  %v391 = vtanh.pop %v390
  %393 = vrot.lane.b32.xlu0 %v391, 32
  %v394 = vpop.permute.xlu0 %393
  %v396 = vmul.f32 %v378, %v394
  %v397 = vpack.c.bf16 %v372, %v372
  %v400 = vunpack.c.l.s4 1966171168
  %v401 = vunpack.c.0.s8 %v400
  %v402 = vlaneseq
  %v403 = vshrl.u32 %v402, 7
  %v404 = vsub.s32 %v401, %v403
  %v405 = vrot.slane %v397, %v404
  %v407 = vunpack.c.l.s4 1966171168
  %v408 = vunpack.c.0.s8 %v407
  %v409 = vlaneseq
  %v410 = vshrl.u32 %v409, 7
  %v411 = vsub.s32 %v408, %v410
  %v412 = vrot.slane %v405, %v411
  %413 = vrot.lane.b32.xlu0 %v412, 64
  %v414 = vpop.permute.xlu0 %413
  %s416 = scalar_lea.vmem %s3, 1
  %417 = vst.msk [vmem:[%s416] sm:$0x1] %vm249, %v414
  %v418 = vpack.c.bf16 %v396, %v396
  %v421 = vunpack.c.l.s4 1966171168
  %v422 = vunpack.c.0.s8 %v421
  %v423 = vlaneseq
  %v424 = vshrl.u32 %v423, 7
  %v425 = vsub.s32 %v422, %v424
  %v426 = vrot.slane %v418, %v425
  %v428 = vunpack.c.l.s4 1966171168
  %v429 = vunpack.c.0.s8 %v428
  %v430 = vlaneseq
  %v431 = vshrl.u32 %v430, 7
  %v432 = vsub.s32 %v429, %v431
  %v433 = vrot.slane %v426, %v432
  %434 = vrot.lane.b32.xlu0 %v433, 64
  %v435 = vpop.permute.xlu0 %434
  %s437 = scalar_lea.vmem %s44, 6
  %438 = vst.msk [vmem:[%s437] sm:$0x1] %vm249, %v435
  %v441 = vunpack.c.l.s4 1983009808
  %v442 = vunpack.c.0.s8 %v441
  %v443 = vlaneseq
  %v444 = vshrl.u32 %v443, 7
  %v445 = vsub.s32 %v442, %v444
  %v446 = vrot.slane %v372, %v445
  %447 = vrot.lane.b32.xlu0 %v446, 64
  %v448 = vpop.permute.xlu0 %447
  %v452 = vunpack.c.l.s4 1983009808
  %v453 = vunpack.c.0.s8 %v452
  %v454 = vlaneseq
  %v455 = vshrl.u32 %v454, 7
  %v456 = vsub.s32 %v453, %v455
  %v457 = vrot.slane %v396, %v456
  %458 = vrot.lane.b32.xlu0 %v457, 96
  %v459 = vpop.permute.xlu0 %458
  %v461 = vsel %vm294, %v448, %v459
  %v462 = vpack.c.bf16 %v461, %v461
  %v464 = vsel %vm108, %v462, 0
  %466 = vmatprep.subr.bf16.mxu0 0
  %467 = vmatpush1.bf16.msra.mxu0 0
  %468 = vmatprep.subr.bf16.mxu0 0
  %469 = vmatpush1.bf16.msra.mxu0 0
  %470 = vmatprep.subr.bf16.mxu0 0
  %471 = vmatpush1.bf16.msra.mxu0 0
  %472 = vmatprep.subr.bf16.mxu0 0
  %473 = vmatpush1.bf16.msra.mxu0 0
  %474 = vmatprep.subr.bf16.mxu0 %v99
  %475 = vmatpush1.bf16.msra.mxu0 %v98
  %476 = vmatprep.subr.bf16.mxu0 %v97
  %477 = vmatpush1.bf16.msra.mxu0 %v96
  %478 = vmatprep.subr.bf16.mxu0 %v95
  %479 = vmatpush1.bf16.msra.mxu0 %v94
  %480 = vmatprep.subr.bf16.mxu0 %v93
  %481 = vmatpush1.bf16.msra.mxu0 %v92
  %482 = vmatprep.subr.bf16.mxu0 0
  %483 = vmatpush2.bf16.msra.mxu0 0
  %484 = vmatprep.subr.bf16.mxu0 0
  %485 = vmatpush2.bf16.msra.mxu0 0
  %486 = vmatprep.subr.bf16.mxu0 0
  %487 = vmatpush2.bf16.msra.mxu0 0
  %488 = vmatprep.subr.bf16.mxu0 0
  %489 = vmatpush2.bf16.msra.mxu0 0
  %490 = vmatprep.subr.bf16.mxu0 0
  %491 = vmatpush2.bf16.msra.mxu0 0
  %492 = vmatprep.subr.bf16.mxu0 0
  %493 = vmatpush2.bf16.msra.mxu0 0
  %494 = vmatprep.subr.bf16.mxu0 0
  %495 = vmatpush2.bf16.msra.mxu0 0
  %496 = vmatprep.subr.bf16.mxu0 0
  %497 = vmatpush2.bf16.msra.mxu0 0
  %498 = vmatprep.mubr.bf16.mxu0 0
  %499 = vmatmul.mubr.bf16.gmra.mxu0 %v464
  %v500 = vpop.f32.mrf.mxu0
  %v501 = vadd.f32 0.0, %v500
  %v502 = vpop.f32.mrf.mxu0
  %v503 = vadd.f32 0.0, %v502
  %v504 = vpop.f32.mrf.mxu0
  %v505 = vpop.f32.mrf.mxu0
  %506 = vdwg.mxu0
  %s507 = scalar_lea.vmem %s0, 2
  %v508 = vld [vmem:[%s507] sm:$0x1]
  %v509 = vunpack.c.l.bf16 %v508
  %v510 = vadd.f32 %v509, %v501
  %s511 = scalar_lea.vmem %s37, 5
  %v512 = vld [vmem:[%s511] sm:$0x1]
  %v513 = vunpack.c.l.bf16 %v512
  %v514 = vadd.f32 %v513, %v503
  %v515 = vxor.u32 %v510, 2147483648
  %v516 = vmul.f32 %v515, 1.442695
  %v517 = vpow.pop %v516
  %v518 = vadd.f32 %v517, 1.0
  %v519 = vrcp.pop %v518
  %v520 = vmul.f32 1.0, %v519
  %v521 = vtanh.pop %v510
  %v522 = vmul.f32 %v520, %v366
  %524 = vrot.lane.b32.xlu0 %v521, 32
  %v525 = vpop.permute.xlu0 %524
  %v527 = vmul.f32 %v520, %v525
  %529 = vrot.lane.b32.xlu0 %v527, 32
  %v530 = vpop.permute.xlu0 %529
  %v532 = vadd.f32 %v522, %v530
  %v533 = vtanh.pop %v532
  %535 = vrot.lane.b32.xlu0 %v533, 32
  %v536 = vpop.permute.xlu0 %535
  %v538 = vmul.f32 %v520, %v536
  %v539 = vxor.u32 %v514, 2147483648
  %v540 = vmul.f32 %v539, 1.442695
  %v541 = vpow.pop %v540
  %v542 = vadd.f32 %v541, 1.0
  %v543 = vrcp.pop %v542
  %v544 = vmul.f32 1.0, %v543
  %v545 = vtanh.pop %v514
  %v546 = vmul.f32 %v544, %v390
  %548 = vrot.lane.b32.xlu0 %v545, 32
  %v549 = vpop.permute.xlu0 %548
  %v551 = vmul.f32 %v544, %v549
  %553 = vrot.lane.b32.xlu0 %v551, 32
  %v554 = vpop.permute.xlu0 %553
  %v556 = vadd.f32 %v546, %v554
  %v557 = vtanh.pop %v556
  %559 = vrot.lane.b32.xlu0 %v557, 32
  %v560 = vpop.permute.xlu0 %559
  %v562 = vmul.f32 %v544, %v560
  %v563 = vpack.c.bf16 %v538, %v538
  %v566 = vunpack.c.l.s4 1966171168
  %v567 = vunpack.c.0.s8 %v566
  %v568 = vlaneseq
  %v569 = vshrl.u32 %v568, 7
  %v570 = vsub.s32 %v567, %v569
  %v571 = vrot.slane %v563, %v570
  %v573 = vunpack.c.l.s4 1966171168
  %v574 = vunpack.c.0.s8 %v573
  %v575 = vlaneseq
  %v576 = vshrl.u32 %v575, 7
  %v577 = vsub.s32 %v574, %v576
  %v578 = vrot.slane %v571, %v577
  %579 = vrot.lane.b32.xlu0 %v578, 64
  %v580 = vpop.permute.xlu0 %579
  %s582 = scalar_lea.vmem %s3, 2
  %583 = vst.msk [vmem:[%s582] sm:$0x1] %vm249, %v580
  %v584 = vpack.c.bf16 %v562, %v562
  %v587 = vunpack.c.l.s4 1966171168
  %v588 = vunpack.c.0.s8 %v587
  %v589 = vlaneseq
  %v590 = vshrl.u32 %v589, 7
  %v591 = vsub.s32 %v588, %v590
  %v592 = vrot.slane %v584, %v591
  %v594 = vunpack.c.l.s4 1966171168
  %v595 = vunpack.c.0.s8 %v594
  %v596 = vlaneseq
  %v597 = vshrl.u32 %v596, 7
  %v598 = vsub.s32 %v595, %v597
  %v599 = vrot.slane %v592, %v598
  %600 = vrot.lane.b32.xlu0 %v599, 64
  %v601 = vpop.permute.xlu0 %600
  %s603 = scalar_lea.vmem %s44, 5
  %604 = vst.msk [vmem:[%s603] sm:$0x1] %vm249, %v601
  %v607 = vunpack.c.l.s4 1983009808
  %v608 = vunpack.c.0.s8 %v607
  %v609 = vlaneseq
  %v610 = vshrl.u32 %v609, 7
  %v611 = vsub.s32 %v608, %v610
  %v612 = vrot.slane %v538, %v611
  %613 = vrot.lane.b32.xlu0 %v612, 64
  %v614 = vpop.permute.xlu0 %613
  %v618 = vunpack.c.l.s4 1983009808
  %v619 = vunpack.c.0.s8 %v618
  %v620 = vlaneseq
  %v621 = vshrl.u32 %v620, 7
  %v622 = vsub.s32 %v619, %v621
  %v623 = vrot.slane %v562, %v622
  %624 = vrot.lane.b32.xlu0 %v623, 96
  %v625 = vpop.permute.xlu0 %624
  %v627 = vsel %vm294, %v614, %v625
  %v628 = vpack.c.bf16 %v627, %v627
  %v630 = vsel %vm108, %v628, 0
  %632 = vmatprep.subr.bf16.mxu0 0
  %633 = vmatpush1.bf16.msra.mxu0 0
  %634 = vmatprep.subr.bf16.mxu0 0
  %635 = vmatpush1.bf16.msra.mxu0 0
  %636 = vmatprep.subr.bf16.mxu0 0
  %637 = vmatpush1.bf16.msra.mxu0 0
  %638 = vmatprep.subr.bf16.mxu0 0
  %639 = vmatpush1.bf16.msra.mxu0 0
  %640 = vmatprep.subr.bf16.mxu0 %v99
  %641 = vmatpush1.bf16.msra.mxu0 %v98
  %642 = vmatprep.subr.bf16.mxu0 %v97
  %643 = vmatpush1.bf16.msra.mxu0 %v96
  %644 = vmatprep.subr.bf16.mxu0 %v95
  %645 = vmatpush1.bf16.msra.mxu0 %v94
  %646 = vmatprep.subr.bf16.mxu0 %v93
  %647 = vmatpush1.bf16.msra.mxu0 %v92
  %648 = vmatprep.subr.bf16.mxu0 0
  %649 = vmatpush2.bf16.msra.mxu0 0
  %650 = vmatprep.subr.bf16.mxu0 0
  %651 = vmatpush2.bf16.msra.mxu0 0
  %652 = vmatprep.subr.bf16.mxu0 0
  %653 = vmatpush2.bf16.msra.mxu0 0
  %654 = vmatprep.subr.bf16.mxu0 0
  %655 = vmatpush2.bf16.msra.mxu0 0
  %656 = vmatprep.subr.bf16.mxu0 0
  %657 = vmatpush2.bf16.msra.mxu0 0
  %658 = vmatprep.subr.bf16.mxu0 0
  %659 = vmatpush2.bf16.msra.mxu0 0
  %660 = vmatprep.subr.bf16.mxu0 0
  %661 = vmatpush2.bf16.msra.mxu0 0
  %662 = vmatprep.subr.bf16.mxu0 0
  %663 = vmatpush2.bf16.msra.mxu0 0
  %664 = vmatprep.mubr.bf16.mxu0 0
  %665 = vmatmul.mubr.bf16.gmra.mxu0 %v630
  %v666 = vpop.f32.mrf.mxu0
  %v667 = vadd.f32 0.0, %v666
  %v668 = vpop.f32.mrf.mxu0
  %v669 = vadd.f32 0.0, %v668
  %v670 = vpop.f32.mrf.mxu0
  %v671 = vpop.f32.mrf.mxu0
  %672 = vdwg.mxu0
  %s673 = scalar_lea.vmem %s0, 3
  %v674 = vld [vmem:[%s673] sm:$0x1]
  %v675 = vunpack.c.l.bf16 %v674
  %v676 = vadd.f32 %v675, %v667
  %s677 = scalar_lea.vmem %s37, 4
  %v678 = vld [vmem:[%s677] sm:$0x1]
  %v679 = vunpack.c.l.bf16 %v678
  %v680 = vadd.f32 %v679, %v669
  %v681 = vxor.u32 %v676, 2147483648
  %v682 = vmul.f32 %v681, 1.442695
  %v683 = vpow.pop %v682
  %v684 = vadd.f32 %v683, 1.0
  %v685 = vrcp.pop %v684
  %v686 = vmul.f32 1.0, %v685
  %v687 = vtanh.pop %v676
  %v688 = vmul.f32 %v686, %v532
  %690 = vrot.lane.b32.xlu0 %v687, 32
  %v691 = vpop.permute.xlu0 %690
  %v693 = vmul.f32 %v686, %v691
  %695 = vrot.lane.b32.xlu0 %v693, 32
  %v696 = vpop.permute.xlu0 %695
  %v698 = vadd.f32 %v688, %v696
  %v699 = vtanh.pop %v698
  %701 = vrot.lane.b32.xlu0 %v699, 32
  %v702 = vpop.permute.xlu0 %701
  %v704 = vmul.f32 %v686, %v702
  %v705 = vxor.u32 %v680, 2147483648
  %v706 = vmul.f32 %v705, 1.442695
  %v707 = vpow.pop %v706
  %v708 = vadd.f32 %v707, 1.0
  %v709 = vrcp.pop %v708
  %v710 = vmul.f32 1.0, %v709
  %v711 = vtanh.pop %v680
  %v712 = vmul.f32 %v710, %v556
  %714 = vrot.lane.b32.xlu0 %v711, 32
  %v715 = vpop.permute.xlu0 %714
  %v717 = vmul.f32 %v710, %v715
  %719 = vrot.lane.b32.xlu0 %v717, 32
  %v720 = vpop.permute.xlu0 %719
  %v722 = vadd.f32 %v712, %v720
  %v723 = vtanh.pop %v722
  %725 = vrot.lane.b32.xlu0 %v723, 32
  %v726 = vpop.permute.xlu0 %725
  %v728 = vmul.f32 %v710, %v726
  %v729 = vpack.c.bf16 %v704, %v704
  %v732 = vunpack.c.l.s4 1966171168
  %v733 = vunpack.c.0.s8 %v732
  %v734 = vlaneseq
  %v735 = vshrl.u32 %v734, 7
  %v736 = vsub.s32 %v733, %v735
  %v737 = vrot.slane %v729, %v736
  %v739 = vunpack.c.l.s4 1966171168
  %v740 = vunpack.c.0.s8 %v739
  %v741 = vlaneseq
  %v742 = vshrl.u32 %v741, 7
  %v743 = vsub.s32 %v740, %v742
  %v744 = vrot.slane %v737, %v743
  %745 = vrot.lane.b32.xlu0 %v744, 64
  %v746 = vpop.permute.xlu0 %745
  %s748 = scalar_lea.vmem %s3, 3
  %749 = vst.msk [vmem:[%s748] sm:$0x1] %vm249, %v746
  %v750 = vpack.c.bf16 %v728, %v728
  %v753 = vunpack.c.l.s4 1966171168
  %v754 = vunpack.c.0.s8 %v753
  %v755 = vlaneseq
  %v756 = vshrl.u32 %v755, 7
  %v757 = vsub.s32 %v754, %v756
  %v758 = vrot.slane %v750, %v757
  %v760 = vunpack.c.l.s4 1966171168
  %v761 = vunpack.c.0.s8 %v760
  %v762 = vlaneseq
  %v763 = vshrl.u32 %v762, 7
  %v764 = vsub.s32 %v761, %v763
  %v765 = vrot.slane %v758, %v764
  %766 = vrot.lane.b32.xlu0 %v765, 64
  %v767 = vpop.permute.xlu0 %766
  %s769 = scalar_lea.vmem %s44, 4
  %770 = vst.msk [vmem:[%s769] sm:$0x1] %vm249, %v767
  %v773 = vunpack.c.l.s4 1983009808
  %v774 = vunpack.c.0.s8 %v773
  %v775 = vlaneseq
  %v776 = vshrl.u32 %v775, 7
  %v777 = vsub.s32 %v774, %v776
  %v778 = vrot.slane %v704, %v777
  %779 = vrot.lane.b32.xlu0 %v778, 64
  %v780 = vpop.permute.xlu0 %779
  %v784 = vunpack.c.l.s4 1983009808
  %v785 = vunpack.c.0.s8 %v784
  %v786 = vlaneseq
  %v787 = vshrl.u32 %v786, 7
  %v788 = vsub.s32 %v785, %v787
  %v789 = vrot.slane %v728, %v788
  %790 = vrot.lane.b32.xlu0 %v789, 96
  %v791 = vpop.permute.xlu0 %790
  %v793 = vsel %vm294, %v780, %v791
  %v794 = vpack.c.bf16 %v793, %v793
  %v796 = vsel %vm108, %v794, 0
  %798 = vmatprep.subr.bf16.mxu0 0
  %799 = vmatpush1.bf16.msra.mxu0 0
  %800 = vmatprep.subr.bf16.mxu0 0
  %801 = vmatpush1.bf16.msra.mxu0 0
  %802 = vmatprep.subr.bf16.mxu0 0
  %803 = vmatpush1.bf16.msra.mxu0 0
  %804 = vmatprep.subr.bf16.mxu0 0
  %805 = vmatpush1.bf16.msra.mxu0 0
  %806 = vmatprep.subr.bf16.mxu0 %v99
  %807 = vmatpush1.bf16.msra.mxu0 %v98
  %808 = vmatprep.subr.bf16.mxu0 %v97
  %809 = vmatpush1.bf16.msra.mxu0 %v96
  %810 = vmatprep.subr.bf16.mxu0 %v95
  %811 = vmatpush1.bf16.msra.mxu0 %v94
  %812 = vmatprep.subr.bf16.mxu0 %v93
  %813 = vmatpush1.bf16.msra.mxu0 %v92
  %814 = vmatprep.subr.bf16.mxu0 0
  %815 = vmatpush2.bf16.msra.mxu0 0
  %816 = vmatprep.subr.bf16.mxu0 0
  %817 = vmatpush2.bf16.msra.mxu0 0
  %818 = vmatprep.subr.bf16.mxu0 0
  %819 = vmatpush2.bf16.msra.mxu0 0
  %820 = vmatprep.subr.bf16.mxu0 0
  %821 = vmatpush2.bf16.msra.mxu0 0
  %822 = vmatprep.subr.bf16.mxu0 0
  %823 = vmatpush2.bf16.msra.mxu0 0
  %824 = vmatprep.subr.bf16.mxu0 0
  %825 = vmatpush2.bf16.msra.mxu0 0
  %826 = vmatprep.subr.bf16.mxu0 0
  %827 = vmatpush2.bf16.msra.mxu0 0
  %828 = vmatprep.subr.bf16.mxu0 0
  %829 = vmatpush2.bf16.msra.mxu0 0
  %830 = vmatprep.mubr.bf16.mxu0 0
  %831 = vmatmul.mubr.bf16.gmra.mxu0 %v796
  %v832 = vpop.f32.mrf.mxu0
  %v833 = vadd.f32 0.0, %v832
  %v834 = vpop.f32.mrf.mxu0
  %v835 = vadd.f32 0.0, %v834
  %v836 = vpop.f32.mrf.mxu0
  %v837 = vpop.f32.mrf.mxu0
  %838 = vdwg.mxu0
  %s839 = scalar_lea.vmem %s0, 4
  %v840 = vld [vmem:[%s839] sm:$0x1]
  %v841 = vunpack.c.l.bf16 %v840
  %v842 = vadd.f32 %v841, %v833
  %s843 = scalar_lea.vmem %s37, 3
  %v844 = vld [vmem:[%s843] sm:$0x1]
  %v845 = vunpack.c.l.bf16 %v844
  %v846 = vadd.f32 %v845, %v835
  %v847 = vxor.u32 %v842, 2147483648
  %v848 = vmul.f32 %v847, 1.442695
  %v849 = vpow.pop %v848
  %v850 = vadd.f32 %v849, 1.0
  %v851 = vrcp.pop %v850
  %v852 = vmul.f32 1.0, %v851
  %v853 = vtanh.pop %v842
  %v854 = vmul.f32 %v852, %v698
  %856 = vrot.lane.b32.xlu0 %v853, 32
  %v857 = vpop.permute.xlu0 %856
  %v859 = vmul.f32 %v852, %v857
  %861 = vrot.lane.b32.xlu0 %v859, 32
  %v862 = vpop.permute.xlu0 %861
  %v864 = vadd.f32 %v854, %v862
  %v865 = vtanh.pop %v864
  %867 = vrot.lane.b32.xlu0 %v865, 32
  %v868 = vpop.permute.xlu0 %867
  %v870 = vmul.f32 %v852, %v868
  %v871 = vxor.u32 %v846, 2147483648
  %v872 = vmul.f32 %v871, 1.442695
  %v873 = vpow.pop %v872
  %v874 = vadd.f32 %v873, 1.0
  %v875 = vrcp.pop %v874
  %v876 = vmul.f32 1.0, %v875
  %v877 = vtanh.pop %v846
  %v878 = vmul.f32 %v876, %v722
  %880 = vrot.lane.b32.xlu0 %v877, 32
  %v881 = vpop.permute.xlu0 %880
  %v883 = vmul.f32 %v876, %v881
  %885 = vrot.lane.b32.xlu0 %v883, 32
  %v886 = vpop.permute.xlu0 %885
  %v888 = vadd.f32 %v878, %v886
  %v889 = vtanh.pop %v888
  %891 = vrot.lane.b32.xlu0 %v889, 32
  %v892 = vpop.permute.xlu0 %891
  %v894 = vmul.f32 %v876, %v892
  %v895 = vpack.c.bf16 %v870, %v870
  %v898 = vunpack.c.l.s4 1966171168
  %v899 = vunpack.c.0.s8 %v898
  %v900 = vlaneseq
  %v901 = vshrl.u32 %v900, 7
  %v902 = vsub.s32 %v899, %v901
  %v903 = vrot.slane %v895, %v902
  %v905 = vunpack.c.l.s4 1966171168
  %v906 = vunpack.c.0.s8 %v905
  %v907 = vlaneseq
  %v908 = vshrl.u32 %v907, 7
  %v909 = vsub.s32 %v906, %v908
  %v910 = vrot.slane %v903, %v909
  %911 = vrot.lane.b32.xlu0 %v910, 64
  %v912 = vpop.permute.xlu0 %911
  %s914 = scalar_lea.vmem %s3, 4
  %915 = vst.msk [vmem:[%s914] sm:$0x1] %vm249, %v912
  %v916 = vpack.c.bf16 %v894, %v894
  %v919 = vunpack.c.l.s4 1966171168
  %v920 = vunpack.c.0.s8 %v919
  %v921 = vlaneseq
  %v922 = vshrl.u32 %v921, 7
  %v923 = vsub.s32 %v920, %v922
  %v924 = vrot.slane %v916, %v923
  %v926 = vunpack.c.l.s4 1966171168
  %v927 = vunpack.c.0.s8 %v926
  %v928 = vlaneseq
  %v929 = vshrl.u32 %v928, 7
  %v930 = vsub.s32 %v927, %v929
  %v931 = vrot.slane %v924, %v930
  %932 = vrot.lane.b32.xlu0 %v931, 64
  %v933 = vpop.permute.xlu0 %932
  %s935 = scalar_lea.vmem %s44, 3
  %936 = vst.msk [vmem:[%s935] sm:$0x1] %vm249, %v933
  %v939 = vunpack.c.l.s4 1983009808
  %v940 = vunpack.c.0.s8 %v939
  %v941 = vlaneseq
  %v942 = vshrl.u32 %v941, 7
  %v943 = vsub.s32 %v940, %v942
  %v944 = vrot.slane %v870, %v943
  %945 = vrot.lane.b32.xlu0 %v944, 64
  %v946 = vpop.permute.xlu0 %945
  %v950 = vunpack.c.l.s4 1983009808
  %v951 = vunpack.c.0.s8 %v950
  %v952 = vlaneseq
  %v953 = vshrl.u32 %v952, 7
  %v954 = vsub.s32 %v951, %v953
  %v955 = vrot.slane %v894, %v954
  %956 = vrot.lane.b32.xlu0 %v955, 96
  %v957 = vpop.permute.xlu0 %956
  %v959 = vsel %vm294, %v946, %v957
  %v960 = vpack.c.bf16 %v959, %v959
  %v962 = vsel %vm108, %v960, 0
  %964 = vmatprep.subr.bf16.mxu0 0
  %965 = vmatpush1.bf16.msra.mxu0 0
  %966 = vmatprep.subr.bf16.mxu0 0
  %967 = vmatpush1.bf16.msra.mxu0 0
  %968 = vmatprep.subr.bf16.mxu0 0
  %969 = vmatpush1.bf16.msra.mxu0 0
  %970 = vmatprep.subr.bf16.mxu0 0
  %971 = vmatpush1.bf16.msra.mxu0 0
  %972 = vmatprep.subr.bf16.mxu0 %v99
  %973 = vmatpush1.bf16.msra.mxu0 %v98
  %974 = vmatprep.subr.bf16.mxu0 %v97
  %975 = vmatpush1.bf16.msra.mxu0 %v96
  %976 = vmatprep.subr.bf16.mxu0 %v95
  %977 = vmatpush1.bf16.msra.mxu0 %v94
  %978 = vmatprep.subr.bf16.mxu0 %v93
  %979 = vmatpush1.bf16.msra.mxu0 %v92
  %980 = vmatprep.subr.bf16.mxu0 0
  %981 = vmatpush2.bf16.msra.mxu0 0
  %982 = vmatprep.subr.bf16.mxu0 0
  %983 = vmatpush2.bf16.msra.mxu0 0
  %984 = vmatprep.subr.bf16.mxu0 0
  %985 = vmatpush2.bf16.msra.mxu0 0
  %986 = vmatprep.subr.bf16.mxu0 0
  %987 = vmatpush2.bf16.msra.mxu0 0
  %988 = vmatprep.subr.bf16.mxu0 0
  %989 = vmatpush2.bf16.msra.mxu0 0
  %990 = vmatprep.subr.bf16.mxu0 0
  %991 = vmatpush2.bf16.msra.mxu0 0
  %992 = vmatprep.subr.bf16.mxu0 0
  %993 = vmatpush2.bf16.msra.mxu0 0
  %994 = vmatprep.subr.bf16.mxu0 0
  %995 = vmatpush2.bf16.msra.mxu0 0
  %996 = vmatprep.mubr.bf16.mxu0 0
  %997 = vmatmul.mubr.bf16.gmra.mxu0 %v962
  %v998 = vpop.f32.mrf.mxu0
  %v999 = vadd.f32 0.0, %v998
  %v1000 = vpop.f32.mrf.mxu0
  %v1001 = vadd.f32 0.0, %v1000
  %v1002 = vpop.f32.mrf.mxu0
  %v1003 = vpop.f32.mrf.mxu0
  %1004 = vdwg.mxu0
  %s1005 = scalar_lea.vmem %s0, 5
  %v1006 = vld [vmem:[%s1005] sm:$0x1]
  %v1007 = vunpack.c.l.bf16 %v1006
  %v1008 = vadd.f32 %v1007, %v999
  %s1009 = scalar_lea.vmem %s37, 2
  %v1010 = vld [vmem:[%s1009] sm:$0x1]
  %v1011 = vunpack.c.l.bf16 %v1010
  %v1012 = vadd.f32 %v1011, %v1001
  %v1013 = vxor.u32 %v1008, 2147483648
  %v1014 = vmul.f32 %v1013, 1.442695
  %v1015 = vpow.pop %v1014
  %v1016 = vadd.f32 %v1015, 1.0
  %v1017 = vrcp.pop %v1016
  %v1018 = vmul.f32 1.0, %v1017
  %v1019 = vtanh.pop %v1008
  %v1020 = vmul.f32 %v1018, %v864
  %1022 = vrot.lane.b32.xlu0 %v1019, 32
  %v1023 = vpop.permute.xlu0 %1022
  %v1025 = vmul.f32 %v1018, %v1023
  %1027 = vrot.lane.b32.xlu0 %v1025, 32
  %v1028 = vpop.permute.xlu0 %1027
  %v1030 = vadd.f32 %v1020, %v1028
  %v1031 = vtanh.pop %v1030
  %1033 = vrot.lane.b32.xlu0 %v1031, 32
  %v1034 = vpop.permute.xlu0 %1033
  %v1036 = vmul.f32 %v1018, %v1034
  %v1037 = vxor.u32 %v1012, 2147483648
  %v1038 = vmul.f32 %v1037, 1.442695
  %v1039 = vpow.pop %v1038
  %v1040 = vadd.f32 %v1039, 1.0
  %v1041 = vrcp.pop %v1040
  %v1042 = vmul.f32 1.0, %v1041
  %v1043 = vtanh.pop %v1012
  %v1044 = vmul.f32 %v1042, %v888
  %1046 = vrot.lane.b32.xlu0 %v1043, 32
  %v1047 = vpop.permute.xlu0 %1046
  %v1049 = vmul.f32 %v1042, %v1047
  %1051 = vrot.lane.b32.xlu0 %v1049, 32
  %v1052 = vpop.permute.xlu0 %1051
  %v1054 = vadd.f32 %v1044, %v1052
  %v1055 = vtanh.pop %v1054
  %1057 = vrot.lane.b32.xlu0 %v1055, 32
  %v1058 = vpop.permute.xlu0 %1057
  %v1060 = vmul.f32 %v1042, %v1058
  %v1061 = vpack.c.bf16 %v1036, %v1036
  %v1064 = vunpack.c.l.s4 1966171168
  %v1065 = vunpack.c.0.s8 %v1064
  %v1066 = vlaneseq
  %v1067 = vshrl.u32 %v1066, 7
  %v1068 = vsub.s32 %v1065, %v1067
  %v1069 = vrot.slane %v1061, %v1068
  %v1071 = vunpack.c.l.s4 1966171168
  %v1072 = vunpack.c.0.s8 %v1071
  %v1073 = vlaneseq
  %v1074 = vshrl.u32 %v1073, 7
  %v1075 = vsub.s32 %v1072, %v1074
  %v1076 = vrot.slane %v1069, %v1075
  %1077 = vrot.lane.b32.xlu0 %v1076, 64
  %v1078 = vpop.permute.xlu0 %1077
  %s1080 = scalar_lea.vmem %s3, 5
  %1081 = vst.msk [vmem:[%s1080] sm:$0x1] %vm249, %v1078
  %v1082 = vpack.c.bf16 %v1060, %v1060
  %v1085 = vunpack.c.l.s4 1966171168
  %v1086 = vunpack.c.0.s8 %v1085
  %v1087 = vlaneseq
  %v1088 = vshrl.u32 %v1087, 7
  %v1089 = vsub.s32 %v1086, %v1088
  %v1090 = vrot.slane %v1082, %v1089
  %v1092 = vunpack.c.l.s4 1966171168
  %v1093 = vunpack.c.0.s8 %v1092
  %v1094 = vlaneseq
  %v1095 = vshrl.u32 %v1094, 7
  %v1096 = vsub.s32 %v1093, %v1095
  %v1097 = vrot.slane %v1090, %v1096
  %1098 = vrot.lane.b32.xlu0 %v1097, 64
  %v1099 = vpop.permute.xlu0 %1098
  %s1101 = scalar_lea.vmem %s44, 2
  %1102 = vst.msk [vmem:[%s1101] sm:$0x1] %vm249, %v1099
  %v1105 = vunpack.c.l.s4 1983009808
  %v1106 = vunpack.c.0.s8 %v1105
  %v1107 = vlaneseq
  %v1108 = vshrl.u32 %v1107, 7
  %v1109 = vsub.s32 %v1106, %v1108
  %v1110 = vrot.slane %v1036, %v1109
  %1111 = vrot.lane.b32.xlu0 %v1110, 64
  %v1112 = vpop.permute.xlu0 %1111
  %v1116 = vunpack.c.l.s4 1983009808
  %v1117 = vunpack.c.0.s8 %v1116
  %v1118 = vlaneseq
  %v1119 = vshrl.u32 %v1118, 7
  %v1120 = vsub.s32 %v1117, %v1119
  %v1121 = vrot.slane %v1060, %v1120
  %1122 = vrot.lane.b32.xlu0 %v1121, 96
  %v1123 = vpop.permute.xlu0 %1122
  %v1125 = vsel %vm294, %v1112, %v1123
  %v1126 = vpack.c.bf16 %v1125, %v1125
  %v1128 = vsel %vm108, %v1126, 0
  %1130 = vmatprep.subr.bf16.mxu0 0
  %1131 = vmatpush1.bf16.msra.mxu0 0
  %1132 = vmatprep.subr.bf16.mxu0 0
  %1133 = vmatpush1.bf16.msra.mxu0 0
  %1134 = vmatprep.subr.bf16.mxu0 0
  %1135 = vmatpush1.bf16.msra.mxu0 0
  %1136 = vmatprep.subr.bf16.mxu0 0
  %1137 = vmatpush1.bf16.msra.mxu0 0
  %1138 = vmatprep.subr.bf16.mxu0 %v99
  %1139 = vmatpush1.bf16.msra.mxu0 %v98
  %1140 = vmatprep.subr.bf16.mxu0 %v97
  %1141 = vmatpush1.bf16.msra.mxu0 %v96
  %1142 = vmatprep.subr.bf16.mxu0 %v95
  %1143 = vmatpush1.bf16.msra.mxu0 %v94
  %1144 = vmatprep.subr.bf16.mxu0 %v93
  %1145 = vmatpush1.bf16.msra.mxu0 %v92
  %1146 = vmatprep.subr.bf16.mxu0 0
  %1147 = vmatpush2.bf16.msra.mxu0 0
  %1148 = vmatprep.subr.bf16.mxu0 0
  %1149 = vmatpush2.bf16.msra.mxu0 0
  %1150 = vmatprep.subr.bf16.mxu0 0
  %1151 = vmatpush2.bf16.msra.mxu0 0
  %1152 = vmatprep.subr.bf16.mxu0 0
  %1153 = vmatpush2.bf16.msra.mxu0 0
  %1154 = vmatprep.subr.bf16.mxu0 0
  %1155 = vmatpush2.bf16.msra.mxu0 0
  %1156 = vmatprep.subr.bf16.mxu0 0
  %1157 = vmatpush2.bf16.msra.mxu0 0
  %1158 = vmatprep.subr.bf16.mxu0 0
  %1159 = vmatpush2.bf16.msra.mxu0 0
  %1160 = vmatprep.subr.bf16.mxu0 0
  %1161 = vmatpush2.bf16.msra.mxu0 0
  %1162 = vmatprep.mubr.bf16.mxu0 0
  %1163 = vmatmul.mubr.bf16.gmra.mxu0 %v1128
  %v1164 = vpop.f32.mrf.mxu0
  %v1165 = vadd.f32 0.0, %v1164
  %v1166 = vpop.f32.mrf.mxu0
  %v1167 = vadd.f32 0.0, %v1166
  %v1168 = vpop.f32.mrf.mxu0
  %v1169 = vpop.f32.mrf.mxu0
  %1170 = vdwg.mxu0
  %s1171 = scalar_lea.vmem %s0, 6
  %v1172 = vld [vmem:[%s1171] sm:$0x1]
  %v1173 = vunpack.c.l.bf16 %v1172
  %v1174 = vadd.f32 %v1173, %v1165
  %s1175 = scalar_lea.vmem %s37, 1
  %v1176 = vld [vmem:[%s1175] sm:$0x1]
  %v1177 = vunpack.c.l.bf16 %v1176
  %v1178 = vadd.f32 %v1177, %v1167
  %v1179 = vxor.u32 %v1174, 2147483648
  %v1180 = vmul.f32 %v1179, 1.442695
  %v1181 = vpow.pop %v1180
  %v1182 = vadd.f32 %v1181, 1.0
  %v1183 = vrcp.pop %v1182
  %v1184 = vmul.f32 1.0, %v1183
  %v1185 = vtanh.pop %v1174
  %v1186 = vmul.f32 %v1184, %v1030
  %1188 = vrot.lane.b32.xlu0 %v1185, 32
  %v1189 = vpop.permute.xlu0 %1188
  %v1191 = vmul.f32 %v1184, %v1189
  %1193 = vrot.lane.b32.xlu0 %v1191, 32
  %v1194 = vpop.permute.xlu0 %1193
  %v1196 = vadd.f32 %v1186, %v1194
  %v1197 = vtanh.pop %v1196
  %1199 = vrot.lane.b32.xlu0 %v1197, 32
  %v1200 = vpop.permute.xlu0 %1199
  %v1202 = vmul.f32 %v1184, %v1200
  %v1203 = vxor.u32 %v1178, 2147483648
  %v1204 = vmul.f32 %v1203, 1.442695
  %v1205 = vpow.pop %v1204
  %v1206 = vadd.f32 %v1205, 1.0
  %v1207 = vrcp.pop %v1206
  %v1208 = vmul.f32 1.0, %v1207
  %v1209 = vtanh.pop %v1178
  %v1210 = vmul.f32 %v1208, %v1054
  %1212 = vrot.lane.b32.xlu0 %v1209, 32
  %v1213 = vpop.permute.xlu0 %1212
  %v1215 = vmul.f32 %v1208, %v1213
  %1217 = vrot.lane.b32.xlu0 %v1215, 32
  %v1218 = vpop.permute.xlu0 %1217
  %v1220 = vadd.f32 %v1210, %v1218
  %v1221 = vtanh.pop %v1220
  %1223 = vrot.lane.b32.xlu0 %v1221, 32
  %v1224 = vpop.permute.xlu0 %1223
  %v1226 = vmul.f32 %v1208, %v1224
  %v1227 = vpack.c.bf16 %v1202, %v1202
  %v1230 = vunpack.c.l.s4 1966171168
  %v1231 = vunpack.c.0.s8 %v1230
  %v1232 = vlaneseq
  %v1233 = vshrl.u32 %v1232, 7
  %v1234 = vsub.s32 %v1231, %v1233
  %v1235 = vrot.slane %v1227, %v1234
  %v1237 = vunpack.c.l.s4 1966171168
  %v1238 = vunpack.c.0.s8 %v1237
  %v1239 = vlaneseq
  %v1240 = vshrl.u32 %v1239, 7
  %v1241 = vsub.s32 %v1238, %v1240
  %v1242 = vrot.slane %v1235, %v1241
  %1243 = vrot.lane.b32.xlu0 %v1242, 64
  %v1244 = vpop.permute.xlu0 %1243
  %s1246 = scalar_lea.vmem %s3, 6
  %1247 = vst.msk [vmem:[%s1246] sm:$0x1] %vm249, %v1244
  %v1248 = vpack.c.bf16 %v1226, %v1226
  %v1251 = vunpack.c.l.s4 1966171168
  %v1252 = vunpack.c.0.s8 %v1251
  %v1253 = vlaneseq
  %v1254 = vshrl.u32 %v1253, 7
  %v1255 = vsub.s32 %v1252, %v1254
  %v1256 = vrot.slane %v1248, %v1255
  %v1258 = vunpack.c.l.s4 1966171168
  %v1259 = vunpack.c.0.s8 %v1258
  %v1260 = vlaneseq
  %v1261 = vshrl.u32 %v1260, 7
  %v1262 = vsub.s32 %v1259, %v1261
  %v1263 = vrot.slane %v1256, %v1262
  %1264 = vrot.lane.b32.xlu0 %v1263, 64
  %v1265 = vpop.permute.xlu0 %1264
  %s1267 = scalar_lea.vmem %s44, 1
  %1268 = vst.msk [vmem:[%s1267] sm:$0x1] %vm249, %v1265
  %v1271 = vunpack.c.l.s4 1983009808
  %v1272 = vunpack.c.0.s8 %v1271
  %v1273 = vlaneseq
  %v1274 = vshrl.u32 %v1273, 7
  %v1275 = vsub.s32 %v1272, %v1274
  %v1276 = vrot.slane %v1202, %v1275
  %1277 = vrot.lane.b32.xlu0 %v1276, 64
  %v1278 = vpop.permute.xlu0 %1277
  %v1282 = vunpack.c.l.s4 1983009808
  %v1283 = vunpack.c.0.s8 %v1282
  %v1284 = vlaneseq
  %v1285 = vshrl.u32 %v1284, 7
  %v1286 = vsub.s32 %v1283, %v1285
  %v1287 = vrot.slane %v1226, %v1286
  %1288 = vrot.lane.b32.xlu0 %v1287, 96
  %v1289 = vpop.permute.xlu0 %1288
  %v1291 = vsel %vm294, %v1278, %v1289
  %v1292 = vpack.c.bf16 %v1291, %v1291
  %v1294 = vsel %vm108, %v1292, 0
  %1296 = vmatprep.subr.bf16.mxu0 0
  %1297 = vmatpush1.bf16.msra.mxu0 0
  %1298 = vmatprep.subr.bf16.mxu0 0
  %1299 = vmatpush1.bf16.msra.mxu0 0
  %1300 = vmatprep.subr.bf16.mxu0 0
  %1301 = vmatpush1.bf16.msra.mxu0 0
  %1302 = vmatprep.subr.bf16.mxu0 0
  %1303 = vmatpush1.bf16.msra.mxu0 0
  %1304 = vmatprep.subr.bf16.mxu0 %v99
  %1305 = vmatpush1.bf16.msra.mxu0 %v98
  %1306 = vmatprep.subr.bf16.mxu0 %v97
  %1307 = vmatpush1.bf16.msra.mxu0 %v96
  %1308 = vmatprep.subr.bf16.mxu0 %v95
  %1309 = vmatpush1.bf16.msra.mxu0 %v94
  %1310 = vmatprep.subr.bf16.mxu0 %v93
  %1311 = vmatpush1.bf16.msra.mxu0 %v92
  %1312 = vmatprep.subr.bf16.mxu0 0
  %1313 = vmatpush2.bf16.msra.mxu0 0
  %1314 = vmatprep.subr.bf16.mxu0 0
  %1315 = vmatpush2.bf16.msra.mxu0 0
  %1316 = vmatprep.subr.bf16.mxu0 0
  %1317 = vmatpush2.bf16.msra.mxu0 0
  %1318 = vmatprep.subr.bf16.mxu0 0
  %1319 = vmatpush2.bf16.msra.mxu0 0
  %1320 = vmatprep.subr.bf16.mxu0 0
  %1321 = vmatpush2.bf16.msra.mxu0 0
  %1322 = vmatprep.subr.bf16.mxu0 0
  %1323 = vmatpush2.bf16.msra.mxu0 0
  %1324 = vmatprep.subr.bf16.mxu0 0
  %1325 = vmatpush2.bf16.msra.mxu0 0
  %1326 = vmatprep.subr.bf16.mxu0 0
  %1327 = vmatpush2.bf16.msra.mxu0 0
  %1328 = vmatprep.mubr.bf16.mxu0 0
  %1329 = vmatmul.mubr.bf16.gmra.mxu0 %v1294
  %v1330 = vpop.f32.mrf.mxu0
  %v1331 = vadd.f32 0.0, %v1330
  %v1332 = vpop.f32.mrf.mxu0
  %v1333 = vadd.f32 0.0, %v1332
  %v1334 = vpop.f32.mrf.mxu0
  %v1335 = vpop.f32.mrf.mxu0
  %1336 = vdwg.mxu0
  %s1337 = scalar_lea.vmem %s0, 7
  %v1338 = vld [vmem:[%s1337] sm:$0x1]
  %v1339 = vunpack.c.l.bf16 %v1338
  %v1340 = vadd.f32 %v1339, %v1331
  %v1341 = vld [vmem:[%s37] sm:$0x1]
  %v1342 = vunpack.c.l.bf16 %v1341
  %v1343 = vadd.f32 %v1342, %v1333
  %v1344 = vxor.u32 %v1340, 2147483648
  %v1345 = vmul.f32 %v1344, 1.442695
  %v1346 = vpow.pop %v1345
  %v1347 = vadd.f32 %v1346, 1.0
  %v1348 = vrcp.pop %v1347
  %v1349 = vmul.f32 1.0, %v1348
  %v1350 = vtanh.pop %v1340
  %v1351 = vmul.f32 %v1349, %v1196
  %1353 = vrot.lane.b32.xlu0 %v1350, 32
  %v1354 = vpop.permute.xlu0 %1353
  %v1356 = vmul.f32 %v1349, %v1354
  %1358 = vrot.lane.b32.xlu0 %v1356, 32
  %v1359 = vpop.permute.xlu0 %1358
  %v1361 = vadd.f32 %v1351, %v1359
  %v1362 = vtanh.pop %v1361
  %1364 = vrot.lane.b32.xlu0 %v1362, 32
  %v1365 = vpop.permute.xlu0 %1364
  %v1367 = vmul.f32 %v1349, %v1365
  %v1368 = vxor.u32 %v1343, 2147483648
  %v1369 = vmul.f32 %v1368, 1.442695
  %v1370 = vpow.pop %v1369
  %v1371 = vadd.f32 %v1370, 1.0
  %v1372 = vrcp.pop %v1371
  %v1373 = vmul.f32 1.0, %v1372
  %v1374 = vtanh.pop %v1343
  %v1375 = vmul.f32 %v1373, %v1220
  %1377 = vrot.lane.b32.xlu0 %v1374, 32
  %v1378 = vpop.permute.xlu0 %1377
  %v1380 = vmul.f32 %v1373, %v1378
  %1382 = vrot.lane.b32.xlu0 %v1380, 32
  %v1383 = vpop.permute.xlu0 %1382
  %v1385 = vadd.f32 %v1375, %v1383
  %v1386 = vtanh.pop %v1385
  %1388 = vrot.lane.b32.xlu0 %v1386, 32
  %v1389 = vpop.permute.xlu0 %1388
  %v1391 = vmul.f32 %v1373, %v1389
  %v1392 = vpack.c.bf16 %v1367, %v1367
  %v1395 = vunpack.c.l.s4 1966171168
  %v1396 = vunpack.c.0.s8 %v1395
  %v1397 = vlaneseq
  %v1398 = vshrl.u32 %v1397, 7
  %v1399 = vsub.s32 %v1396, %v1398
  %v1400 = vrot.slane %v1392, %v1399
  %v1402 = vunpack.c.l.s4 1966171168
  %v1403 = vunpack.c.0.s8 %v1402
  %v1404 = vlaneseq
  %v1405 = vshrl.u32 %v1404, 7
  %v1406 = vsub.s32 %v1403, %v1405
  %v1407 = vrot.slane %v1400, %v1406
  %1408 = vrot.lane.b32.xlu0 %v1407, 64
  %v1409 = vpop.permute.xlu0 %1408
  %s1411 = scalar_lea.vmem %s3, 7
  %1412 = vst.msk [vmem:[%s1411] sm:$0x1] %vm249, %v1409
  %v1413 = vpack.c.bf16 %v1391, %v1391
  %v1416 = vunpack.c.l.s4 1966171168
  %v1417 = vunpack.c.0.s8 %v1416
  %v1418 = vlaneseq
  %v1419 = vshrl.u32 %v1418, 7
  %v1420 = vsub.s32 %v1417, %v1419
  %v1421 = vrot.slane %v1413, %v1420
  %v1423 = vunpack.c.l.s4 1966171168
  %v1424 = vunpack.c.0.s8 %v1423
  %v1425 = vlaneseq
  %v1426 = vshrl.u32 %v1425, 7
  %v1427 = vsub.s32 %v1424, %v1426
  %v1428 = vrot.slane %v1421, %v1427
  %1429 = vrot.lane.b32.xlu0 %v1428, 64
  %v1430 = vpop.permute.xlu0 %1429
  %1432 = vst.msk [vmem:[%s44] sm:$0x1] %vm249, %v1430
  %v1435 = vunpack.c.l.s4 1983009808
  %v1436 = vunpack.c.0.s8 %v1435
  %v1437 = vlaneseq
  %v1438 = vshrl.u32 %v1437, 7
  %v1439 = vsub.s32 %v1436, %v1438
  %v1440 = vrot.slane %v1367, %v1439
  %1441 = vrot.lane.b32.xlu0 %v1440, 64
  %v1442 = vpop.permute.xlu0 %1441
  %v1446 = vunpack.c.l.s4 1983009808
  %v1447 = vunpack.c.0.s8 %v1446
  %v1448 = vlaneseq
  %v1449 = vshrl.u32 %v1448, 7
  %v1450 = vsub.s32 %v1447, %v1449
  %v1451 = vrot.slane %v1391, %v1450
  %1452 = vrot.lane.b32.xlu0 %v1451, 96
  %v1453 = vpop.permute.xlu0 %1452
  %v1455 = vsel %vm294, %v1442, %v1453
  %v1456 = vpack.c.bf16 %v1455, %v1455
  %vm1457 = vcmask 516096
  %1458 = vst.msk [vmem:[#allocation2] sm:$0x1] %vm1457, %v1456
  %v1461 = vunpack.c.l.s4 1983009808
  %v1462 = vunpack.c.0.s8 %v1461
  %v1463 = vlaneseq
  %v1464 = vshrl.u32 %v1463, 7
  %v1465 = vsub.s32 %v1462, %v1464
  %v1466 = vrot.slane %v1361, %v1465
  %1467 = vrot.lane.b32.xlu0 %v1466, 96
  %v1468 = vpop.permute.xlu0 %1467
  %vm1470 = vcmask 254976
  %1471 = vst.msk [vmem:[#allocation3] sm:$0x3] %vm1470, %v1468
  %v1474 = vunpack.c.l.s4 1983009808
  %v1475 = vunpack.c.0.s8 %v1474
  %v1476 = vlaneseq
  %v1477 = vshrl.u32 %v1476, 7
  %v1478 = vsub.s32 %v1475, %v1477
  %v1479 = vrot.slane %v1385, %v1478
  %1480 = vrot.lane.b32.xlu0 %v1479, 96
  %v1481 = vpop.permute.xlu0 %1480
  %1483 = vst.msk [vmem:[#allocation4] sm:$0x3] %vm1470, %v1481
  %s1484 = ssub.s32 0, 0
  %s1485 = smul.u32 8, %s1484
  %p1486 = scmp.lt.s32.totalorder %s1485, 7
  %s1487 = scalar_select %p1486, %s1485, 7
  %s1488 = scalar_lea.vmem %s4, %s1487
  // Predicated region
  $region18: #{entity_detection_forward.6} parent=0 // pred_check
    _
  $region19: #{entity_detection_forward.6} parent=0 // pred_check_branch
    %1490 = sbr.rel (0) target = $region21
  $region20: #{entity_detection_forward.6} parent=0 // pred_region
    _
  $region21: #{entity_detection_forward.6} parent=0 // pred_fallthru
    _
  // Predicated region
  $region22: #{entity_detection_forward.6} parent=0 // pred_check
    _
  $region23: #{entity_detection_forward.6} parent=0 // pred_check_branch
    %1492 = sbr.rel (0) target = $region25
  $region24: #{entity_detection_forward.6} parent=0 // pred_region
    %s1493 = ssub.s32 0, 0
    %s1494 = smul.u32 8, %s1493
  $region25: #{entity_detection_forward.6} parent=0 // pred_fallthru
    _
  // Predicated region
  $region26: #{entity_detection_forward.6} parent=0 // pred_check
    _
  $region27: #{entity_detection_forward.6} parent=0 // pred_check_branch
    %1496 = sbr.rel (0) target = $region29
  $region28: #{entity_detection_forward.6} parent=0 // pred_region
    _
  $region29: #{entity_detection_forward.6} parent=0 // pred_fallthru
    _
  // Predicated region
  $region30: #{entity_detection_forward.6} parent=0 // pred_check
    _
  $region31: #{entity_detection_forward.6} parent=0 // pred_check_branch
    %1498 = sbr.rel (0) target = $region33
  $region32: #{entity_detection_forward.6} parent=0 // pred_region
    %s1499 = ssub.s32 0, 0
    %s1500 = smul.u32 8, %s1499
    %p1501 = scmp.lt.s32.totalorder %s1500, 7
    %s1502 = scalar_select %p1501, %s1500, 7
    %s1503 = scalar_lea.vmem %s4, %s1502
  $region33: #{entity_detection_forward.6} parent=0 // pred_fallthru
    _

</llo_original>
